<compile_context>
chip_gen: v7x
topology: tpu7x:2x2x1
jax: 0.10.0
libtpu: 0.0.40
codegen_flags: <defaults>
</compile_context>

<pallas_src>
import functools

import jax
import jax.numpy as jnp
from jax.experimental import pallas as pl
from jax.experimental.pallas import tpu as pltpu


def upconv_concat_kernel(x_ref, w_ref, b_ref, g_ref, skip_ref, o_ref, *, cout):
    # x_ref   : (1, Cin, H*W)        input image, flattened NCHW
    # w_ref   : (4*Cout, Cin)        rows ordered (kh, kw) major, cout minor
    # b_ref   : (4*Cout, 1)          bias replicated per tap
    # g_ref   : (4, H*W, 4*H*W)      0/1 scatter matrices (lane placement per tap)
    # skip_ref: (1, Cb, 4*H*W)       skip connection, flattened NCHW
    # o_ref   : (1, Cout+Cb, 4*H*W)  output, flattened NCHW

    # All four 2x2 taps of the transposed conv in a single MXU contraction.
    y = jnp.dot(w_ref[...], x_ref[0], preferred_element_type=jnp.float32)
    y = y + b_ref[...]                                   # (4*Cout, H*W)

    # Scatter each tap's (Cout, H*W) slab to its interleaved output lanes
    # (lane f = (2h+kh)*2W + 2w + kw).  Pure MXU work; output stays lane-dense.
    acc = jnp.dot(y[0:cout, :], g_ref[0], preferred_element_type=jnp.float32)
    for t in range(1, 4):
        acc = acc + jnp.dot(y[t * cout:(t + 1) * cout, :], g_ref[t],
                            preferred_element_type=jnp.float32)

    o_ref[0, :cout, :] = acc.astype(o_ref.dtype)
    # Fused torch.cat([x, block], dim=1): skip copied straight into its slab.
    o_ref[0, cout:, :] = skip_ref[0]


def _upconv_concat_level(x, skip, w, b):
    """One decoder level: ConvTranspose2d(kernel=2, stride=2) + channel concat."""
    N, Cin, H, W = x.shape
    Cin_w, Cout, KH, KW = w.shape
    assert Cin_w == Cin and (KH, KW) == (2, 2)
    Nb, Cb, H2, W2 = skip.shape
    assert Nb == N and (H2, W2) == (2 * H, 2 * W)

    HW = H * W
    L = 4 * HW
    Ctot = Cout + Cb

    # Flattened-NCHW views: contiguous reshapes only, no transposes of x/skip.
    x_flat = x.reshape(N, Cin, HW)
    skip_flat = skip.reshape(N, Cb, L)

    # PyTorch ConvTranspose2d weight (Cin, Cout, 2, 2) -> (4*Cout, Cin);
    # row index = (2*kh + kw)*Cout + cout.
    w_all = jnp.transpose(w, (2, 3, 1, 0)).reshape(4 * Cout, Cin)
    b_all = jnp.tile(b, (4,)).reshape(4 * Cout, 1)

    # Scatter matrices: g[t, h*W + w, (2h+kh)*2W + 2w + kw] = 1, t = 2*kh + kw.
    s = jnp.arange(HW)
    base = (4 * W) * (s // W) + 2 * (s % W)              # tap (0, 0) lanes
    offs = jnp.array([0, 1, 2 * W, 2 * W + 1], dtype=base.dtype)
    tgt = base[None, :] + offs[:, None]                  # (4, HW)
    g = (tgt[:, :, None] == jnp.arange(L)[None, None, :]).astype(jnp.float32)

    out_flat = pl.pallas_call(
        functools.partial(upconv_concat_kernel, cout=Cout),
        out_shape=jax.ShapeDtypeStruct((N, Ctot, L), jnp.float32),
        grid_spec=pltpu.PrefetchScalarGridSpec(
            num_scalar_prefetch=0,
            grid=(N,),
            in_specs=[
                pl.BlockSpec((1, Cin, HW), lambda n: (n, 0, 0)),
                pl.BlockSpec((4 * Cout, Cin), lambda n: (0, 0)),
                pl.BlockSpec((4 * Cout, 1), lambda n: (0, 0)),
                pl.BlockSpec((4, HW, L), lambda n: (0, 0, 0)),
                pl.BlockSpec((1, Cb, L), lambda n: (n, 0, 0)),
            ],
            out_specs=pl.BlockSpec((1, Ctot, L), lambda n: (n, 0, 0)),
        ),
        compiler_params=pltpu.CompilerParams(
            dimension_semantics=("parallel",)),
    )(x_flat, w_all, b_all, g, skip_flat)

    # Free contiguous reshape back to NCHW.
    return out_flat.reshape(N, Ctot, 2 * H, 2 * W)


def decoder_forward(x, blocks, weights, biases):
    """Pallas Decoder.forward: per level, upconv (k=2, s=2) then channel concat."""
    for w, b, blk in zip(weights, biases, blocks):
        x = _upconv_concat_level(x, blk, w, b)
    return x


def decoder_reference(x, blocks, weights, biases):
    """Pure-JAX reference matching PyTorch ConvTranspose2d(k=2, s=2) + cat."""
    for w, b, blk in zip(weights, biases, blocks):
        y = jnp.einsum('nihw,iokl->nohkwl', x, w)
        N, Co, H, _, W, _ = y.shape
        y = y.reshape(N, Co, 2 * H, 2 * W) + b[None, :, None, None]
        x = jnp.concatenate([y, blk], axis=1)
    return x


if __name__ == "__main__":
    # Decoder(channels=(16, 8)): one ConvTranspose2d(16, 8, 2, 2) level followed
    # by concat with the skip block.  (The module's own channel bookkeeping is
    # only consistent across multiple levels when skips are empty, so the demo
    # exercises a single level with a real skip connection.)
    N, Cin, Cout, H, W = 2, 16, 8, 16, 16
    Cb = 8

    key = jax.random.PRNGKey(0)
    kx, kw, kb, ks = jax.random.split(key, 4)
    x = jax.random.normal(kx, (N, Cin, H, W), dtype=jnp.float32)
    w = jax.random.normal(kw, (Cin, Cout, 2, 2), dtype=jnp.float32) * 0.1
    b = jax.random.normal(kb, (Cout,), dtype=jnp.float32) * 0.1
    skip = jax.random.normal(ks, (N, Cb, 2 * H, 2 * W), dtype=jnp.float32)

    out = decoder_forward(x, [skip], [w], [b])
    jax.block_until_ready(out)

    ref = decoder_reference(x, [skip], [w], [b])
    assert out.shape == (N, Cout + Cb, 2 * H, 2 * W)
    assert jnp.allclose(out, ref, atol=1e-4, rtol=1e-4), "mismatch vs reference"

    print("KERNEL_OK")
</pallas_src>

<mosaic_0001>
module attributes {stable_mosaic.version = 11 : i64} {
  func.func @upconv_concat_kernel(%arg0: i32, %arg1: memref<1x16x256xf32, #tpu.memory_space<vmem>>, %arg2: memref<32x16xf32, #tpu.memory_space<vmem>>, %arg3: memref<32x1xf32, #tpu.memory_space<vmem>>, %arg4: memref<4x256x1024xf32, #tpu.memory_space<vmem>>, %arg5: memref<1x8x1024xf32, #tpu.memory_space<vmem>>, %arg6: memref<1x16x1024xf32, #tpu.memory_space<vmem>>) attributes {dimension_semantics = [#tpu.dimension_semantics<parallel>], iteration_bounds = array<i64: 2>, scalar_prefetch = 0 : i64, scratch_operands = 0 : i64, tpu.core_type = #tpu.core_type<tc>, window_params = [{transform_indices = @transform_0, window_bounds = array<i64: 1, 16, 256>}, {pipeline_mode = #tpu.pipeline_mode<synchronous>, transform_indices = @transform_1, window_bounds = array<i64: 32, 16>}, {pipeline_mode = #tpu.pipeline_mode<synchronous>, transform_indices = @transform_2, window_bounds = array<i64: 32, 1>}, {pipeline_mode = #tpu.pipeline_mode<synchronous>, transform_indices = @transform_3, window_bounds = array<i64: 4, 256, 1024>}, {transform_indices = @transform_4, window_bounds = array<i64: 1, 8, 1024>}, {transform_indices = @transform_5, window_bounds = array<i64: 1, 16, 1024>}]} {
    %c0 = arith.constant 0 : index
    %c0_0 = arith.constant 0 : index
    %0 = vector.load %arg2[%c0, %c0_0] : memref<32x16xf32, #tpu.memory_space<vmem>>, vector<32x16xf32>
    %c0_1 = arith.constant 0 : index
    %c0_2 = arith.constant 0 : index
    %c0_3 = arith.constant 0 : index
    %1 = vector.load %arg1[%c0_1, %c0_2, %c0_3] : memref<1x16x256xf32, #tpu.memory_space<vmem>>, vector<1x16x256xf32>
    %2 = vector.shape_cast %1 : vector<1x16x256xf32> to vector<16x256xf32>
    %cst = arith.constant dense<0.000000e+00> : vector<32x256xf32>
    %3 = tpu.matmul %0, %2, %cst {dimension_numbers = #tpu.dot_dimension_numbers<[1], [0], [0], [1], [0, 0, 1, 1], [], []>} : vector<32x16xf32>, vector<16x256xf32>, vector<32x256xf32> -> vector<32x256xf32>
    %c0_4 = arith.constant 0 : index
    %c0_5 = arith.constant 0 : index
    %4 = vector.load %arg3[%c0_4, %c0_5] : memref<32x1xf32, #tpu.memory_space<vmem>>, vector<32x1xf32>
    %5 = vector.broadcast %4 : vector<32x1xf32> to vector<32x256xf32>
    %6 = arith.addf %3, %5 : vector<32x256xf32>
    %7 = vector.extract_strided_slice %6 {offsets = [0, 0], sizes = [8, 256], strides = [1, 1]} : vector<32x256xf32> to vector<8x256xf32>
    %c0_6 = arith.constant 0 : index
    %c0_7 = arith.constant 0 : index
    %c0_8 = arith.constant 0 : index
    %8 = vector.load %arg4[%c0_6, %c0_7, %c0_8] : memref<4x256x1024xf32, #tpu.memory_space<vmem>>, vector<1x256x1024xf32>
    %9 = vector.shape_cast %8 : vector<1x256x1024xf32> to vector<256x1024xf32>
    %cst_9 = arith.constant dense<0.000000e+00> : vector<8x1024xf32>
    %10 = tpu.matmul %7, %9, %cst_9 {dimension_numbers = #tpu.dot_dimension_numbers<[1], [0], [0], [1], [0, 0, 1, 1], [], []>} : vector<8x256xf32>, vector<256x1024xf32>, vector<8x1024xf32> -> vector<8x1024xf32>
    %11 = vector.extract_strided_slice %6 {offsets = [8, 0], sizes = [8, 256], strides = [1, 1]} : vector<32x256xf32> to vector<8x256xf32>
    %c1 = arith.constant 1 : index
    %c0_10 = arith.constant 0 : index
    %c0_11 = arith.constant 0 : index
    %12 = vector.load %arg4[%c1, %c0_10, %c0_11] : memref<4x256x1024xf32, #tpu.memory_space<vmem>>, vector<1x256x1024xf32>
    %13 = vector.shape_cast %12 : vector<1x256x1024xf32> to vector<256x1024xf32>
    %cst_12 = arith.constant dense<0.000000e+00> : vector<8x1024xf32>
    %14 = tpu.matmul %11, %13, %cst_12 {dimension_numbers = #tpu.dot_dimension_numbers<[1], [0], [0], [1], [0, 0, 1, 1], [], []>} : vector<8x256xf32>, vector<256x1024xf32>, vector<8x1024xf32> -> vector<8x1024xf32>
    %15 = arith.addf %10, %14 : vector<8x1024xf32>
    %16 = vector.extract_strided_slice %6 {offsets = [16, 0], sizes = [8, 256], strides = [1, 1]} : vector<32x256xf32> to vector<8x256xf32>
    %c2 = arith.constant 2 : index
    %c0_13 = arith.constant 0 : index
    %c0_14 = arith.constant 0 : index
    %17 = vector.load %arg4[%c2, %c0_13, %c0_14] : memref<4x256x1024xf32, #tpu.memory_space<vmem>>, vector<1x256x1024xf32>
    %18 = vector.shape_cast %17 : vector<1x256x1024xf32> to vector<256x1024xf32>
    %cst_15 = arith.constant dense<0.000000e+00> : vector<8x1024xf32>
    %19 = tpu.matmul %16, %18, %cst_15 {dimension_numbers = #tpu.dot_dimension_numbers<[1], [0], [0], [1], [0, 0, 1, 1], [], []>} : vector<8x256xf32>, vector<256x1024xf32>, vector<8x1024xf32> -> vector<8x1024xf32>
    %20 = arith.addf %15, %19 : vector<8x1024xf32>
    %21 = vector.extract_strided_slice %6 {offsets = [24, 0], sizes = [8, 256], strides = [1, 1]} : vector<32x256xf32> to vector<8x256xf32>
    %c3 = arith.constant 3 : index
    %c0_16 = arith.constant 0 : index
    %c0_17 = arith.constant 0 : index
    %22 = vector.load %arg4[%c3, %c0_16, %c0_17] : memref<4x256x1024xf32, #tpu.memory_space<vmem>>, vector<1x256x1024xf32>
    %23 = vector.shape_cast %22 : vector<1x256x1024xf32> to vector<256x1024xf32>
    %cst_18 = arith.constant dense<0.000000e+00> : vector<8x1024xf32>
    %24 = tpu.matmul %21, %23, %cst_18 {dimension_numbers = #tpu.dot_dimension_numbers<[1], [0], [0], [1], [0, 0, 1, 1], [], []>} : vector<8x256xf32>, vector<256x1024xf32>, vector<8x1024xf32> -> vector<8x1024xf32>
    %25 = arith.addf %20, %24 : vector<8x1024xf32>
    %c0_19 = arith.constant 0 : index
    %c0_20 = arith.constant 0 : index
    %c0_21 = arith.constant 0 : index
    %26 = vector.load %arg6[%c0_19, %c0_20, %c0_21] : memref<1x16x1024xf32, #tpu.memory_space<vmem>>, vector<1x8x1024xf32>
    %27 = vector.shape_cast %26 : vector<1x8x1024xf32> to vector<8x1024xf32>
    %28 = vector.shape_cast %25 : vector<8x1024xf32> to vector<1x8x1024xf32>
    tpu.vector_store %arg6[%c0_19, %c0_20, %c0_21], %28 {strides = array<i32>} : memref<1x16x1024xf32, #tpu.memory_space<vmem>>, vector<1x8x1024xf32>,
    %c0_22 = arith.constant 0 : index
    %c0_23 = arith.constant 0 : index
    %c0_24 = arith.constant 0 : index
    %29 = vector.load %arg5[%c0_22, %c0_23, %c0_24] : memref<1x8x1024xf32, #tpu.memory_space<vmem>>, vector<1x8x1024xf32>
    %30 = vector.shape_cast %29 : vector<1x8x1024xf32> to vector<8x1024xf32>
    %c0_25 = arith.constant 0 : index
    %c8 = arith.constant 8 : index
    %c0_26 = arith.constant 0 : index
    %31 = vector.load %arg6[%c0_25, %c8, %c0_26] : memref<1x16x1024xf32, #tpu.memory_space<vmem>>, vector<1x8x1024xf32>
    %32 = vector.shape_cast %31 : vector<1x8x1024xf32> to vector<8x1024xf32>
    %33 = vector.shape_cast %30 : vector<8x1024xf32> to vector<1x8x1024xf32>
    tpu.vector_store %arg6[%c0_25, %c8, %c0_26], %33 {strides = array<i32>} : memref<1x16x1024xf32, #tpu.memory_space<vmem>>, vector<1x8x1024xf32>,
    return
  }
  func.func @transform_0(%arg0: i32) -> (i32, i32, i32) {
    %c0_i32 = arith.constant 0 : i32
    %c0_i32_0 = arith.constant 0 : i32
    %c0_i32_1 = arith.constant 0 : i32
    return %arg0, %c0_i32, %c0_i32_0 : i32, i32, i32
  }
  func.func @transform_1(%arg0: i32) -> (i32, i32) {
    %c0_i32 = arith.constant 0 : i32
    %c0_i32_0 = arith.constant 0 : i32
    %c0_i32_1 = arith.constant 0 : i32
    return %c0_i32, %c0_i32_0 : i32, i32
  }
  func.func @transform_2(%arg0: i32) -> (i32, i32) {
    %c0_i32 = arith.constant 0 : i32
    %c0_i32_0 = arith.constant 0 : i32
    %c0_i32_1 = arith.constant 0 : i32
    return %c0_i32, %c0_i32_0 : i32, i32
  }
  func.func @transform_3(%arg0: i32) -> (i32, i32, i32) {
    %c0_i32 = arith.constant 0 : i32
    %c0_i32_0 = arith.constant 0 : i32
    %c0_i32_1 = arith.constant 0 : i32
    %c0_i32_2 = arith.constant 0 : i32
    return %c0_i32, %c0_i32_0, %c0_i32_1 : i32, i32, i32
  }
  func.func @transform_4(%arg0: i32) -> (i32, i32, i32) {
    %c0_i32 = arith.constant 0 : i32
    %c0_i32_0 = arith.constant 0 : i32
    %c0_i32_1 = arith.constant 0 : i32
    return %arg0, %c0_i32, %c0_i32_0 : i32, i32, i32
  }
  func.func @transform_5(%arg0: i32) -> (i32, i32, i32) {
    %c0_i32 = arith.constant 0 : i32
    %c0_i32_0 = arith.constant 0 : i32
    %c0_i32_1 = arith.constant 0 : i32
    return %arg0, %c0_i32, %c0_i32_0 : i32, i32, i32
  }
}

</mosaic_0001>

<llo_original>
// kernel: tpu_custom_call.1
$region0: #{tpu_custom_call.1}
  #allocation0 [shape = 'u32[]', space=smem, size = 0x4, offset = 0x4, fixed_abs, tag = 'smem constant byte address 0x4 - core index']
  #allocation1 [shape = 'u32[144,128]{1,0:T(1,128)}', space=vmem, size = 0x12000, scoped, tag = 'internal scratch']
  %s0 = inlined_call_operand.hbm [shape: f32[2,16,256], index: 0, kind: input, shape index: {}]
  %s1 = inlined_call_operand.vmem [shape: f32[32,16], index: 1, kind: input, shape index: {}]
  %s2 = inlined_call_operand.vmem [shape: f32[32,1], index: 2, kind: input, shape index: {}]
  %s3 = inlined_call_operand.hbm [shape: f32[4,256,1024], index: 3, kind: input, shape index: {}]
  %s4 = inlined_call_operand.hbm [shape: f32[2,8,1024], index: 4, kind: input, shape index: {}]
  %s5 = inlined_call_operand.hbm [shape: f32[2,16,1024], index: 5, kind: output, shape index: {}]
  %s6 = sld [smem:[#allocation0]]
  $region65: #{tpu_custom_call.1} parent=0
    _
  %s8 = ssub.s32 1, %s6
  %s9 = scalar_select 0, %s8, %s6
  $region1: #{tpu_custom_call.1} parent=0
    #allocation2 [shape = 'u8[32768]{0}', space=vmem, size = 0x8000, scoped, tag = 'input window, operand 0']
    #allocation3 [shape = 's32[2]{0}', space=sflag, size = 0x8, scoped, tag = 'scoped memory for tpu_custom_call.1']
    #allocation4 [shape = 's32[2]{0}', space=sflag, size = 0x8, scoped, tag = 'scoped memory for tpu_custom_call.1']
    #allocation5 [shape = 'u8[4194304]{0}', space=vmem, size = 0x400000, scoped, tag = 'input window, operand 3, single buffered']
    #allocation6 [shape = 's32[1]{0}', space=sflag, size = 0x4, scoped, tag = 'scoped memory for tpu_custom_call.1']
    #allocation7 [shape = 'u8[65536]{0}', space=vmem, size = 0x10000, scoped, tag = 'input window, operand 4']
    #allocation8 [shape = 'u8[131072]{0}', space=vmem, size = 0x20000, scoped, tag = 'output window, operand 0']
    %10 = vsyncpa [#allocation3], 0
    %s11 = scalar_lea.sflag [#allocation3], 1
    %12 = vsyncpa %s11, 0
    %13 = vsyncpa [#allocation6], 0
    %14 = vsyncpa [#allocation4], 0
    %s15 = scalar_lea.sflag [#allocation4], 1
    %16 = vsyncpa %s15, 0
    loop: start=0, step=1, limit=4
    $region2: #{tpu_custom_call.1} parent=1 // loop_pre_header
      _
    $region3: #{tpu_custom_call.1} parent=1 // loop_header
      %s18 = sphi 0, %s22
      %p19 = scmp.ge.s32.totalorder %s18, 4
      %s28 = sphi 0, %s30
      %s31 = sphi 0, %s28
      %s32 = sphi 0, %s31
      %s48 = sphi 0, %s32
      %s52 = sphi 0, %s52
      %s54 = sphi 0, %s52
      %s55 = sphi 0, %s54
      %s69 = sphi 0, %s55
      %s73 = sphi 0, %s73
      %s75 = sphi 0, %s73
      %s76 = sphi 0, %s75
      %s90 = sphi 0, %s76
      %s94 = sphi 0, %s94
      %s96 = sphi 0, %s94
      %s97 = sphi 0, %s96
      %s111 = sphi 0, %s97
      %s117 = sphi 0, %s119
      %s120 = sphi 0, %s117
      %s121 = sphi 0, %s120
      %s137 = sphi 0, %s121
      %s143 = sphi 0, %s145
      %s146 = sphi 0, %s143
      %s147 = sphi 0, %s146
      %s163 = sphi 0, %s147
    $region4: #{tpu_custom_call.1} parent=1 // loop_header_branch
      %21 = sbr.rel (%p19) target = $region8
    $region5: #{tpu_custom_call.1} parent=1 // loop_body
      %s23 = ssub.s32 %s18, 1
      %s24 = ssub.s32 %s18, 2
      %s25 = sadd.s32 %s18, 1
      %s26 = ssub.s32 %s18, %s25
      %p27 = scmp.eq.s32.totalorder %s26, 0
      %s29 = sadd.s32 %s28, 1
      %s30 = scalar_select %p27, %s28, %s29
      %p33 = pneg %p27
      %p34 = scmp.eq.s32.totalorder %s18, 1
      %p35 = por %p33, %p34
      %p36 = scmp.ne.s32.totalorder %s28, %s31
      %p37 = scmp.eq.s32.totalorder %s18, 0
      %p38 = por %p36, %p37
      %p39 = scmp.ne.s32.totalorder %s28, %s31
      %p40 = scmp.eq.s32.totalorder %s23, 1
      %p41 = por %p39, %p40
      %p42 = scmp.ne.s32.totalorder %s31, %s32
      %p43 = scmp.eq.s32.totalorder %s23, 0
      %p44 = por %p42, %p43
      %p45 = scmp.ne.s32.totalorder %s31, %s32
      %p46 = scmp.eq.s32.totalorder %s24, 1
      %p47 = por %p45, %p46
      %p49 = scmp.ne.s32.totalorder %s32, %s48
      %p50 = scmp.eq.s32.totalorder %s24, 0
      %p51 = por %p49, %p50
      %s53 = sadd.s32 %s52, 1
      %p56 = scmp.eq.s32.totalorder %s18, 1
      %p57 = scmp.ne.s32.totalorder %s52, %s54
      %p58 = scmp.eq.s32.totalorder %s18, 0
      %p59 = por %p57, %p58
      %p60 = scmp.ne.s32.totalorder %s52, %s54
      %p61 = scmp.eq.s32.totalorder %s23, 1
      %p62 = por %p60, %p61
      %p63 = scmp.ne.s32.totalorder %s54, %s55
      %p64 = scmp.eq.s32.totalorder %s23, 0
      %p65 = por %p63, %p64
      %p66 = scmp.ne.s32.totalorder %s54, %s55
      %p67 = scmp.eq.s32.totalorder %s24, 1
      %p68 = por %p66, %p67
      %p70 = scmp.ne.s32.totalorder %s55, %s69
      %p71 = scmp.eq.s32.totalorder %s24, 0
      %p72 = por %p70, %p71
      %s74 = sadd.s32 %s73, 1
      %p77 = scmp.eq.s32.totalorder %s18, 1
      %p78 = scmp.ne.s32.totalorder %s73, %s75
      %p79 = scmp.eq.s32.totalorder %s18, 0
      %p80 = por %p78, %p79
      %p81 = scmp.ne.s32.totalorder %s73, %s75
      %p82 = scmp.eq.s32.totalorder %s23, 1
      %p83 = por %p81, %p82
      %p84 = scmp.ne.s32.totalorder %s75, %s76
      %p85 = scmp.eq.s32.totalorder %s23, 0
      %p86 = por %p84, %p85
      %p87 = scmp.ne.s32.totalorder %s75, %s76
      %p88 = scmp.eq.s32.totalorder %s24, 1
      %p89 = por %p87, %p88
      %p91 = scmp.ne.s32.totalorder %s76, %s90
      %p92 = scmp.eq.s32.totalorder %s24, 0
      %p93 = por %p91, %p92
      %s95 = sadd.s32 %s94, 1
      %p98 = scmp.eq.s32.totalorder %s18, 1
      %p99 = scmp.ne.s32.totalorder %s94, %s96
      %p100 = scmp.eq.s32.totalorder %s18, 0
      %p101 = por %p99, %p100
      %p102 = scmp.ne.s32.totalorder %s94, %s96
      %p103 = scmp.eq.s32.totalorder %s23, 1
      %p104 = por %p102, %p103
      %p105 = scmp.ne.s32.totalorder %s96, %s97
      %p106 = scmp.eq.s32.totalorder %s23, 0
      %p107 = por %p105, %p106
      %p108 = scmp.ne.s32.totalorder %s96, %s97
      %p109 = scmp.eq.s32.totalorder %s24, 1
      %p110 = por %p108, %p109
      %p112 = scmp.ne.s32.totalorder %s97, %s111
      %p113 = scmp.eq.s32.totalorder %s24, 0
      %p114 = por %p112, %p113
      %s115 = ssub.s32 %s18, %s25
      %p116 = scmp.eq.s32.totalorder %s115, 0
      %s118 = sadd.s32 %s117, 1
      %s119 = scalar_select %p116, %s117, %s118
      %p122 = pneg %p116
      %p123 = scmp.eq.s32.totalorder %s18, 1
      %p124 = por %p122, %p123
      %p125 = scmp.ne.s32.totalorder %s117, %s120
      %p126 = scmp.eq.s32.totalorder %s18, 0
      %p127 = por %p125, %p126
      %p128 = scmp.ne.s32.totalorder %s117, %s120
      %p129 = scmp.eq.s32.totalorder %s23, 1
      %p130 = por %p128, %p129
      %p131 = scmp.ne.s32.totalorder %s120, %s121
      %p132 = scmp.eq.s32.totalorder %s23, 0
      %p133 = por %p131, %p132
      %p134 = scmp.ne.s32.totalorder %s120, %s121
      %p135 = scmp.eq.s32.totalorder %s24, 1
      %p136 = por %p134, %p135
      %p138 = scmp.ne.s32.totalorder %s121, %s137
      %p139 = scmp.eq.s32.totalorder %s24, 0
      %p140 = por %p138, %p139
      %s141 = ssub.s32 %s18, %s25
      %p142 = scmp.eq.s32.totalorder %s141, 0
      %s144 = sadd.s32 %s143, 1
      %s145 = scalar_select %p142, %s143, %s144
      %p148 = pneg %p142
      %p149 = scmp.eq.s32.totalorder %s18, 1
      %p150 = por %p148, %p149
      %p151 = scmp.ne.s32.totalorder %s143, %s146
      %p152 = scmp.eq.s32.totalorder %s18, 0
      %p153 = por %p151, %p152
      %p154 = scmp.ne.s32.totalorder %s143, %s146
      %p155 = scmp.eq.s32.totalorder %s23, 1
      %p156 = por %p154, %p155
      %p157 = scmp.ne.s32.totalorder %s146, %s147
      %p158 = scmp.eq.s32.totalorder %s23, 0
      %p159 = por %p157, %p158
      %p160 = scmp.ne.s32.totalorder %s146, %s147
      %p161 = scmp.eq.s32.totalorder %s24, 1
      %p162 = por %p160, %p161
      %p164 = scmp.ne.s32.totalorder %s147, %s163
      %p165 = scmp.eq.s32.totalorder %s24, 0
      %p166 = por %p164, %p165
      %p167 = scmp.le.s32.totalorder 1, %s18
      %p168 = scmp.lt.s32.totalorder %s18, 3
      %p169 = pnand %p167, %p168
      %p170 = pneg %p169
      // Predicated region
      $region9: #{tpu_custom_call.1} parent=5 // pred_check
        _
      $region10: #{tpu_custom_call.1} parent=5 // pred_check_branch
        %172 = sbr.rel (%p169) target = $region12
      $region11: #{tpu_custom_call.1} parent=5 // pred_region
        %s173 = ssub.s32 %s18, 1
        // Predicated region
        $region13: #{tpu_custom_call.1} parent=11 // pred_check
          %p174 = pneg %p65
        $region14: #{tpu_custom_call.1} parent=11 // pred_check_branch
          %176 = sbr.rel (%p174) target = $region16
        $region15: #{tpu_custom_call.1} parent=11 // pred_region
          _
        $region16: #{tpu_custom_call.1} parent=11 // pred_fallthru
          _
        // Predicated region
        $region17: #{tpu_custom_call.1} parent=11 // pred_check
          %p177 = pneg %p86
        $region18: #{tpu_custom_call.1} parent=11 // pred_check_branch
          %179 = sbr.rel (%p177) target = $region20
        $region19: #{tpu_custom_call.1} parent=11 // pred_region
          _
        $region20: #{tpu_custom_call.1} parent=11 // pred_fallthru
          _
        // Predicated region
        $region21: #{tpu_custom_call.1} parent=11 // pred_check
          %p180 = pneg %p107
        $region22: #{tpu_custom_call.1} parent=11 // pred_check_branch
          %182 = sbr.rel (%p180) target = $region24
        $region23: #{tpu_custom_call.1} parent=11 // pred_region
          %s184 = ssub.s32 131072, 131072
          %185 = vsyncadd [#allocation6], %s184
          %s186 = sshll.u32 [#allocation5], 4
          %s187 = int_to_ptr.vmem [resolvable:$true] %s186
          %192 = dma.hbm_to_vmem [thread:$0]  %s3, 131072, %s187, [#allocation6], 1024, 1024, 64
        $region24: #{tpu_custom_call.1} parent=11 // pred_fallthru
          _
      $region12: #{tpu_custom_call.1} parent=5 // pred_fallthru
        _
      %p193 = scmp.lt.s32.totalorder %s18, 2
      // Predicated region
      $region25: #{tpu_custom_call.1} parent=5 // pred_check
        %p194 = pneg %p193
      $region26: #{tpu_custom_call.1} parent=5 // pred_check_branch
        %196 = sbr.rel (%p194) target = $region28
      $region27: #{tpu_custom_call.1} parent=5 // pred_region
        // Predicated region
        $region29: #{tpu_custom_call.1} parent=27 // pred_check
          %p197 = pneg %p38
        $region30: #{tpu_custom_call.1} parent=27 // pred_check_branch
          %199 = sbr.rel (%p197) target = $region32
        $region31: #{tpu_custom_call.1} parent=27 // pred_region
          %s200 = sand.u32 %s18, 1
          %s201 = scalar_lea.sflag [#allocation3], %s200
          %s202 = sand.u32 %s28, 1
          %s203 = smul.addr %s202, 32
          %s204 = scalar_lea.vmem [#allocation2], %s203
          %s206 = ssub.s32 512, 512
          %207 = vsyncadd %s201, %s206
          %s208 = smul.addr %s18, 4
          %s209 = smul.addr %s208, 128
          %s210 = scalar_lea.hbm %s0, %s209
          %s211 = sshll.u32 %s204, 4
          %s212 = int_to_ptr.vmem [resolvable:$true] %s211
          %217 = dma.hbm_to_vmem [thread:$0]  %s210, 512, %s212, %s201, 256, 256, 16
        $region32: #{tpu_custom_call.1} parent=27 // pred_fallthru
          _
        // Predicated region
        $region33: #{tpu_custom_call.1} parent=27 // pred_check
          %p218 = pneg %p127
        $region34: #{tpu_custom_call.1} parent=27 // pred_check_branch
          %220 = sbr.rel (%p218) target = $region36
        $region35: #{tpu_custom_call.1} parent=27 // pred_region
          %s221 = sand.u32 %s18, 1
          %s222 = scalar_lea.sflag [#allocation3], %s221
          %s223 = sand.u32 %s117, 1
          %s224 = smul.addr %s223, 64
          %s225 = scalar_lea.vmem [#allocation7], %s224
          %s227 = ssub.s32 1024, 1024
          %228 = vsyncadd %s222, %s227
          %s229 = smul.addr %s18, 8
          %s230 = smul.addr %s229, 128
          %s231 = scalar_lea.hbm %s4, %s230
          %s233 = sshll.u32 %s225, 4
          %s234 = int_to_ptr.vmem [resolvable:$true] %s233
          %236 = dma.hbm_to_vmem [thread:$0]  %s231, 1024, %s234, %s222
        $region36: #{tpu_custom_call.1} parent=27 // pred_fallthru
          _
      $region28: #{tpu_custom_call.1} parent=5 // pred_fallthru
        _
      %p237 = scmp.le.s32.totalorder 1, %s18
      %p238 = scmp.lt.s32.totalorder %s18, 3
      %p239 = pnand %p237, %p238
      %p240 = pneg %p239
      // Predicated region
      $region37: #{tpu_custom_call.1} parent=5 // pred_check
        _
      $region38: #{tpu_custom_call.1} parent=5 // pred_check_branch
        %242 = sbr.rel (%p239) target = $region40
      $region39: #{tpu_custom_call.1} parent=5 // pred_region
        %s243 = ssub.s32 %s18, 1
        %s244 = sand.u32 %s23, 1
        %s245 = scalar_lea.sflag [#allocation3], %s244
        %s246 = sand.u32 %s31, 1
        %s247 = smul.addr %s246, 32
        %s248 = scalar_lea.vmem [#allocation2], %s247
        // Predicated region
        $region41: #{tpu_custom_call.1} parent=39 // pred_check
          %p249 = pneg %p44
        $region42: #{tpu_custom_call.1} parent=39 // pred_check_branch
          %251 = sbr.rel (%p249) target = $region44
        $region43: #{tpu_custom_call.1} parent=39 // pred_region
          %252 = dma.done %s245, 512
        $region44: #{tpu_custom_call.1} parent=39 // pred_fallthru
          _
        // Predicated region
        $region45: #{tpu_custom_call.1} parent=39 // pred_check
          %p253 = pneg %p107
        $region46: #{tpu_custom_call.1} parent=39 // pred_check_branch
          %255 = sbr.rel (%p253) target = $region48
        $region47: #{tpu_custom_call.1} parent=39 // pred_region
          %256 = dma.done [#allocation6], 131072
        $region48: #{tpu_custom_call.1} parent=39 // pred_fallthru
          _
        %s257 = sand.u32 %s23, 1
        %s258 = scalar_lea.sflag [#allocation3], %s257
        %s259 = sand.u32 %s120, 1
        %s260 = smul.addr %s259, 64
        %s261 = scalar_lea.vmem [#allocation7], %s260
        // Predicated region
        $region49: #{tpu_custom_call.1} parent=39 // pred_check
          %p262 = pneg %p133
        $region50: #{tpu_custom_call.1} parent=39 // pred_check_branch
          %264 = sbr.rel (%p262) target = $region52
        $region51: #{tpu_custom_call.1} parent=39 // pred_region
          %265 = dma.done %s258, 1024
        $region52: #{tpu_custom_call.1} parent=39 // pred_fallthru
          _
        %s266 = sand.u32 %s23, 1
        %s267 = scalar_lea.sflag [#allocation3], %s266
        %s268 = sand.u32 %s31, 1
        %s269 = smul.addr %s268, 32
        %s270 = scalar_lea.vmem [#allocation2], %s269
        %p271 = pneg %p44
        %p272 = pneg %p41
        %p273 = pneg %p65
        %p274 = pneg %p62
        %p275 = pneg %p86
        %p276 = pneg %p83
        %p277 = pneg %p107
        %p278 = pneg %p104
        %s279 = sand.u32 %s23, 1
        %s280 = scalar_lea.sflag [#allocation3], %s279
        %s281 = sand.u32 %s120, 1
        %s282 = smul.addr %s281, 64
        %s283 = scalar_lea.vmem [#allocation7], %s282
        %p284 = pneg %p133
        %p285 = pneg %p130
        %p286 = pneg %p159
        %p287 = pneg %p156
        %s288 = sand.u32 %s146, 1
        %s289 = scalar_lea.sflag [#allocation4], %s288
        %s290 = sand.u32 %s146, 1
        %s291 = smul.addr %s290, 128
        %s292 = scalar_lea.vmem [#allocation8], %s291
        %v293 = vld [vmem:[%s1] sm:$0xff]
        %v294 = vld [vmem:[%s1 + $0x8] sm:$0xff]
        %v295 = vld [vmem:[%s1 + $0x10] sm:$0xff]
        %v296 = vld [vmem:[%s1 + $0x18] sm:$0xff]
        %v297 = vld [vmem:[%s248] sm:$0xff]
        %v298 = vld [vmem:[%s248 + $0x8] sm:$0xff]
        %v299 = vld [vmem:[%s248 + $0x10] sm:$0xff]
        %v300 = vld [vmem:[%s248 + $0x18] sm:$0xff]
        %v301 = vld [vmem:[%s2] sm:$0xff]
        %v302 = vld [vmem:[%s2 + $0x8] sm:$0xff]
        %v303 = vld [vmem:[%s2 + $0x10] sm:$0xff]
        %v304 = vld [vmem:[%s2 + $0x18] sm:$0xff]
        %306 = vset.pattern.permute.xlu0 0
        %307 = vperm.xlu0 %306, %v301
        %v308 = vpop.permute.xlu0 %307
        %311 = vset.pattern.permute.xlu0 0
        %312 = vperm.xlu0 %311, %v302
        %v313 = vpop.permute.xlu0 %312
        %316 = vset.pattern.permute.xlu0 0
        %317 = vperm.xlu0 %316, %v303
        %v318 = vpop.permute.xlu0 %317
        %321 = vset.pattern.permute.xlu0 0
        %322 = vperm.xlu0 %321, %v304
        %v323 = vpop.permute.xlu0 %322
        %vm325 = vcmask 130048
        %v327 = vsel %vm325, %v293, 0
        %v330 = vsel %vm325, %v294, 0
        %v333 = vsel %vm325, %v295, 0
        %v336 = vsel %vm325, %v296, 0
        %338 = vmatprep.subr.mxu0 %v298
        %339 = vmatpush1.msra.mxu0 %v297
        %340 = vmatprep.subr.mxu0 %v300
        %341 = vmatpush1.msra.mxu0 %v299
        %342 = vmatprep.subr.mxu0 0.0
        %343 = vmatpush1.msra.mxu0 0.0
        %344 = vmatprep.subr.mxu0 0.0
        %345 = vmatpush1.msra.mxu0 0.0
        %346 = vmatprep.subr.mxu0 0.0
        %347 = vmatpush1.msra.mxu0 0.0
        %348 = vmatprep.subr.mxu0 0.0
        %349 = vmatpush1.msra.mxu0 0.0
        %350 = vmatprep.subr.mxu0 0.0
        %351 = vmatpush1.msra.mxu0 0.0
        %352 = vmatprep.subr.mxu0 0.0
        %353 = vmatpush1.msra.mxu0 0.0
        %354 = vmatprep.subr.mxu0 0.0
        %355 = vmatpush1.msra.mxu0 0.0
        %356 = vmatprep.subr.mxu0 0.0
        %357 = vmatpush1.msra.mxu0 0.0
        %358 = vmatprep.subr.mxu0 0.0
        %359 = vmatpush1.msra.mxu0 0.0
        %360 = vmatprep.subr.mxu0 0.0
        %361 = vmatpush1.msra.mxu0 0.0
        %362 = vmatprep.subr.mxu0 0.0
        %363 = vmatpush1.msra.mxu0 0.0
        %364 = vmatprep.subr.mxu0 0.0
        %365 = vmatpush1.msra.mxu0 0.0
        %366 = vmatprep.subr.mxu0 0.0
        %367 = vmatpush1.msra.mxu0 0.0
        %368 = vmatprep.subr.mxu0 0.0
        %369 = vmatpush1.msra.mxu0 0.0
        %370 = vmatprep.subr.mxu0 0.0
        %371 = vmatpush1.msra.mxu0 0.0
        %372 = vmatprep.subr.mxu0 0.0
        %373 = vmatpush1.msra.mxu0 0.0
        %374 = vmatprep.subr.mxu0 0.0
        %375 = vmatpush1.msra.mxu0 0.0
        %376 = vmatprep.subr.mxu0 0.0
        %377 = vmatpush1.msra.mxu0 0.0
        %378 = vmatprep.subr.mxu0 0.0
        %379 = vmatpush1.msra.mxu0 0.0
        %380 = vmatprep.subr.mxu0 0.0
        %381 = vmatpush1.msra.mxu0 0.0
        %382 = vmatprep.subr.mxu0 0.0
        %383 = vmatpush1.msra.mxu0 0.0
        %384 = vmatprep.subr.mxu0 0.0
        %385 = vmatpush1.msra.mxu0 0.0
        %386 = vmatprep.subr.mxu0 0.0
        %387 = vmatpush1.msra.mxu0 0.0
        %388 = vmatprep.subr.mxu0 0.0
        %389 = vmatpush1.msra.mxu0 0.0
        %390 = vmatprep.subr.mxu0 0.0
        %391 = vmatpush1.msra.mxu0 0.0
        %392 = vmatprep.subr.mxu0 0.0
        %393 = vmatpush1.msra.mxu0 0.0
        %394 = vmatprep.subr.mxu0 0.0
        %395 = vmatpush1.msra.mxu0 0.0
        %396 = vmatprep.subr.mxu0 0.0
        %397 = vmatpush1.msra.mxu0 0.0
        %398 = vmatprep.subr.mxu0 0.0
        %399 = vmatpush1.msra.mxu0 0.0
        %400 = vmatprep.subr.mxu0 0.0
        %401 = vmatpush1.msra.mxu0 0.0
        %402 = vmatprep.mubr.f32.mxu0 0.0
        %403 = vmatmul.mubr.f32.gmra.mrb[0].mxu0 %v327
        %v404 = vpop.f32.mrb[0].mxu0
        %v405 = vadd.f32 %v308, %v404
        %v406 = vpop.f32.mrb[0].mxu0
        %v407 = vadd.f32 %v308, %v406
        %408 = vmatprep.mubr.f32.mxu0 0.0
        %409 = vmatmul.mubr.f32.gmra.mrb[0].mxu0 %v330
        %v410 = vpop.f32.mrb[0].mxu0
        %v411 = vadd.f32 %v313, %v410
        %v412 = vpop.f32.mrb[0].mxu0
        %v413 = vadd.f32 %v313, %v412
        %414 = vmatprep.mubr.f32.mxu0 0.0
        %415 = vmatmul.mubr.f32.gmra.mrb[0].mxu0 %v333
        %v416 = vpop.f32.mrb[0].mxu0
        %v417 = vadd.f32 %v318, %v416
        %v418 = vpop.f32.mrb[0].mxu0
        %v419 = vadd.f32 %v318, %v418
        %420 = vmatprep.mubr.f32.mxu0 0.0
        %421 = vmatmul.mubr.f32.gmra.mrb[0].mxu0 %v336
        %v422 = vpop.f32.mrb[0].mxu0
        %v423 = vadd.f32 %v323, %v422
        %v424 = vpop.f32.mrb[0].mxu0
        %v425 = vadd.f32 %v323, %v424
        %426 = vdwg.mxu0
        %v427 = vld [vmem:[#allocation5] sm:$0xff]
        %v428 = vld [vmem:[#allocation5 + $0x8] sm:$0xff]
        %v429 = vld [vmem:[#allocation5 + $0x10] sm:$0xff]
        %v430 = vld [vmem:[#allocation5 + $0x18] sm:$0xff]
        %v431 = vld [vmem:[#allocation5 + $0x20] sm:$0xff]
        %v432 = vld [vmem:[#allocation5 + $0x28] sm:$0xff]
        %v433 = vld [vmem:[#allocation5 + $0x30] sm:$0xff]
        %v434 = vld [vmem:[#allocation5 + $0x38] sm:$0xff]
        %v435 = vld [vmem:[#allocation5 + $0x40] sm:$0xff]
        %v436 = vld [vmem:[#allocation5 + $0x48] sm:$0xff]
        %v437 = vld [vmem:[#allocation5 + $0x50] sm:$0xff]
        %v438 = vld [vmem:[#allocation5 + $0x58] sm:$0xff]
        %v439 = vld [vmem:[#allocation5 + $0x60] sm:$0xff]
        %v440 = vld [vmem:[#allocation5 + $0x68] sm:$0xff]
        %v441 = vld [vmem:[#allocation5 + $0x70] sm:$0xff]
        %v442 = vld [vmem:[#allocation5 + $0x78] sm:$0xff]
        %v443 = vld [vmem:[#allocation5 + $0x80] sm:$0xff]
        %v444 = vld [vmem:[#allocation5 + $0x88] sm:$0xff]
        %v445 = vld [vmem:[#allocation5 + $0x90] sm:$0xff]
        %v446 = vld [vmem:[#allocation5 + $0x98] sm:$0xff]
        %v447 = vld [vmem:[#allocation5 + $0xa0] sm:$0xff]
        %v448 = vld [vmem:[#allocation5 + $0xa8] sm:$0xff]
        %v449 = vld [vmem:[#allocation5 + $0xb0] sm:$0xff]
        %v450 = vld [vmem:[#allocation5 + $0xb8] sm:$0xff]
        %v451 = vld [vmem:[#allocation5 + $0xc0] sm:$0xff]
        %v452 = vld [vmem:[#allocation5 + $0xc8] sm:$0xff]
        %v453 = vld [vmem:[#allocation5 + $0xd0] sm:$0xff]
        %v454 = vld [vmem:[#allocation5 + $0xd8] sm:$0xff]
        %v455 = vld [vmem:[#allocation5 + $0xe0] sm:$0xff]
        %v456 = vld [vmem:[#allocation5 + $0xe8] sm:$0xff]
        %v457 = vld [vmem:[#allocation5 + $0xf0] sm:$0xff]
        %v458 = vld [vmem:[#allocation5 + $0xf8] sm:$0xff]
        %v459 = vld [vmem:[#allocation5 + $0x100] sm:$0xff]
        %v460 = vld [vmem:[#allocation5 + $0x108] sm:$0xff]
        %v461 = vld [vmem:[#allocation5 + $0x110] sm:$0xff]
        %v462 = vld [vmem:[#allocation5 + $0x118] sm:$0xff]
        %v463 = vld [vmem:[#allocation5 + $0x120] sm:$0xff]
        %v464 = vld [vmem:[#allocation5 + $0x128] sm:$0xff]
        %v465 = vld [vmem:[#allocation5 + $0x130] sm:$0xff]
        %v466 = vld [vmem:[#allocation5 + $0x138] sm:$0xff]
        %v467 = vld [vmem:[#allocation5 + $0x140] sm:$0xff]
        %v468 = vld [vmem:[#allocation5 + $0x148] sm:$0xff]
        %v469 = vld [vmem:[#allocation5 + $0x150] sm:$0xff]
        %v470 = vld [vmem:[#allocation5 + $0x158] sm:$0xff]
        %v471 = vld [vmem:[#allocation5 + $0x160] sm:$0xff]
        %v472 = vld [vmem:[#allocation5 + $0x168] sm:$0xff]
        %v473 = vld [vmem:[#allocation5 + $0x170] sm:$0xff]
        %v474 = vld [vmem:[#allocation5 + $0x178] sm:$0xff]
        %v475 = vld [vmem:[#allocation5 + $0x180] sm:$0xff]
        %v476 = vld [vmem:[#allocation5 + $0x188] sm:$0xff]
        %v477 = vld [vmem:[#allocation5 + $0x190] sm:$0xff]
        %v478 = vld [vmem:[#allocation5 + $0x198] sm:$0xff]
        %v479 = vld [vmem:[#allocation5 + $0x1a0] sm:$0xff]
        %v480 = vld [vmem:[#allocation5 + $0x1a8] sm:$0xff]
        %v481 = vld [vmem:[#allocation5 + $0x1b0] sm:$0xff]
        %v482 = vld [vmem:[#allocation5 + $0x1b8] sm:$0xff]
        %v483 = vld [vmem:[#allocation5 + $0x1c0] sm:$0xff]
        %v484 = vld [vmem:[#allocation5 + $0x1c8] sm:$0xff]
        %v485 = vld [vmem:[#allocation5 + $0x1d0] sm:$0xff]
        %v486 = vld [vmem:[#allocation5 + $0x1d8] sm:$0xff]
        %v487 = vld [vmem:[#allocation5 + $0x1e0] sm:$0xff]
        %v488 = vld [vmem:[#allocation5 + $0x1e8] sm:$0xff]
        %v489 = vld [vmem:[#allocation5 + $0x1f0] sm:$0xff]
        %v490 = vld [vmem:[#allocation5 + $0x1f8] sm:$0xff]
        %v491 = vld [vmem:[#allocation5 + $0x200] sm:$0xff]
        %v492 = vld [vmem:[#allocation5 + $0x208] sm:$0xff]
        %v493 = vld [vmem:[#allocation5 + $0x210] sm:$0xff]
        %v494 = vld [vmem:[#allocation5 + $0x218] sm:$0xff]
        %v495 = vld [vmem:[#allocation5 + $0x220] sm:$0xff]
        %v496 = vld [vmem:[#allocation5 + $0x228] sm:$0xff]
        %v497 = vld [vmem:[#allocation5 + $0x230] sm:$0xff]
        %v498 = vld [vmem:[#allocation5 + $0x238] sm:$0xff]
        %v499 = vld [vmem:[#allocation5 + $0x240] sm:$0xff]
        %v500 = vld [vmem:[#allocation5 + $0x248] sm:$0xff]
        %v501 = vld [vmem:[#allocation5 + $0x250] sm:$0xff]
        %v502 = vld [vmem:[#allocation5 + $0x258] sm:$0xff]
        %v503 = vld [vmem:[#allocation5 + $0x260] sm:$0xff]
        %v504 = vld [vmem:[#allocation5 + $0x268] sm:$0xff]
        %v505 = vld [vmem:[#allocation5 + $0x270] sm:$0xff]
        %v506 = vld [vmem:[#allocation5 + $0x278] sm:$0xff]
        %v507 = vld [vmem:[#allocation5 + $0x280] sm:$0xff]
        %v508 = vld [vmem:[#allocation5 + $0x288] sm:$0xff]
        %v509 = vld [vmem:[#allocation5 + $0x290] sm:$0xff]
        %v510 = vld [vmem:[#allocation5 + $0x298] sm:$0xff]
        %v511 = vld [vmem:[#allocation5 + $0x2a0] sm:$0xff]
        %v512 = vld [vmem:[#allocation5 + $0x2a8] sm:$0xff]
        %v513 = vld [vmem:[#allocation5 + $0x2b0] sm:$0xff]
        %v514 = vld [vmem:[#allocation5 + $0x2b8] sm:$0xff]
        %v515 = vld [vmem:[#allocation5 + $0x2c0] sm:$0xff]
        %v516 = vld [vmem:[#allocation5 + $0x2c8] sm:$0xff]
        %v517 = vld [vmem:[#allocation5 + $0x2d0] sm:$0xff]
        %v518 = vld [vmem:[#allocation5 + $0x2d8] sm:$0xff]
        %v519 = vld [vmem:[#allocation5 + $0x2e0] sm:$0xff]
        %v520 = vld [vmem:[#allocation5 + $0x2e8] sm:$0xff]
        %v521 = vld [vmem:[#allocation5 + $0x2f0] sm:$0xff]
        %v522 = vld [vmem:[#allocation5 + $0x2f8] sm:$0xff]
        %v523 = vld [vmem:[#allocation5 + $0x300] sm:$0xff]
        %v524 = vld [vmem:[#allocation5 + $0x308] sm:$0xff]
        %v525 = vld [vmem:[#allocation5 + $0x310] sm:$0xff]
        %v526 = vld [vmem:[#allocation5 + $0x318] sm:$0xff]
        %v527 = vld [vmem:[#allocation5 + $0x320] sm:$0xff]
        %v528 = vld [vmem:[#allocation5 + $0x328] sm:$0xff]
        %v529 = vld [vmem:[#allocation5 + $0x330] sm:$0xff]
        %v530 = vld [vmem:[#allocation5 + $0x338] sm:$0xff]
        %v531 = vld [vmem:[#allocation5 + $0x340] sm:$0xff]
        %v532 = vld [vmem:[#allocation5 + $0x348] sm:$0xff]
        %v533 = vld [vmem:[#allocation5 + $0x350] sm:$0xff]
        %v534 = vld [vmem:[#allocation5 + $0x358] sm:$0xff]
        %v535 = vld [vmem:[#allocation5 + $0x360] sm:$0xff]
        %v536 = vld [vmem:[#allocation5 + $0x368] sm:$0xff]
        %v537 = vld [vmem:[#allocation5 + $0x370] sm:$0xff]
        %v538 = vld [vmem:[#allocation5 + $0x378] sm:$0xff]
        %v539 = vld [vmem:[#allocation5 + $0x380] sm:$0xff]
        %v540 = vld [vmem:[#allocation5 + $0x388] sm:$0xff]
        %v541 = vld [vmem:[#allocation5 + $0x390] sm:$0xff]
        %v542 = vld [vmem:[#allocation5 + $0x398] sm:$0xff]
        %v543 = vld [vmem:[#allocation5 + $0x3a0] sm:$0xff]
        %v544 = vld [vmem:[#allocation5 + $0x3a8] sm:$0xff]
        %v545 = vld [vmem:[#allocation5 + $0x3b0] sm:$0xff]
        %v546 = vld [vmem:[#allocation5 + $0x3b8] sm:$0xff]
        %v547 = vld [vmem:[#allocation5 + $0x3c0] sm:$0xff]
        %v548 = vld [vmem:[#allocation5 + $0x3c8] sm:$0xff]
        %v549 = vld [vmem:[#allocation5 + $0x3d0] sm:$0xff]
        %v550 = vld [vmem:[#allocation5 + $0x3d8] sm:$0xff]
        %v551 = vld [vmem:[#allocation5 + $0x3e0] sm:$0xff]
        %v552 = vld [vmem:[#allocation5 + $0x3e8] sm:$0xff]
        %v553 = vld [vmem:[#allocation5 + $0x3f0] sm:$0xff]
        %v554 = vld [vmem:[#allocation5 + $0x3f8] sm:$0xff]
        %v555 = vld [vmem:[#allocation5 + $0x400] sm:$0xff]
        %v556 = vld [vmem:[#allocation5 + $0x408] sm:$0xff]
        %v557 = vld [vmem:[#allocation5 + $0x410] sm:$0xff]
        %v558 = vld [vmem:[#allocation5 + $0x418] sm:$0xff]
        %v559 = vld [vmem:[#allocation5 + $0x420] sm:$0xff]
        %v560 = vld [vmem:[#allocation5 + $0x428] sm:$0xff]
        %v561 = vld [vmem:[#allocation5 + $0x430] sm:$0xff]
        %v562 = vld [vmem:[#allocation5 + $0x438] sm:$0xff]
        %v563 = vld [vmem:[#allocation5 + $0x440] sm:$0xff]
        %v564 = vld [vmem:[#allocation5 + $0x448] sm:$0xff]
        %v565 = vld [vmem:[#allocation5 + $0x450] sm:$0xff]
        %v566 = vld [vmem:[#allocation5 + $0x458] sm:$0xff]
        %v567 = vld [vmem:[#allocation5 + $0x460] sm:$0xff]
        %v568 = vld [vmem:[#allocation5 + $0x468] sm:$0xff]
        %v569 = vld [vmem:[#allocation5 + $0x470] sm:$0xff]
        %v570 = vld [vmem:[#allocation5 + $0x478] sm:$0xff]
        %v571 = vld [vmem:[#allocation5 + $0x480] sm:$0xff]
        %v572 = vld [vmem:[#allocation5 + $0x488] sm:$0xff]
        %v573 = vld [vmem:[#allocation5 + $0x490] sm:$0xff]
        %v574 = vld [vmem:[#allocation5 + $0x498] sm:$0xff]
        %v575 = vld [vmem:[#allocation5 + $0x4a0] sm:$0xff]
        %v576 = vld [vmem:[#allocation5 + $0x4a8] sm:$0xff]
        %v577 = vld [vmem:[#allocation5 + $0x4b0] sm:$0xff]
        %v578 = vld [vmem:[#allocation5 + $0x4b8] sm:$0xff]
        %v579 = vld [vmem:[#allocation5 + $0x4c0] sm:$0xff]
        %v580 = vld [vmem:[#allocation5 + $0x4c8] sm:$0xff]
        %v581 = vld [vmem:[#allocation5 + $0x4d0] sm:$0xff]
        %v582 = vld [vmem:[#allocation5 + $0x4d8] sm:$0xff]
        %v583 = vld [vmem:[#allocation5 + $0x4e0] sm:$0xff]
        %v584 = vld [vmem:[#allocation5 + $0x4e8] sm:$0xff]
        %v585 = vld [vmem:[#allocation5 + $0x4f0] sm:$0xff]
        %v586 = vld [vmem:[#allocation5 + $0x4f8] sm:$0xff]
        %v587 = vld [vmem:[#allocation5 + $0x500] sm:$0xff]
        %v588 = vld [vmem:[#allocation5 + $0x508] sm:$0xff]
        %v589 = vld [vmem:[#allocation5 + $0x510] sm:$0xff]
        %v590 = vld [vmem:[#allocation5 + $0x518] sm:$0xff]
        %v591 = vld [vmem:[#allocation5 + $0x520] sm:$0xff]
        %v592 = vld [vmem:[#allocation5 + $0x528] sm:$0xff]
        %v593 = vld [vmem:[#allocation5 + $0x530] sm:$0xff]
        %v594 = vld [vmem:[#allocation5 + $0x538] sm:$0xff]
        %v595 = vld [vmem:[#allocation5 + $0x540] sm:$0xff]
        %v596 = vld [vmem:[#allocation5 + $0x548] sm:$0xff]
        %v597 = vld [vmem:[#allocation5 + $0x550] sm:$0xff]
        %v598 = vld [vmem:[#allocation5 + $0x558] sm:$0xff]
        %v599 = vld [vmem:[#allocation5 + $0x560] sm:$0xff]
        %v600 = vld [vmem:[#allocation5 + $0x568] sm:$0xff]
        %v601 = vld [vmem:[#allocation5 + $0x570] sm:$0xff]
        %v602 = vld [vmem:[#allocation5 + $0x578] sm:$0xff]
        %v603 = vld [vmem:[#allocation5 + $0x580] sm:$0xff]
        %v604 = vld [vmem:[#allocation5 + $0x588] sm:$0xff]
        %v605 = vld [vmem:[#allocation5 + $0x590] sm:$0xff]
        %v606 = vld [vmem:[#allocation5 + $0x598] sm:$0xff]
        %v607 = vld [vmem:[#allocation5 + $0x5a0] sm:$0xff]
        %v608 = vld [vmem:[#allocation5 + $0x5a8] sm:$0xff]
        %v609 = vld [vmem:[#allocation5 + $0x5b0] sm:$0xff]
        %v610 = vld [vmem:[#allocation5 + $0x5b8] sm:$0xff]
        %v611 = vld [vmem:[#allocation5 + $0x5c0] sm:$0xff]
        %v612 = vld [vmem:[#allocation5 + $0x5c8] sm:$0xff]
        %v613 = vld [vmem:[#allocation5 + $0x5d0] sm:$0xff]
        %v614 = vld [vmem:[#allocation5 + $0x5d8] sm:$0xff]
        %v615 = vld [vmem:[#allocation5 + $0x5e0] sm:$0xff]
        %v616 = vld [vmem:[#allocation5 + $0x5e8] sm:$0xff]
        %v617 = vld [vmem:[#allocation5 + $0x5f0] sm:$0xff]
        %v618 = vld [vmem:[#allocation5 + $0x5f8] sm:$0xff]
        %v619 = vld [vmem:[#allocation5 + $0x600] sm:$0xff]
        %v620 = vld [vmem:[#allocation5 + $0x608] sm:$0xff]
        %v621 = vld [vmem:[#allocation5 + $0x610] sm:$0xff]
        %v622 = vld [vmem:[#allocation5 + $0x618] sm:$0xff]
        %v623 = vld [vmem:[#allocation5 + $0x620] sm:$0xff]
        %v624 = vld [vmem:[#allocation5 + $0x628] sm:$0xff]
        %v625 = vld [vmem:[#allocation5 + $0x630] sm:$0xff]
        %v626 = vld [vmem:[#allocation5 + $0x638] sm:$0xff]
        %v627 = vld [vmem:[#allocation5 + $0x640] sm:$0xff]
        %v628 = vld [vmem:[#allocation5 + $0x648] sm:$0xff]
        %v629 = vld [vmem:[#allocation5 + $0x650] sm:$0xff]
        %v630 = vld [vmem:[#allocation5 + $0x658] sm:$0xff]
        %v631 = vld [vmem:[#allocation5 + $0x660] sm:$0xff]
        %v632 = vld [vmem:[#allocation5 + $0x668] sm:$0xff]
        %v633 = vld [vmem:[#allocation5 + $0x670] sm:$0xff]
        %v634 = vld [vmem:[#allocation5 + $0x678] sm:$0xff]
        %v635 = vld [vmem:[#allocation5 + $0x680] sm:$0xff]
        %v636 = vld [vmem:[#allocation5 + $0x688] sm:$0xff]
        %v637 = vld [vmem:[#allocation5 + $0x690] sm:$0xff]
        %v638 = vld [vmem:[#allocation5 + $0x698] sm:$0xff]
        %v639 = vld [vmem:[#allocation5 + $0x6a0] sm:$0xff]
        %v640 = vld [vmem:[#allocation5 + $0x6a8] sm:$0xff]
        %v641 = vld [vmem:[#allocation5 + $0x6b0] sm:$0xff]
        %v642 = vld [vmem:[#allocation5 + $0x6b8] sm:$0xff]
        %v643 = vld [vmem:[#allocation5 + $0x6c0] sm:$0xff]
        %v644 = vld [vmem:[#allocation5 + $0x6c8] sm:$0xff]
        %v645 = vld [vmem:[#allocation5 + $0x6d0] sm:$0xff]
        %v646 = vld [vmem:[#allocation5 + $0x6d8] sm:$0xff]
        %v647 = vld [vmem:[#allocation5 + $0x6e0] sm:$0xff]
        %v648 = vld [vmem:[#allocation5 + $0x6e8] sm:$0xff]
        %v649 = vld [vmem:[#allocation5 + $0x6f0] sm:$0xff]
        %v650 = vld [vmem:[#allocation5 + $0x6f8] sm:$0xff]
        %v651 = vld [vmem:[#allocation5 + $0x700] sm:$0xff]
        %v652 = vld [vmem:[#allocation5 + $0x708] sm:$0xff]
        %v653 = vld [vmem:[#allocation5 + $0x710] sm:$0xff]
        %v654 = vld [vmem:[#allocation5 + $0x718] sm:$0xff]
        %v655 = vld [vmem:[#allocation5 + $0x720] sm:$0xff]
        %v656 = vld [vmem:[#allocation5 + $0x728] sm:$0xff]
        %v657 = vld [vmem:[#allocation5 + $0x730] sm:$0xff]
        %v658 = vld [vmem:[#allocation5 + $0x738] sm:$0xff]
        %v659 = vld [vmem:[#allocation5 + $0x740] sm:$0xff]
        %v660 = vld [vmem:[#allocation5 + $0x748] sm:$0xff]
        %v661 = vld [vmem:[#allocation5 + $0x750] sm:$0xff]
        %v662 = vld [vmem:[#allocation5 + $0x758] sm:$0xff]
        %v663 = vld [vmem:[#allocation5 + $0x760] sm:$0xff]
        %v664 = vld [vmem:[#allocation5 + $0x768] sm:$0xff]
        %v665 = vld [vmem:[#allocation5 + $0x770] sm:$0xff]
        %v666 = vld [vmem:[#allocation5 + $0x778] sm:$0xff]
        %v667 = vld [vmem:[#allocation5 + $0x780] sm:$0xff]
        %v668 = vld [vmem:[#allocation5 + $0x788] sm:$0xff]
        %v669 = vld [vmem:[#allocation5 + $0x790] sm:$0xff]
        %v670 = vld [vmem:[#allocation5 + $0x798] sm:$0xff]
        %v671 = vld [vmem:[#allocation5 + $0x7a0] sm:$0xff]
        %v672 = vld [vmem:[#allocation5 + $0x7a8] sm:$0xff]
        %v673 = vld [vmem:[#allocation5 + $0x7b0] sm:$0xff]
        %v674 = vld [vmem:[#allocation5 + $0x7b8] sm:$0xff]
        %v675 = vld [vmem:[#allocation5 + $0x7c0] sm:$0xff]
        %v676 = vld [vmem:[#allocation5 + $0x7c8] sm:$0xff]
        %v677 = vld [vmem:[#allocation5 + $0x7d0] sm:$0xff]
        %v678 = vld [vmem:[#allocation5 + $0x7d8] sm:$0xff]
        %v679 = vld [vmem:[#allocation5 + $0x7e0] sm:$0xff]
        %v680 = vld [vmem:[#allocation5 + $0x7e8] sm:$0xff]
        %v681 = vld [vmem:[#allocation5 + $0x7f0] sm:$0xff]
        %v682 = vld [vmem:[#allocation5 + $0x7f8] sm:$0xff]
        %s683 = scalar_lea.vmem [#allocation5], 2048
        %v684 = vld [vmem:[%s683] sm:$0xff]
        %v685 = vld [vmem:[%s683 + $0x8] sm:$0xff]
        %v686 = vld [vmem:[%s683 + $0x10] sm:$0xff]
        %v687 = vld [vmem:[%s683 + $0x18] sm:$0xff]
        %v688 = vld [vmem:[%s683 + $0x20] sm:$0xff]
        %v689 = vld [vmem:[%s683 + $0x28] sm:$0xff]
        %v690 = vld [vmem:[%s683 + $0x30] sm:$0xff]
        %v691 = vld [vmem:[%s683 + $0x38] sm:$0xff]
        %v692 = vld [vmem:[%s683 + $0x40] sm:$0xff]
        %v693 = vld [vmem:[%s683 + $0x48] sm:$0xff]
        %v694 = vld [vmem:[%s683 + $0x50] sm:$0xff]
        %v695 = vld [vmem:[%s683 + $0x58] sm:$0xff]
        %v696 = vld [vmem:[%s683 + $0x60] sm:$0xff]
        %v697 = vld [vmem:[%s683 + $0x68] sm:$0xff]
        %v698 = vld [vmem:[%s683 + $0x70] sm:$0xff]
        %v699 = vld [vmem:[%s683 + $0x78] sm:$0xff]
        %v700 = vld [vmem:[%s683 + $0x80] sm:$0xff]
        %v701 = vld [vmem:[%s683 + $0x88] sm:$0xff]
        %v702 = vld [vmem:[%s683 + $0x90] sm:$0xff]
        %v703 = vld [vmem:[%s683 + $0x98] sm:$0xff]
        %v704 = vld [vmem:[%s683 + $0xa0] sm:$0xff]
        %v705 = vld [vmem:[%s683 + $0xa8] sm:$0xff]
        %v706 = vld [vmem:[%s683 + $0xb0] sm:$0xff]
        %v707 = vld [vmem:[%s683 + $0xb8] sm:$0xff]
        %v708 = vld [vmem:[%s683 + $0xc0] sm:$0xff]
        %v709 = vld [vmem:[%s683 + $0xc8] sm:$0xff]
        %v710 = vld [vmem:[%s683 + $0xd0] sm:$0xff]
        %v711 = vld [vmem:[%s683 + $0xd8] sm:$0xff]
        %v712 = vld [vmem:[%s683 + $0xe0] sm:$0xff]
        %v713 = vld [vmem:[%s683 + $0xe8] sm:$0xff]
        %v714 = vld [vmem:[%s683 + $0xf0] sm:$0xff]
        %v715 = vld [vmem:[%s683 + $0xf8] sm:$0xff]
        %v716 = vld [vmem:[%s683 + $0x100] sm:$0xff]
        %v717 = vld [vmem:[%s683 + $0x108] sm:$0xff]
        %v718 = vld [vmem:[%s683 + $0x110] sm:$0xff]
        %v719 = vld [vmem:[%s683 + $0x118] sm:$0xff]
        %v720 = vld [vmem:[%s683 + $0x120] sm:$0xff]
        %v721 = vld [vmem:[%s683 + $0x128] sm:$0xff]
        %v722 = vld [vmem:[%s683 + $0x130] sm:$0xff]
        %v723 = vld [vmem:[%s683 + $0x138] sm:$0xff]
        %v724 = vld [vmem:[%s683 + $0x140] sm:$0xff]
        %v725 = vld [vmem:[%s683 + $0x148] sm:$0xff]
        %v726 = vld [vmem:[%s683 + $0x150] sm:$0xff]
        %v727 = vld [vmem:[%s683 + $0x158] sm:$0xff]
        %v728 = vld [vmem:[%s683 + $0x160] sm:$0xff]
        %v729 = vld [vmem:[%s683 + $0x168] sm:$0xff]
        %v730 = vld [vmem:[%s683 + $0x170] sm:$0xff]
        %v731 = vld [vmem:[%s683 + $0x178] sm:$0xff]
        %v732 = vld [vmem:[%s683 + $0x180] sm:$0xff]
        %v733 = vld [vmem:[%s683 + $0x188] sm:$0xff]
        %v734 = vld [vmem:[%s683 + $0x190] sm:$0xff]
        %v735 = vld [vmem:[%s683 + $0x198] sm:$0xff]
        %v736 = vld [vmem:[%s683 + $0x1a0] sm:$0xff]
        %v737 = vld [vmem:[%s683 + $0x1a8] sm:$0xff]
        %v738 = vld [vmem:[%s683 + $0x1b0] sm:$0xff]
        %v739 = vld [vmem:[%s683 + $0x1b8] sm:$0xff]
        %v740 = vld [vmem:[%s683 + $0x1c0] sm:$0xff]
        %v741 = vld [vmem:[%s683 + $0x1c8] sm:$0xff]
        %v742 = vld [vmem:[%s683 + $0x1d0] sm:$0xff]
        %v743 = vld [vmem:[%s683 + $0x1d8] sm:$0xff]
        %v744 = vld [vmem:[%s683 + $0x1e0] sm:$0xff]
        %v745 = vld [vmem:[%s683 + $0x1e8] sm:$0xff]
        %v746 = vld [vmem:[%s683 + $0x1f0] sm:$0xff]
        %v747 = vld [vmem:[%s683 + $0x1f8] sm:$0xff]
        %v748 = vld [vmem:[%s683 + $0x200] sm:$0xff]
        %v749 = vld [vmem:[%s683 + $0x208] sm:$0xff]
        %v750 = vld [vmem:[%s683 + $0x210] sm:$0xff]
        %v751 = vld [vmem:[%s683 + $0x218] sm:$0xff]
        %v752 = vld [vmem:[%s683 + $0x220] sm:$0xff]
        %v753 = vld [vmem:[%s683 + $0x228] sm:$0xff]
        %v754 = vld [vmem:[%s683 + $0x230] sm:$0xff]
        %v755 = vld [vmem:[%s683 + $0x238] sm:$0xff]
        %v756 = vld [vmem:[%s683 + $0x240] sm:$0xff]
        %v757 = vld [vmem:[%s683 + $0x248] sm:$0xff]
        %v758 = vld [vmem:[%s683 + $0x250] sm:$0xff]
        %v759 = vld [vmem:[%s683 + $0x258] sm:$0xff]
        %v760 = vld [vmem:[%s683 + $0x260] sm:$0xff]
        %v761 = vld [vmem:[%s683 + $0x268] sm:$0xff]
        %v762 = vld [vmem:[%s683 + $0x270] sm:$0xff]
        %v763 = vld [vmem:[%s683 + $0x278] sm:$0xff]
        %v764 = vld [vmem:[%s683 + $0x280] sm:$0xff]
        %v765 = vld [vmem:[%s683 + $0x288] sm:$0xff]
        %v766 = vld [vmem:[%s683 + $0x290] sm:$0xff]
        %v767 = vld [vmem:[%s683 + $0x298] sm:$0xff]
        %v768 = vld [vmem:[%s683 + $0x2a0] sm:$0xff]
        %v769 = vld [vmem:[%s683 + $0x2a8] sm:$0xff]
        %v770 = vld [vmem:[%s683 + $0x2b0] sm:$0xff]
        %v771 = vld [vmem:[%s683 + $0x2b8] sm:$0xff]
        %v772 = vld [vmem:[%s683 + $0x2c0] sm:$0xff]
        %v773 = vld [vmem:[%s683 + $0x2c8] sm:$0xff]
        %v774 = vld [vmem:[%s683 + $0x2d0] sm:$0xff]
        %v775 = vld [vmem:[%s683 + $0x2d8] sm:$0xff]
        %v776 = vld [vmem:[%s683 + $0x2e0] sm:$0xff]
        %v777 = vld [vmem:[%s683 + $0x2e8] sm:$0xff]
        %v778 = vld [vmem:[%s683 + $0x2f0] sm:$0xff]
        %v779 = vld [vmem:[%s683 + $0x2f8] sm:$0xff]
        %v780 = vld [vmem:[%s683 + $0x300] sm:$0xff]
        %v781 = vld [vmem:[%s683 + $0x308] sm:$0xff]
        %v782 = vld [vmem:[%s683 + $0x310] sm:$0xff]
        %v783 = vld [vmem:[%s683 + $0x318] sm:$0xff]
        %v784 = vld [vmem:[%s683 + $0x320] sm:$0xff]
        %v785 = vld [vmem:[%s683 + $0x328] sm:$0xff]
        %v786 = vld [vmem:[%s683 + $0x330] sm:$0xff]
        %v787 = vld [vmem:[%s683 + $0x338] sm:$0xff]
        %v788 = vld [vmem:[%s683 + $0x340] sm:$0xff]
        %v789 = vld [vmem:[%s683 + $0x348] sm:$0xff]
        %v790 = vld [vmem:[%s683 + $0x350] sm:$0xff]
        %v791 = vld [vmem:[%s683 + $0x358] sm:$0xff]
        %v792 = vld [vmem:[%s683 + $0x360] sm:$0xff]
        %v793 = vld [vmem:[%s683 + $0x368] sm:$0xff]
        %v794 = vld [vmem:[%s683 + $0x370] sm:$0xff]
        %v795 = vld [vmem:[%s683 + $0x378] sm:$0xff]
        %v796 = vld [vmem:[%s683 + $0x380] sm:$0xff]
        %v797 = vld [vmem:[%s683 + $0x388] sm:$0xff]
        %v798 = vld [vmem:[%s683 + $0x390] sm:$0xff]
        %v799 = vld [vmem:[%s683 + $0x398] sm:$0xff]
        %v800 = vld [vmem:[%s683 + $0x3a0] sm:$0xff]
        %v801 = vld [vmem:[%s683 + $0x3a8] sm:$0xff]
        %v802 = vld [vmem:[%s683 + $0x3b0] sm:$0xff]
        %v803 = vld [vmem:[%s683 + $0x3b8] sm:$0xff]
        %v804 = vld [vmem:[%s683 + $0x3c0] sm:$0xff]
        %v805 = vld [vmem:[%s683 + $0x3c8] sm:$0xff]
        %v806 = vld [vmem:[%s683 + $0x3d0] sm:$0xff]
        %v807 = vld [vmem:[%s683 + $0x3d8] sm:$0xff]
        %v808 = vld [vmem:[%s683 + $0x3e0] sm:$0xff]
        %v809 = vld [vmem:[%s683 + $0x3e8] sm:$0xff]
        %v810 = vld [vmem:[%s683 + $0x3f0] sm:$0xff]
        %v811 = vld [vmem:[%s683 + $0x3f8] sm:$0xff]
        %v812 = vld [vmem:[%s683 + $0x400] sm:$0xff]
        %v813 = vld [vmem:[%s683 + $0x408] sm:$0xff]
        %v814 = vld [vmem:[%s683 + $0x410] sm:$0xff]
        %v815 = vld [vmem:[%s683 + $0x418] sm:$0xff]
        %v816 = vld [vmem:[%s683 + $0x420] sm:$0xff]
        %v817 = vld [vmem:[%s683 + $0x428] sm:$0xff]
        %v818 = vld [vmem:[%s683 + $0x430] sm:$0xff]
        %v819 = vld [vmem:[%s683 + $0x438] sm:$0xff]
        %v820 = vld [vmem:[%s683 + $0x440] sm:$0xff]
        %v821 = vld [vmem:[%s683 + $0x448] sm:$0xff]
        %v822 = vld [vmem:[%s683 + $0x450] sm:$0xff]
        %v823 = vld [vmem:[%s683 + $0x458] sm:$0xff]
        %v824 = vld [vmem:[%s683 + $0x460] sm:$0xff]
        %v825 = vld [vmem:[%s683 + $0x468] sm:$0xff]
        %v826 = vld [vmem:[%s683 + $0x470] sm:$0xff]
        %v827 = vld [vmem:[%s683 + $0x478] sm:$0xff]
        %v828 = vld [vmem:[%s683 + $0x480] sm:$0xff]
        %v829 = vld [vmem:[%s683 + $0x488] sm:$0xff]
        %v830 = vld [vmem:[%s683 + $0x490] sm:$0xff]
        %v831 = vld [vmem:[%s683 + $0x498] sm:$0xff]
        %v832 = vld [vmem:[%s683 + $0x4a0] sm:$0xff]
        %v833 = vld [vmem:[%s683 + $0x4a8] sm:$0xff]
        %v834 = vld [vmem:[%s683 + $0x4b0] sm:$0xff]
        %v835 = vld [vmem:[%s683 + $0x4b8] sm:$0xff]
        %v836 = vld [vmem:[%s683 + $0x4c0] sm:$0xff]
        %v837 = vld [vmem:[%s683 + $0x4c8] sm:$0xff]
        %v838 = vld [vmem:[%s683 + $0x4d0] sm:$0xff]
        %v839 = vld [vmem:[%s683 + $0x4d8] sm:$0xff]
        %v840 = vld [vmem:[%s683 + $0x4e0] sm:$0xff]
        %v841 = vld [vmem:[%s683 + $0x4e8] sm:$0xff]
        %v842 = vld [vmem:[%s683 + $0x4f0] sm:$0xff]
        %v843 = vld [vmem:[%s683 + $0x4f8] sm:$0xff]
        %v844 = vld [vmem:[%s683 + $0x500] sm:$0xff]
        %v845 = vld [vmem:[%s683 + $0x508] sm:$0xff]
        %v846 = vld [vmem:[%s683 + $0x510] sm:$0xff]
        %v847 = vld [vmem:[%s683 + $0x518] sm:$0xff]
        %v848 = vld [vmem:[%s683 + $0x520] sm:$0xff]
        %v849 = vld [vmem:[%s683 + $0x528] sm:$0xff]
        %v850 = vld [vmem:[%s683 + $0x530] sm:$0xff]
        %v851 = vld [vmem:[%s683 + $0x538] sm:$0xff]
        %v852 = vld [vmem:[%s683 + $0x540] sm:$0xff]
        %v853 = vld [vmem:[%s683 + $0x548] sm:$0xff]
        %v854 = vld [vmem:[%s683 + $0x550] sm:$0xff]
        %v855 = vld [vmem:[%s683 + $0x558] sm:$0xff]
        %v856 = vld [vmem:[%s683 + $0x560] sm:$0xff]
        %v857 = vld [vmem:[%s683 + $0x568] sm:$0xff]
        %v858 = vld [vmem:[%s683 + $0x570] sm:$0xff]
        %v859 = vld [vmem:[%s683 + $0x578] sm:$0xff]
        %v860 = vld [vmem:[%s683 + $0x580] sm:$0xff]
        %v861 = vld [vmem:[%s683 + $0x588] sm:$0xff]
        %v862 = vld [vmem:[%s683 + $0x590] sm:$0xff]
        %v863 = vld [vmem:[%s683 + $0x598] sm:$0xff]
        %v864 = vld [vmem:[%s683 + $0x5a0] sm:$0xff]
        %v865 = vld [vmem:[%s683 + $0x5a8] sm:$0xff]
        %v866 = vld [vmem:[%s683 + $0x5b0] sm:$0xff]
        %v867 = vld [vmem:[%s683 + $0x5b8] sm:$0xff]
        %v868 = vld [vmem:[%s683 + $0x5c0] sm:$0xff]
        %v869 = vld [vmem:[%s683 + $0x5c8] sm:$0xff]
        %v870 = vld [vmem:[%s683 + $0x5d0] sm:$0xff]
        %v871 = vld [vmem:[%s683 + $0x5d8] sm:$0xff]
        %v872 = vld [vmem:[%s683 + $0x5e0] sm:$0xff]
        %v873 = vld [vmem:[%s683 + $0x5e8] sm:$0xff]
        %v874 = vld [vmem:[%s683 + $0x5f0] sm:$0xff]
        %v875 = vld [vmem:[%s683 + $0x5f8] sm:$0xff]
        %v876 = vld [vmem:[%s683 + $0x600] sm:$0xff]
        %v877 = vld [vmem:[%s683 + $0x608] sm:$0xff]
        %v878 = vld [vmem:[%s683 + $0x610] sm:$0xff]
        %v879 = vld [vmem:[%s683 + $0x618] sm:$0xff]
        %v880 = vld [vmem:[%s683 + $0x620] sm:$0xff]
        %v881 = vld [vmem:[%s683 + $0x628] sm:$0xff]
        %v882 = vld [vmem:[%s683 + $0x630] sm:$0xff]
        %v883 = vld [vmem:[%s683 + $0x638] sm:$0xff]
        %v884 = vld [vmem:[%s683 + $0x640] sm:$0xff]
        %v885 = vld [vmem:[%s683 + $0x648] sm:$0xff]
        %v886 = vld [vmem:[%s683 + $0x650] sm:$0xff]
        %v887 = vld [vmem:[%s683 + $0x658] sm:$0xff]
        %v888 = vld [vmem:[%s683 + $0x660] sm:$0xff]
        %v889 = vld [vmem:[%s683 + $0x668] sm:$0xff]
        %v890 = vld [vmem:[%s683 + $0x670] sm:$0xff]
        %v891 = vld [vmem:[%s683 + $0x678] sm:$0xff]
        %v892 = vld [vmem:[%s683 + $0x680] sm:$0xff]
        %v893 = vld [vmem:[%s683 + $0x688] sm:$0xff]
        %v894 = vld [vmem:[%s683 + $0x690] sm:$0xff]
        %v895 = vld [vmem:[%s683 + $0x698] sm:$0xff]
        %v896 = vld [vmem:[%s683 + $0x6a0] sm:$0xff]
        %v897 = vld [vmem:[%s683 + $0x6a8] sm:$0xff]
        %v898 = vld [vmem:[%s683 + $0x6b0] sm:$0xff]
        %v899 = vld [vmem:[%s683 + $0x6b8] sm:$0xff]
        %v900 = vld [vmem:[%s683 + $0x6c0] sm:$0xff]
        %v901 = vld [vmem:[%s683 + $0x6c8] sm:$0xff]
        %v902 = vld [vmem:[%s683 + $0x6d0] sm:$0xff]
        %v903 = vld [vmem:[%s683 + $0x6d8] sm:$0xff]
        %v904 = vld [vmem:[%s683 + $0x6e0] sm:$0xff]
        %v905 = vld [vmem:[%s683 + $0x6e8] sm:$0xff]
        %v906 = vld [vmem:[%s683 + $0x6f0] sm:$0xff]
        %v907 = vld [vmem:[%s683 + $0x6f8] sm:$0xff]
        %v908 = vld [vmem:[%s683 + $0x700] sm:$0xff]
        %v909 = vld [vmem:[%s683 + $0x708] sm:$0xff]
        %v910 = vld [vmem:[%s683 + $0x710] sm:$0xff]
        %v911 = vld [vmem:[%s683 + $0x718] sm:$0xff]
        %v912 = vld [vmem:[%s683 + $0x720] sm:$0xff]
        %v913 = vld [vmem:[%s683 + $0x728] sm:$0xff]
        %v914 = vld [vmem:[%s683 + $0x730] sm:$0xff]
        %v915 = vld [vmem:[%s683 + $0x738] sm:$0xff]
        %v916 = vld [vmem:[%s683 + $0x740] sm:$0xff]
        %v917 = vld [vmem:[%s683 + $0x748] sm:$0xff]
        %v918 = vld [vmem:[%s683 + $0x750] sm:$0xff]
        %v919 = vld [vmem:[%s683 + $0x758] sm:$0xff]
        %v920 = vld [vmem:[%s683 + $0x760] sm:$0xff]
        %v921 = vld [vmem:[%s683 + $0x768] sm:$0xff]
        %v922 = vld [vmem:[%s683 + $0x770] sm:$0xff]
        %v923 = vld [vmem:[%s683 + $0x778] sm:$0xff]
        %v924 = vld [vmem:[%s683 + $0x780] sm:$0xff]
        %v925 = vld [vmem:[%s683 + $0x788] sm:$0xff]
        %v926 = vld [vmem:[%s683 + $0x790] sm:$0xff]
        %v927 = vld [vmem:[%s683 + $0x798] sm:$0xff]
        %v928 = vld [vmem:[%s683 + $0x7a0] sm:$0xff]
        %v929 = vld [vmem:[%s683 + $0x7a8] sm:$0xff]
        %v930 = vld [vmem:[%s683 + $0x7b0] sm:$0xff]
        %v931 = vld [vmem:[%s683 + $0x7b8] sm:$0xff]
        %v932 = vld [vmem:[%s683 + $0x7c0] sm:$0xff]
        %v933 = vld [vmem:[%s683 + $0x7c8] sm:$0xff]
        %v934 = vld [vmem:[%s683 + $0x7d0] sm:$0xff]
        %v935 = vld [vmem:[%s683 + $0x7d8] sm:$0xff]
        %v936 = vld [vmem:[%s683 + $0x7e0] sm:$0xff]
        %v937 = vld [vmem:[%s683 + $0x7e8] sm:$0xff]
        %v938 = vld [vmem:[%s683 + $0x7f0] sm:$0xff]
        %v939 = vld [vmem:[%s683 + $0x7f8] sm:$0xff]
        %940 = vmatprep.subr.mxu0 %v685
        %941 = vmatpush1.msra.mxu0 %v684
        %942 = vmatprep.subr.mxu0 %v693
        %943 = vmatpush1.msra.mxu0 %v692
        %944 = vmatprep.subr.mxu0 %v701
        %945 = vmatpush1.msra.mxu0 %v700
        %946 = vmatprep.subr.mxu0 %v709
        %947 = vmatpush1.msra.mxu0 %v708
        %948 = vmatprep.subr.mxu0 %v717
        %949 = vmatpush1.msra.mxu0 %v716
        %950 = vmatprep.subr.mxu0 %v725
        %951 = vmatpush1.msra.mxu0 %v724
        %952 = vmatprep.subr.mxu0 %v733
        %953 = vmatpush1.msra.mxu0 %v732
        %954 = vmatprep.subr.mxu0 %v741
        %955 = vmatpush1.msra.mxu0 %v740
        %956 = vmatprep.subr.mxu0 %v749
        %957 = vmatpush1.msra.mxu0 %v748
        %958 = vmatprep.subr.mxu0 %v757
        %959 = vmatpush1.msra.mxu0 %v756
        %960 = vmatprep.subr.mxu0 %v765
        %961 = vmatpush1.msra.mxu0 %v764
        %962 = vmatprep.subr.mxu0 %v773
        %963 = vmatpush1.msra.mxu0 %v772
        %964 = vmatprep.subr.mxu0 %v781
        %965 = vmatpush1.msra.mxu0 %v780
        %966 = vmatprep.subr.mxu0 %v789
        %967 = vmatpush1.msra.mxu0 %v788
        %968 = vmatprep.subr.mxu0 %v797
        %969 = vmatpush1.msra.mxu0 %v796
        %970 = vmatprep.subr.mxu0 %v805
        %971 = vmatpush1.msra.mxu0 %v804
        %972 = vmatprep.subr.mxu0 %v813
        %973 = vmatpush1.msra.mxu0 %v812
        %974 = vmatprep.subr.mxu0 %v821
        %975 = vmatpush1.msra.mxu0 %v820
        %976 = vmatprep.subr.mxu0 %v829
        %977 = vmatpush1.msra.mxu0 %v828
        %978 = vmatprep.subr.mxu0 %v837
        %979 = vmatpush1.msra.mxu0 %v836
        %980 = vmatprep.subr.mxu0 %v845
        %981 = vmatpush1.msra.mxu0 %v844
        %982 = vmatprep.subr.mxu0 %v853
        %983 = vmatpush1.msra.mxu0 %v852
        %984 = vmatprep.subr.mxu0 %v861
        %985 = vmatpush1.msra.mxu0 %v860
        %986 = vmatprep.subr.mxu0 %v869
        %987 = vmatpush1.msra.mxu0 %v868
        %988 = vmatprep.subr.mxu0 %v877
        %989 = vmatpush1.msra.mxu0 %v876
        %990 = vmatprep.subr.mxu0 %v885
        %991 = vmatpush1.msra.mxu0 %v884
        %992 = vmatprep.subr.mxu0 %v893
        %993 = vmatpush1.msra.mxu0 %v892
        %994 = vmatprep.subr.mxu0 %v901
        %995 = vmatpush1.msra.mxu0 %v900
        %996 = vmatprep.subr.mxu0 %v909
        %997 = vmatpush1.msra.mxu0 %v908
        %998 = vmatprep.subr.mxu0 %v917
        %999 = vmatpush1.msra.mxu0 %v916
        %1000 = vmatprep.subr.mxu0 %v925
        %1001 = vmatpush1.msra.mxu0 %v924
        %1002 = vmatprep.subr.mxu0 %v933
        %1003 = vmatpush1.msra.mxu0 %v932
        %1004 = vmatprep.mubr.f32.mxu0 %v413
        %1005 = vmatmul.mubr.f32.gmra.mrb[0].mxu0 %v411
        %v1006 = vpop.f32.mrb[0].mxu0
        %v1007 = vadd.f32 0.0, %v1006
        %v1008 = vpop.f32.mrb[0].mxu0
        %v1009 = vadd.f32 0.0, %v1008
        %1010 = vdwg.mxu0
        %1011 = vmatprep.subr.mxu0 %v687
        %1012 = vmatpush1.msra.mxu0 %v686
        %1013 = vmatprep.subr.mxu0 %v695
        %1014 = vmatpush1.msra.mxu0 %v694
        %1015 = vmatprep.subr.mxu0 %v703
        %1016 = vmatpush1.msra.mxu0 %v702
        %1017 = vmatprep.subr.mxu0 %v711
        %1018 = vmatpush1.msra.mxu0 %v710
        %1019 = vmatprep.subr.mxu0 %v719
        %1020 = vmatpush1.msra.mxu0 %v718
        %1021 = vmatprep.subr.mxu0 %v727
        %1022 = vmatpush1.msra.mxu0 %v726
        %1023 = vmatprep.subr.mxu0 %v735
        %1024 = vmatpush1.msra.mxu0 %v734
        %1025 = vmatprep.subr.mxu0 %v743
        %1026 = vmatpush1.msra.mxu0 %v742
        %1027 = vmatprep.subr.mxu0 %v751
        %1028 = vmatpush1.msra.mxu0 %v750
        %1029 = vmatprep.subr.mxu0 %v759
        %1030 = vmatpush1.msra.mxu0 %v758
        %1031 = vmatprep.subr.mxu0 %v767
        %1032 = vmatpush1.msra.mxu0 %v766
        %1033 = vmatprep.subr.mxu0 %v775
        %1034 = vmatpush1.msra.mxu0 %v774
        %1035 = vmatprep.subr.mxu0 %v783
        %1036 = vmatpush1.msra.mxu0 %v782
        %1037 = vmatprep.subr.mxu0 %v791
        %1038 = vmatpush1.msra.mxu0 %v790
        %1039 = vmatprep.subr.mxu0 %v799
        %1040 = vmatpush1.msra.mxu0 %v798
        %1041 = vmatprep.subr.mxu0 %v807
        %1042 = vmatpush1.msra.mxu0 %v806
        %1043 = vmatprep.subr.mxu0 %v815
        %1044 = vmatpush1.msra.mxu0 %v814
        %1045 = vmatprep.subr.mxu0 %v823
        %1046 = vmatpush1.msra.mxu0 %v822
        %1047 = vmatprep.subr.mxu0 %v831
        %1048 = vmatpush1.msra.mxu0 %v830
        %1049 = vmatprep.subr.mxu0 %v839
        %1050 = vmatpush1.msra.mxu0 %v838
        %1051 = vmatprep.subr.mxu0 %v847
        %1052 = vmatpush1.msra.mxu0 %v846
        %1053 = vmatprep.subr.mxu0 %v855
        %1054 = vmatpush1.msra.mxu0 %v854
        %1055 = vmatprep.subr.mxu0 %v863
        %1056 = vmatpush1.msra.mxu0 %v862
        %1057 = vmatprep.subr.mxu0 %v871
        %1058 = vmatpush1.msra.mxu0 %v870
        %1059 = vmatprep.subr.mxu0 %v879
        %1060 = vmatpush1.msra.mxu0 %v878
        %1061 = vmatprep.subr.mxu0 %v887
        %1062 = vmatpush1.msra.mxu0 %v886
        %1063 = vmatprep.subr.mxu0 %v895
        %1064 = vmatpush1.msra.mxu0 %v894
        %1065 = vmatprep.subr.mxu0 %v903
        %1066 = vmatpush1.msra.mxu0 %v902
        %1067 = vmatprep.subr.mxu0 %v911
        %1068 = vmatpush1.msra.mxu0 %v910
        %1069 = vmatprep.subr.mxu0 %v919
        %1070 = vmatpush1.msra.mxu0 %v918
        %1071 = vmatprep.subr.mxu0 %v927
        %1072 = vmatpush1.msra.mxu0 %v926
        %1073 = vmatprep.subr.mxu0 %v935
        %1074 = vmatpush1.msra.mxu0 %v934
        %1075 = vmatprep.mubr.f32.mxu0 %v413
        %1076 = vmatmul.mubr.f32.gmra.mrb[0].mxu0 %v411
        %v1077 = vpop.f32.mrb[0].mxu0
        %v1078 = vadd.f32 0.0, %v1077
        %v1079 = vpop.f32.mrb[0].mxu0
        %v1080 = vadd.f32 0.0, %v1079
        %1081 = vdwg.mxu0
        %1082 = vmatprep.subr.mxu0 %v689
        %1083 = vmatpush1.msra.mxu0 %v688
        %1084 = vmatprep.subr.mxu0 %v697
        %1085 = vmatpush1.msra.mxu0 %v696
        %1086 = vmatprep.subr.mxu0 %v705
        %1087 = vmatpush1.msra.mxu0 %v704
        %1088 = vmatprep.subr.mxu0 %v713
        %1089 = vmatpush1.msra.mxu0 %v712
        %1090 = vmatprep.subr.mxu0 %v721
        %1091 = vmatpush1.msra.mxu0 %v720
        %1092 = vmatprep.subr.mxu0 %v729
        %1093 = vmatpush1.msra.mxu0 %v728
        %1094 = vmatprep.subr.mxu0 %v737
        %1095 = vmatpush1.msra.mxu0 %v736
        %1096 = vmatprep.subr.mxu0 %v745
        %1097 = vmatpush1.msra.mxu0 %v744
        %1098 = vmatprep.subr.mxu0 %v753
        %1099 = vmatpush1.msra.mxu0 %v752
        %1100 = vmatprep.subr.mxu0 %v761
        %1101 = vmatpush1.msra.mxu0 %v760
        %1102 = vmatprep.subr.mxu0 %v769
        %1103 = vmatpush1.msra.mxu0 %v768
        %1104 = vmatprep.subr.mxu0 %v777
        %1105 = vmatpush1.msra.mxu0 %v776
        %1106 = vmatprep.subr.mxu0 %v785
        %1107 = vmatpush1.msra.mxu0 %v784
        %1108 = vmatprep.subr.mxu0 %v793
        %1109 = vmatpush1.msra.mxu0 %v792
        %1110 = vmatprep.subr.mxu0 %v801
        %1111 = vmatpush1.msra.mxu0 %v800
        %1112 = vmatprep.subr.mxu0 %v809
        %1113 = vmatpush1.msra.mxu0 %v808
        %1114 = vmatprep.subr.mxu0 %v817
        %1115 = vmatpush1.msra.mxu0 %v816
        %1116 = vmatprep.subr.mxu0 %v825
        %1117 = vmatpush1.msra.mxu0 %v824
        %1118 = vmatprep.subr.mxu0 %v833
        %1119 = vmatpush1.msra.mxu0 %v832
        %1120 = vmatprep.subr.mxu0 %v841
        %1121 = vmatpush1.msra.mxu0 %v840
        %1122 = vmatprep.subr.mxu0 %v849
        %1123 = vmatpush1.msra.mxu0 %v848
        %1124 = vmatprep.subr.mxu0 %v857
        %1125 = vmatpush1.msra.mxu0 %v856
        %1126 = vmatprep.subr.mxu0 %v865
        %1127 = vmatpush1.msra.mxu0 %v864
        %1128 = vmatprep.subr.mxu0 %v873
        %1129 = vmatpush1.msra.mxu0 %v872
        %1130 = vmatprep.subr.mxu0 %v881
        %1131 = vmatpush1.msra.mxu0 %v880
        %1132 = vmatprep.subr.mxu0 %v889
        %1133 = vmatpush1.msra.mxu0 %v888
        %1134 = vmatprep.subr.mxu0 %v897
        %1135 = vmatpush1.msra.mxu0 %v896
        %1136 = vmatprep.subr.mxu0 %v905
        %1137 = vmatpush1.msra.mxu0 %v904
        %1138 = vmatprep.subr.mxu0 %v913
        %1139 = vmatpush1.msra.mxu0 %v912
        %1140 = vmatprep.subr.mxu0 %v921
        %1141 = vmatpush1.msra.mxu0 %v920
        %1142 = vmatprep.subr.mxu0 %v929
        %1143 = vmatpush1.msra.mxu0 %v928
        %1144 = vmatprep.subr.mxu0 %v937
        %1145 = vmatpush1.msra.mxu0 %v936
        %1146 = vmatprep.mubr.f32.mxu0 %v413
        %1147 = vmatmul.mubr.f32.gmra.mrb[0].mxu0 %v411
        %v1148 = vpop.f32.mrb[0].mxu0
        %v1149 = vadd.f32 0.0, %v1148
        %v1150 = vpop.f32.mrb[0].mxu0
        %v1151 = vadd.f32 0.0, %v1150
        %1152 = vdwg.mxu0
        %1153 = vmatprep.subr.mxu0 %v691
        %1154 = vmatpush1.msra.mxu0 %v690
        %1155 = vmatprep.subr.mxu0 %v699
        %1156 = vmatpush1.msra.mxu0 %v698
        %1157 = vmatprep.subr.mxu0 %v707
        %1158 = vmatpush1.msra.mxu0 %v706
        %1159 = vmatprep.subr.mxu0 %v715
        %1160 = vmatpush1.msra.mxu0 %v714
        %1161 = vmatprep.subr.mxu0 %v723
        %1162 = vmatpush1.msra.mxu0 %v722
        %1163 = vmatprep.subr.mxu0 %v731
        %1164 = vmatpush1.msra.mxu0 %v730
        %1165 = vmatprep.subr.mxu0 %v739
        %1166 = vmatpush1.msra.mxu0 %v738
        %1167 = vmatprep.subr.mxu0 %v747
        %1168 = vmatpush1.msra.mxu0 %v746
        %1169 = vmatprep.subr.mxu0 %v755
        %1170 = vmatpush1.msra.mxu0 %v754
        %1171 = vmatprep.subr.mxu0 %v763
        %1172 = vmatpush1.msra.mxu0 %v762
        %1173 = vmatprep.subr.mxu0 %v771
        %1174 = vmatpush1.msra.mxu0 %v770
        %1175 = vmatprep.subr.mxu0 %v779
        %1176 = vmatpush1.msra.mxu0 %v778
        %1177 = vmatprep.subr.mxu0 %v787
        %1178 = vmatpush1.msra.mxu0 %v786
        %1179 = vmatprep.subr.mxu0 %v795
        %1180 = vmatpush1.msra.mxu0 %v794
        %1181 = vmatprep.subr.mxu0 %v803
        %1182 = vmatpush1.msra.mxu0 %v802
        %1183 = vmatprep.subr.mxu0 %v811
        %1184 = vmatpush1.msra.mxu0 %v810
        %1185 = vmatprep.subr.mxu0 %v819
        %1186 = vmatpush1.msra.mxu0 %v818
        %1187 = vmatprep.subr.mxu0 %v827
        %1188 = vmatpush1.msra.mxu0 %v826
        %1189 = vmatprep.subr.mxu0 %v835
        %1190 = vmatpush1.msra.mxu0 %v834
        %1191 = vmatprep.subr.mxu0 %v843
        %1192 = vmatpush1.msra.mxu0 %v842
        %1193 = vmatprep.subr.mxu0 %v851
        %1194 = vmatpush1.msra.mxu0 %v850
        %1195 = vmatprep.subr.mxu0 %v859
        %1196 = vmatpush1.msra.mxu0 %v858
        %1197 = vmatprep.subr.mxu0 %v867
        %1198 = vmatpush1.msra.mxu0 %v866
        %1199 = vmatprep.subr.mxu0 %v875
        %1200 = vmatpush1.msra.mxu0 %v874
        %1201 = vmatprep.subr.mxu0 %v883
        %1202 = vmatpush1.msra.mxu0 %v882
        %1203 = vmatprep.subr.mxu0 %v891
        %1204 = vmatpush1.msra.mxu0 %v890
        %1205 = vmatprep.subr.mxu0 %v899
        %1206 = vmatpush1.msra.mxu0 %v898
        %1207 = vmatprep.subr.mxu0 %v907
        %1208 = vmatpush1.msra.mxu0 %v906
        %1209 = vmatprep.subr.mxu0 %v915
        %1210 = vmatpush1.msra.mxu0 %v914
        %1211 = vmatprep.subr.mxu0 %v923
        %1212 = vmatpush1.msra.mxu0 %v922
        %1213 = vmatprep.subr.mxu0 %v931
        %1214 = vmatpush1.msra.mxu0 %v930
        %1215 = vmatprep.subr.mxu0 %v939
        %1216 = vmatpush1.msra.mxu0 %v938
        %1217 = vmatprep.mubr.f32.mxu0 %v413
        %1218 = vmatmul.mubr.f32.gmra.mrb[0].mxu0 %v411
        %v1219 = vpop.f32.mrb[0].mxu0
        %v1220 = vadd.f32 0.0, %v1219
        %v1221 = vpop.f32.mrb[0].mxu0
        %v1222 = vadd.f32 0.0, %v1221
        %1223 = vdwg.mxu0
        %1224 = vmatprep.subr.mxu0 %v428
        %1225 = vmatpush1.msra.mxu0 %v427
        %1226 = vmatprep.subr.mxu0 %v436
        %1227 = vmatpush1.msra.mxu0 %v435
        %1228 = vmatprep.subr.mxu0 %v444
        %1229 = vmatpush1.msra.mxu0 %v443
        %1230 = vmatprep.subr.mxu0 %v452
        %1231 = vmatpush1.msra.mxu0 %v451
        %1232 = vmatprep.subr.mxu0 %v460
        %1233 = vmatpush1.msra.mxu0 %v459
        %1234 = vmatprep.subr.mxu0 %v468
        %1235 = vmatpush1.msra.mxu0 %v467
        %1236 = vmatprep.subr.mxu0 %v476
        %1237 = vmatpush1.msra.mxu0 %v475
        %1238 = vmatprep.subr.mxu0 %v484
        %1239 = vmatpush1.msra.mxu0 %v483
        %1240 = vmatprep.subr.mxu0 %v492
        %1241 = vmatpush1.msra.mxu0 %v491
        %1242 = vmatprep.subr.mxu0 %v500
        %1243 = vmatpush1.msra.mxu0 %v499
        %1244 = vmatprep.subr.mxu0 %v508
        %1245 = vmatpush1.msra.mxu0 %v507
        %1246 = vmatprep.subr.mxu0 %v516
        %1247 = vmatpush1.msra.mxu0 %v515
        %1248 = vmatprep.subr.mxu0 %v524
        %1249 = vmatpush1.msra.mxu0 %v523
        %1250 = vmatprep.subr.mxu0 %v532
        %1251 = vmatpush1.msra.mxu0 %v531
        %1252 = vmatprep.subr.mxu0 %v540
        %1253 = vmatpush1.msra.mxu0 %v539
        %1254 = vmatprep.subr.mxu0 %v548
        %1255 = vmatpush1.msra.mxu0 %v547
        %1256 = vmatprep.subr.mxu0 %v556
        %1257 = vmatpush1.msra.mxu0 %v555
        %1258 = vmatprep.subr.mxu0 %v564
        %1259 = vmatpush1.msra.mxu0 %v563
        %1260 = vmatprep.subr.mxu0 %v572
        %1261 = vmatpush1.msra.mxu0 %v571
        %1262 = vmatprep.subr.mxu0 %v580
        %1263 = vmatpush1.msra.mxu0 %v579
        %1264 = vmatprep.subr.mxu0 %v588
        %1265 = vmatpush1.msra.mxu0 %v587
        %1266 = vmatprep.subr.mxu0 %v596
        %1267 = vmatpush1.msra.mxu0 %v595
        %1268 = vmatprep.subr.mxu0 %v604
        %1269 = vmatpush1.msra.mxu0 %v603
        %1270 = vmatprep.subr.mxu0 %v612
        %1271 = vmatpush1.msra.mxu0 %v611
        %1272 = vmatprep.subr.mxu0 %v620
        %1273 = vmatpush1.msra.mxu0 %v619
        %1274 = vmatprep.subr.mxu0 %v628
        %1275 = vmatpush1.msra.mxu0 %v627
        %1276 = vmatprep.subr.mxu0 %v636
        %1277 = vmatpush1.msra.mxu0 %v635
        %1278 = vmatprep.subr.mxu0 %v644
        %1279 = vmatpush1.msra.mxu0 %v643
        %1280 = vmatprep.subr.mxu0 %v652
        %1281 = vmatpush1.msra.mxu0 %v651
        %1282 = vmatprep.subr.mxu0 %v660
        %1283 = vmatpush1.msra.mxu0 %v659
        %1284 = vmatprep.subr.mxu0 %v668
        %1285 = vmatpush1.msra.mxu0 %v667
        %1286 = vmatprep.subr.mxu0 %v676
        %1287 = vmatpush1.msra.mxu0 %v675
        %1288 = vmatprep.mubr.f32.mxu0 %v407
        %1289 = vmatmul.mubr.f32.gmra.mrb[0].mxu0 %v405
        %v1290 = vpop.f32.mrb[0].mxu0
        %v1291 = vadd.f32 %v1007, %v1290
        %v1292 = vpop.f32.mrb[0].mxu0
        %v1293 = vadd.f32 %v1009, %v1292
        %1294 = vdwg.mxu0
        %1295 = vmatprep.subr.mxu0 %v430
        %1296 = vmatpush1.msra.mxu0 %v429
        %1297 = vmatprep.subr.mxu0 %v438
        %1298 = vmatpush1.msra.mxu0 %v437
        %1299 = vmatprep.subr.mxu0 %v446
        %1300 = vmatpush1.msra.mxu0 %v445
        %1301 = vmatprep.subr.mxu0 %v454
        %1302 = vmatpush1.msra.mxu0 %v453
        %1303 = vmatprep.subr.mxu0 %v462
        %1304 = vmatpush1.msra.mxu0 %v461
        %1305 = vmatprep.subr.mxu0 %v470
        %1306 = vmatpush1.msra.mxu0 %v469
        %1307 = vmatprep.subr.mxu0 %v478
        %1308 = vmatpush1.msra.mxu0 %v477
        %1309 = vmatprep.subr.mxu0 %v486
        %1310 = vmatpush1.msra.mxu0 %v485
        %1311 = vmatprep.subr.mxu0 %v494
        %1312 = vmatpush1.msra.mxu0 %v493
        %1313 = vmatprep.subr.mxu0 %v502
        %1314 = vmatpush1.msra.mxu0 %v501
        %1315 = vmatprep.subr.mxu0 %v510
        %1316 = vmatpush1.msra.mxu0 %v509
        %1317 = vmatprep.subr.mxu0 %v518
        %1318 = vmatpush1.msra.mxu0 %v517
        %1319 = vmatprep.subr.mxu0 %v526
        %1320 = vmatpush1.msra.mxu0 %v525
        %1321 = vmatprep.subr.mxu0 %v534
        %1322 = vmatpush1.msra.mxu0 %v533
        %1323 = vmatprep.subr.mxu0 %v542
        %1324 = vmatpush1.msra.mxu0 %v541
        %1325 = vmatprep.subr.mxu0 %v550
        %1326 = vmatpush1.msra.mxu0 %v549
        %1327 = vmatprep.subr.mxu0 %v558
        %1328 = vmatpush1.msra.mxu0 %v557
        %1329 = vmatprep.subr.mxu0 %v566
        %1330 = vmatpush1.msra.mxu0 %v565
        %1331 = vmatprep.subr.mxu0 %v574
        %1332 = vmatpush1.msra.mxu0 %v573
        %1333 = vmatprep.subr.mxu0 %v582
        %1334 = vmatpush1.msra.mxu0 %v581
        %1335 = vmatprep.subr.mxu0 %v590
        %1336 = vmatpush1.msra.mxu0 %v589
        %1337 = vmatprep.subr.mxu0 %v598
        %1338 = vmatpush1.msra.mxu0 %v597
        %1339 = vmatprep.subr.mxu0 %v606
        %1340 = vmatpush1.msra.mxu0 %v605
        %1341 = vmatprep.subr.mxu0 %v614
        %1342 = vmatpush1.msra.mxu0 %v613
        %1343 = vmatprep.subr.mxu0 %v622
        %1344 = vmatpush1.msra.mxu0 %v621
        %1345 = vmatprep.subr.mxu0 %v630
        %1346 = vmatpush1.msra.mxu0 %v629
        %1347 = vmatprep.subr.mxu0 %v638
        %1348 = vmatpush1.msra.mxu0 %v637
        %1349 = vmatprep.subr.mxu0 %v646
        %1350 = vmatpush1.msra.mxu0 %v645
        %1351 = vmatprep.subr.mxu0 %v654
        %1352 = vmatpush1.msra.mxu0 %v653
        %1353 = vmatprep.subr.mxu0 %v662
        %1354 = vmatpush1.msra.mxu0 %v661
        %1355 = vmatprep.subr.mxu0 %v670
        %1356 = vmatpush1.msra.mxu0 %v669
        %1357 = vmatprep.subr.mxu0 %v678
        %1358 = vmatpush1.msra.mxu0 %v677
        %1359 = vmatprep.mubr.f32.mxu0 %v407
        %1360 = vmatmul.mubr.f32.gmra.mrb[0].mxu0 %v405
        %v1361 = vpop.f32.mrb[0].mxu0
        %v1362 = vadd.f32 %v1078, %v1361
        %v1363 = vpop.f32.mrb[0].mxu0
        %v1364 = vadd.f32 %v1080, %v1363
        %1365 = vdwg.mxu0
        %1366 = vmatprep.subr.mxu0 %v432
        %1367 = vmatpush1.msra.mxu0 %v431
        %1368 = vmatprep.subr.mxu0 %v440
        %1369 = vmatpush1.msra.mxu0 %v439
        %1370 = vmatprep.subr.mxu0 %v448
        %1371 = vmatpush1.msra.mxu0 %v447
        %1372 = vmatprep.subr.mxu0 %v456
        %1373 = vmatpush1.msra.mxu0 %v455
        %1374 = vmatprep.subr.mxu0 %v464
        %1375 = vmatpush1.msra.mxu0 %v463
        %1376 = vmatprep.subr.mxu0 %v472
        %1377 = vmatpush1.msra.mxu0 %v471
        %1378 = vmatprep.subr.mxu0 %v480
        %1379 = vmatpush1.msra.mxu0 %v479
        %1380 = vmatprep.subr.mxu0 %v488
        %1381 = vmatpush1.msra.mxu0 %v487
        %1382 = vmatprep.subr.mxu0 %v496
        %1383 = vmatpush1.msra.mxu0 %v495
        %1384 = vmatprep.subr.mxu0 %v504
        %1385 = vmatpush1.msra.mxu0 %v503
        %1386 = vmatprep.subr.mxu0 %v512
        %1387 = vmatpush1.msra.mxu0 %v511
        %1388 = vmatprep.subr.mxu0 %v520
        %1389 = vmatpush1.msra.mxu0 %v519
        %1390 = vmatprep.subr.mxu0 %v528
        %1391 = vmatpush1.msra.mxu0 %v527
        %1392 = vmatprep.subr.mxu0 %v536
        %1393 = vmatpush1.msra.mxu0 %v535
        %1394 = vmatprep.subr.mxu0 %v544
        %1395 = vmatpush1.msra.mxu0 %v543
        %1396 = vmatprep.subr.mxu0 %v552
        %1397 = vmatpush1.msra.mxu0 %v551
        %1398 = vmatprep.subr.mxu0 %v560
        %1399 = vmatpush1.msra.mxu0 %v559
        %1400 = vmatprep.subr.mxu0 %v568
        %1401 = vmatpush1.msra.mxu0 %v567
        %1402 = vmatprep.subr.mxu0 %v576
        %1403 = vmatpush1.msra.mxu0 %v575
        %1404 = vmatprep.subr.mxu0 %v584
        %1405 = vmatpush1.msra.mxu0 %v583
        %1406 = vmatprep.subr.mxu0 %v592
        %1407 = vmatpush1.msra.mxu0 %v591
        %1408 = vmatprep.subr.mxu0 %v600
        %1409 = vmatpush1.msra.mxu0 %v599
        %1410 = vmatprep.subr.mxu0 %v608
        %1411 = vmatpush1.msra.mxu0 %v607
        %1412 = vmatprep.subr.mxu0 %v616
        %1413 = vmatpush1.msra.mxu0 %v615
        %1414 = vmatprep.subr.mxu0 %v624
        %1415 = vmatpush1.msra.mxu0 %v623
        %1416 = vmatprep.subr.mxu0 %v632
        %1417 = vmatpush1.msra.mxu0 %v631
        %1418 = vmatprep.subr.mxu0 %v640
        %1419 = vmatpush1.msra.mxu0 %v639
        %1420 = vmatprep.subr.mxu0 %v648
        %1421 = vmatpush1.msra.mxu0 %v647
        %1422 = vmatprep.subr.mxu0 %v656
        %1423 = vmatpush1.msra.mxu0 %v655
        %1424 = vmatprep.subr.mxu0 %v664
        %1425 = vmatpush1.msra.mxu0 %v663
        %1426 = vmatprep.subr.mxu0 %v672
        %1427 = vmatpush1.msra.mxu0 %v671
        %1428 = vmatprep.subr.mxu0 %v680
        %1429 = vmatpush1.msra.mxu0 %v679
        %1430 = vmatprep.mubr.f32.mxu0 %v407
        %1431 = vmatmul.mubr.f32.gmra.mrb[0].mxu0 %v405
        %v1432 = vpop.f32.mrb[0].mxu0
        %v1433 = vadd.f32 %v1149, %v1432
        %v1434 = vpop.f32.mrb[0].mxu0
        %v1435 = vadd.f32 %v1151, %v1434
        %1436 = vdwg.mxu0
        %1437 = vmatprep.subr.mxu0 %v434
        %1438 = vmatpush1.msra.mxu0 %v433
        %1439 = vmatprep.subr.mxu0 %v442
        %1440 = vmatpush1.msra.mxu0 %v441
        %1441 = vmatprep.subr.mxu0 %v450
        %1442 = vmatpush1.msra.mxu0 %v449
        %1443 = vmatprep.subr.mxu0 %v458
        %1444 = vmatpush1.msra.mxu0 %v457
        %1445 = vmatprep.subr.mxu0 %v466
        %1446 = vmatpush1.msra.mxu0 %v465
        %1447 = vmatprep.subr.mxu0 %v474
        %1448 = vmatpush1.msra.mxu0 %v473
        %1449 = vmatprep.subr.mxu0 %v482
        %1450 = vmatpush1.msra.mxu0 %v481
        %1451 = vmatprep.subr.mxu0 %v490
        %1452 = vmatpush1.msra.mxu0 %v489
        %1453 = vmatprep.subr.mxu0 %v498
        %1454 = vmatpush1.msra.mxu0 %v497
        %1455 = vmatprep.subr.mxu0 %v506
        %1456 = vmatpush1.msra.mxu0 %v505
        %1457 = vmatprep.subr.mxu0 %v514
        %1458 = vmatpush1.msra.mxu0 %v513
        %1459 = vmatprep.subr.mxu0 %v522
        %1460 = vmatpush1.msra.mxu0 %v521
        %1461 = vmatprep.subr.mxu0 %v530
        %1462 = vmatpush1.msra.mxu0 %v529
        %1463 = vmatprep.subr.mxu0 %v538
        %1464 = vmatpush1.msra.mxu0 %v537
        %1465 = vmatprep.subr.mxu0 %v546
        %1466 = vmatpush1.msra.mxu0 %v545
        %1467 = vmatprep.subr.mxu0 %v554
        %1468 = vmatpush1.msra.mxu0 %v553
        %1469 = vmatprep.subr.mxu0 %v562
        %1470 = vmatpush1.msra.mxu0 %v561
        %1471 = vmatprep.subr.mxu0 %v570
        %1472 = vmatpush1.msra.mxu0 %v569
        %1473 = vmatprep.subr.mxu0 %v578
        %1474 = vmatpush1.msra.mxu0 %v577
        %1475 = vmatprep.subr.mxu0 %v586
        %1476 = vmatpush1.msra.mxu0 %v585
        %1477 = vmatprep.subr.mxu0 %v594
        %1478 = vmatpush1.msra.mxu0 %v593
        %1479 = vmatprep.subr.mxu0 %v602
        %1480 = vmatpush1.msra.mxu0 %v601
        %1481 = vmatprep.subr.mxu0 %v610
        %1482 = vmatpush1.msra.mxu0 %v609
        %1483 = vmatprep.subr.mxu0 %v618
        %1484 = vmatpush1.msra.mxu0 %v617
        %1485 = vmatprep.subr.mxu0 %v626
        %1486 = vmatpush1.msra.mxu0 %v625
        %1487 = vmatprep.subr.mxu0 %v634
        %1488 = vmatpush1.msra.mxu0 %v633
        %1489 = vmatprep.subr.mxu0 %v642
        %1490 = vmatpush1.msra.mxu0 %v641
        %1491 = vmatprep.subr.mxu0 %v650
        %1492 = vmatpush1.msra.mxu0 %v649
        %1493 = vmatprep.subr.mxu0 %v658
        %1494 = vmatpush1.msra.mxu0 %v657
        %1495 = vmatprep.subr.mxu0 %v666
        %1496 = vmatpush1.msra.mxu0 %v665
        %1497 = vmatprep.subr.mxu0 %v674
        %1498 = vmatpush1.msra.mxu0 %v673
        %1499 = vmatprep.subr.mxu0 %v682
        %1500 = vmatpush1.msra.mxu0 %v681
        %1501 = vmatprep.mubr.f32.mxu0 %v407
        %1502 = vmatmul.mubr.f32.gmra.mrb[0].mxu0 %v405
        %v1503 = vpop.f32.mrb[0].mxu0
        %v1504 = vadd.f32 %v1220, %v1503
        %v1505 = vpop.f32.mrb[0].mxu0
        %v1506 = vadd.f32 %v1222, %v1505
        %1507 = vdwg.mxu0
        %s1508 = scalar_lea.vmem [#allocation5], 4096
        %v1509 = vld [vmem:[%s1508] sm:$0xff]
        %v1510 = vld [vmem:[%s1508 + $0x8] sm:$0xff]
        %v1511 = vld [vmem:[%s1508 + $0x10] sm:$0xff]
        %v1512 = vld [vmem:[%s1508 + $0x18] sm:$0xff]
        %v1513 = vld [vmem:[%s1508 + $0x20] sm:$0xff]
        %v1514 = vld [vmem:[%s1508 + $0x28] sm:$0xff]
        %v1515 = vld [vmem:[%s1508 + $0x30] sm:$0xff]
        %v1516 = vld [vmem:[%s1508 + $0x38] sm:$0xff]
        %v1517 = vld [vmem:[%s1508 + $0x40] sm:$0xff]
        %v1518 = vld [vmem:[%s1508 + $0x48] sm:$0xff]
        %v1519 = vld [vmem:[%s1508 + $0x50] sm:$0xff]
        %v1520 = vld [vmem:[%s1508 + $0x58] sm:$0xff]
        %v1521 = vld [vmem:[%s1508 + $0x60] sm:$0xff]
        %v1522 = vld [vmem:[%s1508 + $0x68] sm:$0xff]
        %v1523 = vld [vmem:[%s1508 + $0x70] sm:$0xff]
        %v1524 = vld [vmem:[%s1508 + $0x78] sm:$0xff]
        %v1525 = vld [vmem:[%s1508 + $0x80] sm:$0xff]
        %v1526 = vld [vmem:[%s1508 + $0x88] sm:$0xff]
        %v1527 = vld [vmem:[%s1508 + $0x90] sm:$0xff]
        %v1528 = vld [vmem:[%s1508 + $0x98] sm:$0xff]
        %v1529 = vld [vmem:[%s1508 + $0xa0] sm:$0xff]
        %v1530 = vld [vmem:[%s1508 + $0xa8] sm:$0xff]
        %v1531 = vld [vmem:[%s1508 + $0xb0] sm:$0xff]
        %v1532 = vld [vmem:[%s1508 + $0xb8] sm:$0xff]
        %v1533 = vld [vmem:[%s1508 + $0xc0] sm:$0xff]
        %v1534 = vld [vmem:[%s1508 + $0xc8] sm:$0xff]
        %v1535 = vld [vmem:[%s1508 + $0xd0] sm:$0xff]
        %v1536 = vld [vmem:[%s1508 + $0xd8] sm:$0xff]
        %v1537 = vld [vmem:[%s1508 + $0xe0] sm:$0xff]
        %v1538 = vld [vmem:[%s1508 + $0xe8] sm:$0xff]
        %v1539 = vld [vmem:[%s1508 + $0xf0] sm:$0xff]
        %v1540 = vld [vmem:[%s1508 + $0xf8] sm:$0xff]
        %v1541 = vld [vmem:[%s1508 + $0x100] sm:$0xff]
        %v1542 = vld [vmem:[%s1508 + $0x108] sm:$0xff]
        %v1543 = vld [vmem:[%s1508 + $0x110] sm:$0xff]
        %v1544 = vld [vmem:[%s1508 + $0x118] sm:$0xff]
        %v1545 = vld [vmem:[%s1508 + $0x120] sm:$0xff]
        %v1546 = vld [vmem:[%s1508 + $0x128] sm:$0xff]
        %v1547 = vld [vmem:[%s1508 + $0x130] sm:$0xff]
        %v1548 = vld [vmem:[%s1508 + $0x138] sm:$0xff]
        %v1549 = vld [vmem:[%s1508 + $0x140] sm:$0xff]
        %v1550 = vld [vmem:[%s1508 + $0x148] sm:$0xff]
        %v1551 = vld [vmem:[%s1508 + $0x150] sm:$0xff]
        %v1552 = vld [vmem:[%s1508 + $0x158] sm:$0xff]
        %v1553 = vld [vmem:[%s1508 + $0x160] sm:$0xff]
        %v1554 = vld [vmem:[%s1508 + $0x168] sm:$0xff]
        %v1555 = vld [vmem:[%s1508 + $0x170] sm:$0xff]
        %v1556 = vld [vmem:[%s1508 + $0x178] sm:$0xff]
        %v1557 = vld [vmem:[%s1508 + $0x180] sm:$0xff]
        %v1558 = vld [vmem:[%s1508 + $0x188] sm:$0xff]
        %v1559 = vld [vmem:[%s1508 + $0x190] sm:$0xff]
        %v1560 = vld [vmem:[%s1508 + $0x198] sm:$0xff]
        %v1561 = vld [vmem:[%s1508 + $0x1a0] sm:$0xff]
        %v1562 = vld [vmem:[%s1508 + $0x1a8] sm:$0xff]
        %v1563 = vld [vmem:[%s1508 + $0x1b0] sm:$0xff]
        %v1564 = vld [vmem:[%s1508 + $0x1b8] sm:$0xff]
        %v1565 = vld [vmem:[%s1508 + $0x1c0] sm:$0xff]
        %v1566 = vld [vmem:[%s1508 + $0x1c8] sm:$0xff]
        %v1567 = vld [vmem:[%s1508 + $0x1d0] sm:$0xff]
        %v1568 = vld [vmem:[%s1508 + $0x1d8] sm:$0xff]
        %v1569 = vld [vmem:[%s1508 + $0x1e0] sm:$0xff]
        %v1570 = vld [vmem:[%s1508 + $0x1e8] sm:$0xff]
        %v1571 = vld [vmem:[%s1508 + $0x1f0] sm:$0xff]
        %v1572 = vld [vmem:[%s1508 + $0x1f8] sm:$0xff]
        %v1573 = vld [vmem:[%s1508 + $0x200] sm:$0xff]
        %v1574 = vld [vmem:[%s1508 + $0x208] sm:$0xff]
        %v1575 = vld [vmem:[%s1508 + $0x210] sm:$0xff]
        %v1576 = vld [vmem:[%s1508 + $0x218] sm:$0xff]
        %v1577 = vld [vmem:[%s1508 + $0x220] sm:$0xff]
        %v1578 = vld [vmem:[%s1508 + $0x228] sm:$0xff]
        %v1579 = vld [vmem:[%s1508 + $0x230] sm:$0xff]
        %v1580 = vld [vmem:[%s1508 + $0x238] sm:$0xff]
        %v1581 = vld [vmem:[%s1508 + $0x240] sm:$0xff]
        %v1582 = vld [vmem:[%s1508 + $0x248] sm:$0xff]
        %v1583 = vld [vmem:[%s1508 + $0x250] sm:$0xff]
        %v1584 = vld [vmem:[%s1508 + $0x258] sm:$0xff]
        %v1585 = vld [vmem:[%s1508 + $0x260] sm:$0xff]
        %v1586 = vld [vmem:[%s1508 + $0x268] sm:$0xff]
        %v1587 = vld [vmem:[%s1508 + $0x270] sm:$0xff]
        %v1588 = vld [vmem:[%s1508 + $0x278] sm:$0xff]
        %v1589 = vld [vmem:[%s1508 + $0x280] sm:$0xff]
        %v1590 = vld [vmem:[%s1508 + $0x288] sm:$0xff]
        %v1591 = vld [vmem:[%s1508 + $0x290] sm:$0xff]
        %v1592 = vld [vmem:[%s1508 + $0x298] sm:$0xff]
        %v1593 = vld [vmem:[%s1508 + $0x2a0] sm:$0xff]
        %v1594 = vld [vmem:[%s1508 + $0x2a8] sm:$0xff]
        %v1595 = vld [vmem:[%s1508 + $0x2b0] sm:$0xff]
        %v1596 = vld [vmem:[%s1508 + $0x2b8] sm:$0xff]
        %v1597 = vld [vmem:[%s1508 + $0x2c0] sm:$0xff]
        %v1598 = vld [vmem:[%s1508 + $0x2c8] sm:$0xff]
        %v1599 = vld [vmem:[%s1508 + $0x2d0] sm:$0xff]
        %v1600 = vld [vmem:[%s1508 + $0x2d8] sm:$0xff]
        %v1601 = vld [vmem:[%s1508 + $0x2e0] sm:$0xff]
        %v1602 = vld [vmem:[%s1508 + $0x2e8] sm:$0xff]
        %v1603 = vld [vmem:[%s1508 + $0x2f0] sm:$0xff]
        %v1604 = vld [vmem:[%s1508 + $0x2f8] sm:$0xff]
        %v1605 = vld [vmem:[%s1508 + $0x300] sm:$0xff]
        %v1606 = vld [vmem:[%s1508 + $0x308] sm:$0xff]
        %v1607 = vld [vmem:[%s1508 + $0x310] sm:$0xff]
        %v1608 = vld [vmem:[%s1508 + $0x318] sm:$0xff]
        %v1609 = vld [vmem:[%s1508 + $0x320] sm:$0xff]
        %v1610 = vld [vmem:[%s1508 + $0x328] sm:$0xff]
        %v1611 = vld [vmem:[%s1508 + $0x330] sm:$0xff]
        %v1612 = vld [vmem:[%s1508 + $0x338] sm:$0xff]
        %v1613 = vld [vmem:[%s1508 + $0x340] sm:$0xff]
        %v1614 = vld [vmem:[%s1508 + $0x348] sm:$0xff]
        %v1615 = vld [vmem:[%s1508 + $0x350] sm:$0xff]
        %v1616 = vld [vmem:[%s1508 + $0x358] sm:$0xff]
        %v1617 = vld [vmem:[%s1508 + $0x360] sm:$0xff]
        %v1618 = vld [vmem:[%s1508 + $0x368] sm:$0xff]
        %v1619 = vld [vmem:[%s1508 + $0x370] sm:$0xff]
        %v1620 = vld [vmem:[%s1508 + $0x378] sm:$0xff]
        %v1621 = vld [vmem:[%s1508 + $0x380] sm:$0xff]
        %v1622 = vld [vmem:[%s1508 + $0x388] sm:$0xff]
        %v1623 = vld [vmem:[%s1508 + $0x390] sm:$0xff]
        %v1624 = vld [vmem:[%s1508 + $0x398] sm:$0xff]
        %v1625 = vld [vmem:[%s1508 + $0x3a0] sm:$0xff]
        %v1626 = vld [vmem:[%s1508 + $0x3a8] sm:$0xff]
        %v1627 = vld [vmem:[%s1508 + $0x3b0] sm:$0xff]
        %v1628 = vld [vmem:[%s1508 + $0x3b8] sm:$0xff]
        %v1629 = vld [vmem:[%s1508 + $0x3c0] sm:$0xff]
        %v1630 = vld [vmem:[%s1508 + $0x3c8] sm:$0xff]
        %v1631 = vld [vmem:[%s1508 + $0x3d0] sm:$0xff]
        %v1632 = vld [vmem:[%s1508 + $0x3d8] sm:$0xff]
        %v1633 = vld [vmem:[%s1508 + $0x3e0] sm:$0xff]
        %v1634 = vld [vmem:[%s1508 + $0x3e8] sm:$0xff]
        %v1635 = vld [vmem:[%s1508 + $0x3f0] sm:$0xff]
        %v1636 = vld [vmem:[%s1508 + $0x3f8] sm:$0xff]
        %v1637 = vld [vmem:[%s1508 + $0x400] sm:$0xff]
        %v1638 = vld [vmem:[%s1508 + $0x408] sm:$0xff]
        %v1639 = vld [vmem:[%s1508 + $0x410] sm:$0xff]
        %v1640 = vld [vmem:[%s1508 + $0x418] sm:$0xff]
        %v1641 = vld [vmem:[%s1508 + $0x420] sm:$0xff]
        %v1642 = vld [vmem:[%s1508 + $0x428] sm:$0xff]
        %v1643 = vld [vmem:[%s1508 + $0x430] sm:$0xff]
        %v1644 = vld [vmem:[%s1508 + $0x438] sm:$0xff]
        %v1645 = vld [vmem:[%s1508 + $0x440] sm:$0xff]
        %v1646 = vld [vmem:[%s1508 + $0x448] sm:$0xff]
        %v1647 = vld [vmem:[%s1508 + $0x450] sm:$0xff]
        %v1648 = vld [vmem:[%s1508 + $0x458] sm:$0xff]
        %v1649 = vld [vmem:[%s1508 + $0x460] sm:$0xff]
        %v1650 = vld [vmem:[%s1508 + $0x468] sm:$0xff]
        %v1651 = vld [vmem:[%s1508 + $0x470] sm:$0xff]
        %v1652 = vld [vmem:[%s1508 + $0x478] sm:$0xff]
        %v1653 = vld [vmem:[%s1508 + $0x480] sm:$0xff]
        %v1654 = vld [vmem:[%s1508 + $0x488] sm:$0xff]
        %v1655 = vld [vmem:[%s1508 + $0x490] sm:$0xff]
        %v1656 = vld [vmem:[%s1508 + $0x498] sm:$0xff]
        %v1657 = vld [vmem:[%s1508 + $0x4a0] sm:$0xff]
        %v1658 = vld [vmem:[%s1508 + $0x4a8] sm:$0xff]
        %v1659 = vld [vmem:[%s1508 + $0x4b0] sm:$0xff]
        %v1660 = vld [vmem:[%s1508 + $0x4b8] sm:$0xff]
        %v1661 = vld [vmem:[%s1508 + $0x4c0] sm:$0xff]
        %v1662 = vld [vmem:[%s1508 + $0x4c8] sm:$0xff]
        %v1663 = vld [vmem:[%s1508 + $0x4d0] sm:$0xff]
        %v1664 = vld [vmem:[%s1508 + $0x4d8] sm:$0xff]
        %v1665 = vld [vmem:[%s1508 + $0x4e0] sm:$0xff]
        %v1666 = vld [vmem:[%s1508 + $0x4e8] sm:$0xff]
        %v1667 = vld [vmem:[%s1508 + $0x4f0] sm:$0xff]
        %v1668 = vld [vmem:[%s1508 + $0x4f8] sm:$0xff]
        %v1669 = vld [vmem:[%s1508 + $0x500] sm:$0xff]
        %v1670 = vld [vmem:[%s1508 + $0x508] sm:$0xff]
        %v1671 = vld [vmem:[%s1508 + $0x510] sm:$0xff]
        %v1672 = vld [vmem:[%s1508 + $0x518] sm:$0xff]
        %v1673 = vld [vmem:[%s1508 + $0x520] sm:$0xff]
        %v1674 = vld [vmem:[%s1508 + $0x528] sm:$0xff]
        %v1675 = vld [vmem:[%s1508 + $0x530] sm:$0xff]
        %v1676 = vld [vmem:[%s1508 + $0x538] sm:$0xff]
        %v1677 = vld [vmem:[%s1508 + $0x540] sm:$0xff]
        %v1678 = vld [vmem:[%s1508 + $0x548] sm:$0xff]
        %v1679 = vld [vmem:[%s1508 + $0x550] sm:$0xff]
        %v1680 = vld [vmem:[%s1508 + $0x558] sm:$0xff]
        %v1681 = vld [vmem:[%s1508 + $0x560] sm:$0xff]
        %v1682 = vld [vmem:[%s1508 + $0x568] sm:$0xff]
        %v1683 = vld [vmem:[%s1508 + $0x570] sm:$0xff]
        %v1684 = vld [vmem:[%s1508 + $0x578] sm:$0xff]
        %v1685 = vld [vmem:[%s1508 + $0x580] sm:$0xff]
        %v1686 = vld [vmem:[%s1508 + $0x588] sm:$0xff]
        %v1687 = vld [vmem:[%s1508 + $0x590] sm:$0xff]
        %v1688 = vld [vmem:[%s1508 + $0x598] sm:$0xff]
        %v1689 = vld [vmem:[%s1508 + $0x5a0] sm:$0xff]
        %v1690 = vld [vmem:[%s1508 + $0x5a8] sm:$0xff]
        %v1691 = vld [vmem:[%s1508 + $0x5b0] sm:$0xff]
        %v1692 = vld [vmem:[%s1508 + $0x5b8] sm:$0xff]
        %v1693 = vld [vmem:[%s1508 + $0x5c0] sm:$0xff]
        %v1694 = vld [vmem:[%s1508 + $0x5c8] sm:$0xff]
        %v1695 = vld [vmem:[%s1508 + $0x5d0] sm:$0xff]
        %v1696 = vld [vmem:[%s1508 + $0x5d8] sm:$0xff]
        %v1697 = vld [vmem:[%s1508 + $0x5e0] sm:$0xff]
        %v1698 = vld [vmem:[%s1508 + $0x5e8] sm:$0xff]
        %v1699 = vld [vmem:[%s1508 + $0x5f0] sm:$0xff]
        %v1700 = vld [vmem:[%s1508 + $0x5f8] sm:$0xff]
        %v1701 = vld [vmem:[%s1508 + $0x600] sm:$0xff]
        %v1702 = vld [vmem:[%s1508 + $0x608] sm:$0xff]
        %v1703 = vld [vmem:[%s1508 + $0x610] sm:$0xff]
        %v1704 = vld [vmem:[%s1508 + $0x618] sm:$0xff]
        %v1705 = vld [vmem:[%s1508 + $0x620] sm:$0xff]
        %v1706 = vld [vmem:[%s1508 + $0x628] sm:$0xff]
        %v1707 = vld [vmem:[%s1508 + $0x630] sm:$0xff]
        %v1708 = vld [vmem:[%s1508 + $0x638] sm:$0xff]
        %v1709 = vld [vmem:[%s1508 + $0x640] sm:$0xff]
        %v1710 = vld [vmem:[%s1508 + $0x648] sm:$0xff]
        %v1711 = vld [vmem:[%s1508 + $0x650] sm:$0xff]
        %v1712 = vld [vmem:[%s1508 + $0x658] sm:$0xff]
        %v1713 = vld [vmem:[%s1508 + $0x660] sm:$0xff]
        %v1714 = vld [vmem:[%s1508 + $0x668] sm:$0xff]
        %v1715 = vld [vmem:[%s1508 + $0x670] sm:$0xff]
        %v1716 = vld [vmem:[%s1508 + $0x678] sm:$0xff]
        %v1717 = vld [vmem:[%s1508 + $0x680] sm:$0xff]
        %v1718 = vld [vmem:[%s1508 + $0x688] sm:$0xff]
        %v1719 = vld [vmem:[%s1508 + $0x690] sm:$0xff]
        %v1720 = vld [vmem:[%s1508 + $0x698] sm:$0xff]
        %v1721 = vld [vmem:[%s1508 + $0x6a0] sm:$0xff]
        %v1722 = vld [vmem:[%s1508 + $0x6a8] sm:$0xff]
        %v1723 = vld [vmem:[%s1508 + $0x6b0] sm:$0xff]
        %v1724 = vld [vmem:[%s1508 + $0x6b8] sm:$0xff]
        %v1725 = vld [vmem:[%s1508 + $0x6c0] sm:$0xff]
        %v1726 = vld [vmem:[%s1508 + $0x6c8] sm:$0xff]
        %v1727 = vld [vmem:[%s1508 + $0x6d0] sm:$0xff]
        %v1728 = vld [vmem:[%s1508 + $0x6d8] sm:$0xff]
        %v1729 = vld [vmem:[%s1508 + $0x6e0] sm:$0xff]
        %v1730 = vld [vmem:[%s1508 + $0x6e8] sm:$0xff]
        %v1731 = vld [vmem:[%s1508 + $0x6f0] sm:$0xff]
        %v1732 = vld [vmem:[%s1508 + $0x6f8] sm:$0xff]
        %v1733 = vld [vmem:[%s1508 + $0x700] sm:$0xff]
        %v1734 = vld [vmem:[%s1508 + $0x708] sm:$0xff]
        %v1735 = vld [vmem:[%s1508 + $0x710] sm:$0xff]
        %v1736 = vld [vmem:[%s1508 + $0x718] sm:$0xff]
        %v1737 = vld [vmem:[%s1508 + $0x720] sm:$0xff]
        %v1738 = vld [vmem:[%s1508 + $0x728] sm:$0xff]
        %v1739 = vld [vmem:[%s1508 + $0x730] sm:$0xff]
        %v1740 = vld [vmem:[%s1508 + $0x738] sm:$0xff]
        %v1741 = vld [vmem:[%s1508 + $0x740] sm:$0xff]
        %v1742 = vld [vmem:[%s1508 + $0x748] sm:$0xff]
        %v1743 = vld [vmem:[%s1508 + $0x750] sm:$0xff]
        %v1744 = vld [vmem:[%s1508 + $0x758] sm:$0xff]
        %v1745 = vld [vmem:[%s1508 + $0x760] sm:$0xff]
        %v1746 = vld [vmem:[%s1508 + $0x768] sm:$0xff]
        %v1747 = vld [vmem:[%s1508 + $0x770] sm:$0xff]
        %v1748 = vld [vmem:[%s1508 + $0x778] sm:$0xff]
        %v1749 = vld [vmem:[%s1508 + $0x780] sm:$0xff]
        %v1750 = vld [vmem:[%s1508 + $0x788] sm:$0xff]
        %v1751 = vld [vmem:[%s1508 + $0x790] sm:$0xff]
        %v1752 = vld [vmem:[%s1508 + $0x798] sm:$0xff]
        %v1753 = vld [vmem:[%s1508 + $0x7a0] sm:$0xff]
        %v1754 = vld [vmem:[%s1508 + $0x7a8] sm:$0xff]
        %v1755 = vld [vmem:[%s1508 + $0x7b0] sm:$0xff]
        %v1756 = vld [vmem:[%s1508 + $0x7b8] sm:$0xff]
        %v1757 = vld [vmem:[%s1508 + $0x7c0] sm:$0xff]
        %v1758 = vld [vmem:[%s1508 + $0x7c8] sm:$0xff]
        %v1759 = vld [vmem:[%s1508 + $0x7d0] sm:$0xff]
        %v1760 = vld [vmem:[%s1508 + $0x7d8] sm:$0xff]
        %v1761 = vld [vmem:[%s1508 + $0x7e0] sm:$0xff]
        %v1762 = vld [vmem:[%s1508 + $0x7e8] sm:$0xff]
        %v1763 = vld [vmem:[%s1508 + $0x7f0] sm:$0xff]
        %v1764 = vld [vmem:[%s1508 + $0x7f8] sm:$0xff]
        %1765 = vmatprep.subr.mxu0 %v1510
        %1766 = vmatpush1.msra.mxu0 %v1509
        %1767 = vmatprep.subr.mxu0 %v1518
        %1768 = vmatpush1.msra.mxu0 %v1517
        %1769 = vmatprep.subr.mxu0 %v1526
        %1770 = vmatpush1.msra.mxu0 %v1525
        %1771 = vmatprep.subr.mxu0 %v1534
        %1772 = vmatpush1.msra.mxu0 %v1533
        %1773 = vmatprep.subr.mxu0 %v1542
        %1774 = vmatpush1.msra.mxu0 %v1541
        %1775 = vmatprep.subr.mxu0 %v1550
        %1776 = vmatpush1.msra.mxu0 %v1549
        %1777 = vmatprep.subr.mxu0 %v1558
        %1778 = vmatpush1.msra.mxu0 %v1557
        %1779 = vmatprep.subr.mxu0 %v1566
        %1780 = vmatpush1.msra.mxu0 %v1565
        %1781 = vmatprep.subr.mxu0 %v1574
        %1782 = vmatpush1.msra.mxu0 %v1573
        %1783 = vmatprep.subr.mxu0 %v1582
        %1784 = vmatpush1.msra.mxu0 %v1581
        %1785 = vmatprep.subr.mxu0 %v1590
        %1786 = vmatpush1.msra.mxu0 %v1589
        %1787 = vmatprep.subr.mxu0 %v1598
        %1788 = vmatpush1.msra.mxu0 %v1597
        %1789 = vmatprep.subr.mxu0 %v1606
        %1790 = vmatpush1.msra.mxu0 %v1605
        %1791 = vmatprep.subr.mxu0 %v1614
        %1792 = vmatpush1.msra.mxu0 %v1613
        %1793 = vmatprep.subr.mxu0 %v1622
        %1794 = vmatpush1.msra.mxu0 %v1621
        %1795 = vmatprep.subr.mxu0 %v1630
        %1796 = vmatpush1.msra.mxu0 %v1629
        %1797 = vmatprep.subr.mxu0 %v1638
        %1798 = vmatpush1.msra.mxu0 %v1637
        %1799 = vmatprep.subr.mxu0 %v1646
        %1800 = vmatpush1.msra.mxu0 %v1645
        %1801 = vmatprep.subr.mxu0 %v1654
        %1802 = vmatpush1.msra.mxu0 %v1653
        %1803 = vmatprep.subr.mxu0 %v1662
        %1804 = vmatpush1.msra.mxu0 %v1661
        %1805 = vmatprep.subr.mxu0 %v1670
        %1806 = vmatpush1.msra.mxu0 %v1669
        %1807 = vmatprep.subr.mxu0 %v1678
        %1808 = vmatpush1.msra.mxu0 %v1677
        %1809 = vmatprep.subr.mxu0 %v1686
        %1810 = vmatpush1.msra.mxu0 %v1685
        %1811 = vmatprep.subr.mxu0 %v1694
        %1812 = vmatpush1.msra.mxu0 %v1693
        %1813 = vmatprep.subr.mxu0 %v1702
        %1814 = vmatpush1.msra.mxu0 %v1701
        %1815 = vmatprep.subr.mxu0 %v1710
        %1816 = vmatpush1.msra.mxu0 %v1709
        %1817 = vmatprep.subr.mxu0 %v1718
        %1818 = vmatpush1.msra.mxu0 %v1717
        %1819 = vmatprep.subr.mxu0 %v1726
        %1820 = vmatpush1.msra.mxu0 %v1725
        %1821 = vmatprep.subr.mxu0 %v1734
        %1822 = vmatpush1.msra.mxu0 %v1733
        %1823 = vmatprep.subr.mxu0 %v1742
        %1824 = vmatpush1.msra.mxu0 %v1741
        %1825 = vmatprep.subr.mxu0 %v1750
        %1826 = vmatpush1.msra.mxu0 %v1749
        %1827 = vmatprep.subr.mxu0 %v1758
        %1828 = vmatpush1.msra.mxu0 %v1757
        %1829 = vmatprep.mubr.f32.mxu0 %v419
        %1830 = vmatmul.mubr.f32.gmra.mrb[0].mxu0 %v417
        %v1831 = vpop.f32.mrb[0].mxu0
        %v1832 = vadd.f32 0.0, %v1831
        %v1833 = vpop.f32.mrb[0].mxu0
        %v1834 = vadd.f32 0.0, %v1833
        %1835 = vdwg.mxu0
        %1836 = vmatprep.subr.mxu0 %v1512
        %1837 = vmatpush1.msra.mxu0 %v1511
        %1838 = vmatprep.subr.mxu0 %v1520
        %1839 = vmatpush1.msra.mxu0 %v1519
        %1840 = vmatprep.subr.mxu0 %v1528
        %1841 = vmatpush1.msra.mxu0 %v1527
        %1842 = vmatprep.subr.mxu0 %v1536
        %1843 = vmatpush1.msra.mxu0 %v1535
        %1844 = vmatprep.subr.mxu0 %v1544
        %1845 = vmatpush1.msra.mxu0 %v1543
        %1846 = vmatprep.subr.mxu0 %v1552
        %1847 = vmatpush1.msra.mxu0 %v1551
        %1848 = vmatprep.subr.mxu0 %v1560
        %1849 = vmatpush1.msra.mxu0 %v1559
        %1850 = vmatprep.subr.mxu0 %v1568
        %1851 = vmatpush1.msra.mxu0 %v1567
        %1852 = vmatprep.subr.mxu0 %v1576
        %1853 = vmatpush1.msra.mxu0 %v1575
        %1854 = vmatprep.subr.mxu0 %v1584
        %1855 = vmatpush1.msra.mxu0 %v1583
        %1856 = vmatprep.subr.mxu0 %v1592
        %1857 = vmatpush1.msra.mxu0 %v1591
        %1858 = vmatprep.subr.mxu0 %v1600
        %1859 = vmatpush1.msra.mxu0 %v1599
        %1860 = vmatprep.subr.mxu0 %v1608
        %1861 = vmatpush1.msra.mxu0 %v1607
        %1862 = vmatprep.subr.mxu0 %v1616
        %1863 = vmatpush1.msra.mxu0 %v1615
        %1864 = vmatprep.subr.mxu0 %v1624
        %1865 = vmatpush1.msra.mxu0 %v1623
        %1866 = vmatprep.subr.mxu0 %v1632
        %1867 = vmatpush1.msra.mxu0 %v1631
        %1868 = vmatprep.subr.mxu0 %v1640
        %1869 = vmatpush1.msra.mxu0 %v1639
        %1870 = vmatprep.subr.mxu0 %v1648
        %1871 = vmatpush1.msra.mxu0 %v1647
        %1872 = vmatprep.subr.mxu0 %v1656
        %1873 = vmatpush1.msra.mxu0 %v1655
        %1874 = vmatprep.subr.mxu0 %v1664
        %1875 = vmatpush1.msra.mxu0 %v1663
        %1876 = vmatprep.subr.mxu0 %v1672
        %1877 = vmatpush1.msra.mxu0 %v1671
        %1878 = vmatprep.subr.mxu0 %v1680
        %1879 = vmatpush1.msra.mxu0 %v1679
        %1880 = vmatprep.subr.mxu0 %v1688
        %1881 = vmatpush1.msra.mxu0 %v1687
        %1882 = vmatprep.subr.mxu0 %v1696
        %1883 = vmatpush1.msra.mxu0 %v1695
        %1884 = vmatprep.subr.mxu0 %v1704
        %1885 = vmatpush1.msra.mxu0 %v1703
        %1886 = vmatprep.subr.mxu0 %v1712
        %1887 = vmatpush1.msra.mxu0 %v1711
        %1888 = vmatprep.subr.mxu0 %v1720
        %1889 = vmatpush1.msra.mxu0 %v1719
        %1890 = vmatprep.subr.mxu0 %v1728
        %1891 = vmatpush1.msra.mxu0 %v1727
        %1892 = vmatprep.subr.mxu0 %v1736
        %1893 = vmatpush1.msra.mxu0 %v1735
        %1894 = vmatprep.subr.mxu0 %v1744
        %1895 = vmatpush1.msra.mxu0 %v1743
        %1896 = vmatprep.subr.mxu0 %v1752
        %1897 = vmatpush1.msra.mxu0 %v1751
        %1898 = vmatprep.subr.mxu0 %v1760
        %1899 = vmatpush1.msra.mxu0 %v1759
        %1900 = vmatprep.mubr.f32.mxu0 %v419
        %1901 = vmatmul.mubr.f32.gmra.mrb[0].mxu0 %v417
        %v1902 = vpop.f32.mrb[0].mxu0
        %v1903 = vadd.f32 0.0, %v1902
        %v1904 = vpop.f32.mrb[0].mxu0
        %v1905 = vadd.f32 0.0, %v1904
        %1906 = vdwg.mxu0
        %1907 = vmatprep.subr.mxu0 %v1514
        %1908 = vmatpush1.msra.mxu0 %v1513
        %1909 = vmatprep.subr.mxu0 %v1522
        %1910 = vmatpush1.msra.mxu0 %v1521
        %1911 = vmatprep.subr.mxu0 %v1530
        %1912 = vmatpush1.msra.mxu0 %v1529
        %1913 = vmatprep.subr.mxu0 %v1538
        %1914 = vmatpush1.msra.mxu0 %v1537
        %1915 = vmatprep.subr.mxu0 %v1546
        %1916 = vmatpush1.msra.mxu0 %v1545
        %1917 = vmatprep.subr.mxu0 %v1554
        %1918 = vmatpush1.msra.mxu0 %v1553
        %1919 = vmatprep.subr.mxu0 %v1562
        %1920 = vmatpush1.msra.mxu0 %v1561
        %1921 = vmatprep.subr.mxu0 %v1570
        %1922 = vmatpush1.msra.mxu0 %v1569
        %1923 = vmatprep.subr.mxu0 %v1578
        %1924 = vmatpush1.msra.mxu0 %v1577
        %1925 = vmatprep.subr.mxu0 %v1586
        %1926 = vmatpush1.msra.mxu0 %v1585
        %1927 = vmatprep.subr.mxu0 %v1594
        %1928 = vmatpush1.msra.mxu0 %v1593
        %1929 = vmatprep.subr.mxu0 %v1602
        %1930 = vmatpush1.msra.mxu0 %v1601
        %1931 = vmatprep.subr.mxu0 %v1610
        %1932 = vmatpush1.msra.mxu0 %v1609
        %1933 = vmatprep.subr.mxu0 %v1618
        %1934 = vmatpush1.msra.mxu0 %v1617
        %1935 = vmatprep.subr.mxu0 %v1626
        %1936 = vmatpush1.msra.mxu0 %v1625
        %1937 = vmatprep.subr.mxu0 %v1634
        %1938 = vmatpush1.msra.mxu0 %v1633
        %1939 = vmatprep.subr.mxu0 %v1642
        %1940 = vmatpush1.msra.mxu0 %v1641
        %1941 = vmatprep.subr.mxu0 %v1650
        %1942 = vmatpush1.msra.mxu0 %v1649
        %1943 = vmatprep.subr.mxu0 %v1658
        %1944 = vmatpush1.msra.mxu0 %v1657
        %1945 = vmatprep.subr.mxu0 %v1666
        %1946 = vmatpush1.msra.mxu0 %v1665
        %1947 = vmatprep.subr.mxu0 %v1674
        %1948 = vmatpush1.msra.mxu0 %v1673
        %1949 = vmatprep.subr.mxu0 %v1682
        %1950 = vmatpush1.msra.mxu0 %v1681
        %1951 = vmatprep.subr.mxu0 %v1690
        %1952 = vmatpush1.msra.mxu0 %v1689
        %1953 = vmatprep.subr.mxu0 %v1698
        %1954 = vmatpush1.msra.mxu0 %v1697
        %1955 = vmatprep.subr.mxu0 %v1706
        %1956 = vmatpush1.msra.mxu0 %v1705
        %1957 = vmatprep.subr.mxu0 %v1714
        %1958 = vmatpush1.msra.mxu0 %v1713
        %1959 = vmatprep.subr.mxu0 %v1722
        %1960 = vmatpush1.msra.mxu0 %v1721
        %1961 = vmatprep.subr.mxu0 %v1730
        %1962 = vmatpush1.msra.mxu0 %v1729
        %1963 = vmatprep.subr.mxu0 %v1738
        %1964 = vmatpush1.msra.mxu0 %v1737
        %1965 = vmatprep.subr.mxu0 %v1746
        %1966 = vmatpush1.msra.mxu0 %v1745
        %1967 = vmatprep.subr.mxu0 %v1754
        %1968 = vmatpush1.msra.mxu0 %v1753
        %1969 = vmatprep.subr.mxu0 %v1762
        %1970 = vmatpush1.msra.mxu0 %v1761
        %1971 = vmatprep.mubr.f32.mxu0 %v419
        %1972 = vmatmul.mubr.f32.gmra.mrb[0].mxu0 %v417
        %v1973 = vpop.f32.mrb[0].mxu0
        %v1974 = vadd.f32 0.0, %v1973
        %v1975 = vpop.f32.mrb[0].mxu0
        %v1976 = vadd.f32 0.0, %v1975
        %1977 = vdwg.mxu0
        %1978 = vmatprep.subr.mxu0 %v1516
        %1979 = vmatpush1.msra.mxu0 %v1515
        %1980 = vmatprep.subr.mxu0 %v1524
        %1981 = vmatpush1.msra.mxu0 %v1523
        %1982 = vmatprep.subr.mxu0 %v1532
        %1983 = vmatpush1.msra.mxu0 %v1531
        %1984 = vmatprep.subr.mxu0 %v1540
        %1985 = vmatpush1.msra.mxu0 %v1539
        %1986 = vmatprep.subr.mxu0 %v1548
        %1987 = vmatpush1.msra.mxu0 %v1547
        %1988 = vmatprep.subr.mxu0 %v1556
        %1989 = vmatpush1.msra.mxu0 %v1555
        %1990 = vmatprep.subr.mxu0 %v1564
        %1991 = vmatpush1.msra.mxu0 %v1563
        %1992 = vmatprep.subr.mxu0 %v1572
        %1993 = vmatpush1.msra.mxu0 %v1571
        %1994 = vmatprep.subr.mxu0 %v1580
        %1995 = vmatpush1.msra.mxu0 %v1579
        %1996 = vmatprep.subr.mxu0 %v1588
        %1997 = vmatpush1.msra.mxu0 %v1587
        %1998 = vmatprep.subr.mxu0 %v1596
        %1999 = vmatpush1.msra.mxu0 %v1595
        %2000 = vmatprep.subr.mxu0 %v1604
        %2001 = vmatpush1.msra.mxu0 %v1603
        %2002 = vmatprep.subr.mxu0 %v1612
        %2003 = vmatpush1.msra.mxu0 %v1611
        %2004 = vmatprep.subr.mxu0 %v1620
        %2005 = vmatpush1.msra.mxu0 %v1619
        %2006 = vmatprep.subr.mxu0 %v1628
        %2007 = vmatpush1.msra.mxu0 %v1627
        %2008 = vmatprep.subr.mxu0 %v1636
        %2009 = vmatpush1.msra.mxu0 %v1635
        %2010 = vmatprep.subr.mxu0 %v1644
        %2011 = vmatpush1.msra.mxu0 %v1643
        %2012 = vmatprep.subr.mxu0 %v1652
        %2013 = vmatpush1.msra.mxu0 %v1651
        %2014 = vmatprep.subr.mxu0 %v1660
        %2015 = vmatpush1.msra.mxu0 %v1659
        %2016 = vmatprep.subr.mxu0 %v1668
        %2017 = vmatpush1.msra.mxu0 %v1667
        %2018 = vmatprep.subr.mxu0 %v1676
        %2019 = vmatpush1.msra.mxu0 %v1675
        %2020 = vmatprep.subr.mxu0 %v1684
        %2021 = vmatpush1.msra.mxu0 %v1683
        %2022 = vmatprep.subr.mxu0 %v1692
        %2023 = vmatpush1.msra.mxu0 %v1691
        %2024 = vmatprep.subr.mxu0 %v1700
        %2025 = vmatpush1.msra.mxu0 %v1699
        %2026 = vmatprep.subr.mxu0 %v1708
        %2027 = vmatpush1.msra.mxu0 %v1707
        %2028 = vmatprep.subr.mxu0 %v1716
        %2029 = vmatpush1.msra.mxu0 %v1715
        %2030 = vmatprep.subr.mxu0 %v1724
        %2031 = vmatpush1.msra.mxu0 %v1723
        %2032 = vmatprep.subr.mxu0 %v1732
        %2033 = vmatpush1.msra.mxu0 %v1731
        %2034 = vmatprep.subr.mxu0 %v1740
        %2035 = vmatpush1.msra.mxu0 %v1739
        %2036 = vmatprep.subr.mxu0 %v1748
        %2037 = vmatpush1.msra.mxu0 %v1747
        %2038 = vmatprep.subr.mxu0 %v1756
        %2039 = vmatpush1.msra.mxu0 %v1755
        %2040 = vmatprep.subr.mxu0 %v1764
        %2041 = vmatpush1.msra.mxu0 %v1763
        %2042 = vmatprep.mubr.f32.mxu0 %v419
        %2043 = vmatmul.mubr.f32.gmra.mrb[0].mxu0 %v417
        %v2044 = vpop.f32.mrb[0].mxu0
        %v2045 = vadd.f32 0.0, %v2044
        %v2046 = vpop.f32.mrb[0].mxu0
        %v2047 = vadd.f32 0.0, %v2046
        %2048 = vdwg.mxu0
        %v2049 = vadd.f32 %v1291, %v1832
        %v2050 = vadd.f32 %v1293, %v1834
        %v2051 = vadd.f32 %v1362, %v1903
        %v2052 = vadd.f32 %v1364, %v1905
        %v2053 = vadd.f32 %v1433, %v1974
        %v2054 = vadd.f32 %v1435, %v1976
        %v2055 = vadd.f32 %v1504, %v2045
        %v2056 = vadd.f32 %v1506, %v2047
        %s2057 = scalar_lea.vmem [#allocation5], 6144
        %v2058 = vld [vmem:[%s2057] sm:$0xff]
        %v2059 = vld [vmem:[%s2057 + $0x8] sm:$0xff]
        %v2060 = vld [vmem:[%s2057 + $0x10] sm:$0xff]
        %v2061 = vld [vmem:[%s2057 + $0x18] sm:$0xff]
        %v2062 = vld [vmem:[%s2057 + $0x20] sm:$0xff]
        %v2063 = vld [vmem:[%s2057 + $0x28] sm:$0xff]
        %v2064 = vld [vmem:[%s2057 + $0x30] sm:$0xff]
        %v2065 = vld [vmem:[%s2057 + $0x38] sm:$0xff]
        %v2066 = vld [vmem:[%s2057 + $0x40] sm:$0xff]
        %v2067 = vld [vmem:[%s2057 + $0x48] sm:$0xff]
        %v2068 = vld [vmem:[%s2057 + $0x50] sm:$0xff]
        %v2069 = vld [vmem:[%s2057 + $0x58] sm:$0xff]
        %v2070 = vld [vmem:[%s2057 + $0x60] sm:$0xff]
        %v2071 = vld [vmem:[%s2057 + $0x68] sm:$0xff]
        %v2072 = vld [vmem:[%s2057 + $0x70] sm:$0xff]
        %v2073 = vld [vmem:[%s2057 + $0x78] sm:$0xff]
        %v2074 = vld [vmem:[%s2057 + $0x80] sm:$0xff]
        %v2075 = vld [vmem:[%s2057 + $0x88] sm:$0xff]
        %v2076 = vld [vmem:[%s2057 + $0x90] sm:$0xff]
        %v2077 = vld [vmem:[%s2057 + $0x98] sm:$0xff]
        %v2078 = vld [vmem:[%s2057 + $0xa0] sm:$0xff]
        %v2079 = vld [vmem:[%s2057 + $0xa8] sm:$0xff]
        %v2080 = vld [vmem:[%s2057 + $0xb0] sm:$0xff]
        %v2081 = vld [vmem:[%s2057 + $0xb8] sm:$0xff]
        %v2082 = vld [vmem:[%s2057 + $0xc0] sm:$0xff]
        %v2083 = vld [vmem:[%s2057 + $0xc8] sm:$0xff]
        %v2084 = vld [vmem:[%s2057 + $0xd0] sm:$0xff]
        %v2085 = vld [vmem:[%s2057 + $0xd8] sm:$0xff]
        %v2086 = vld [vmem:[%s2057 + $0xe0] sm:$0xff]
        %v2087 = vld [vmem:[%s2057 + $0xe8] sm:$0xff]
        %v2088 = vld [vmem:[%s2057 + $0xf0] sm:$0xff]
        %v2089 = vld [vmem:[%s2057 + $0xf8] sm:$0xff]
        %v2090 = vld [vmem:[%s2057 + $0x100] sm:$0xff]
        %v2091 = vld [vmem:[%s2057 + $0x108] sm:$0xff]
        %v2092 = vld [vmem:[%s2057 + $0x110] sm:$0xff]
        %v2093 = vld [vmem:[%s2057 + $0x118] sm:$0xff]
        %v2094 = vld [vmem:[%s2057 + $0x120] sm:$0xff]
        %v2095 = vld [vmem:[%s2057 + $0x128] sm:$0xff]
        %v2096 = vld [vmem:[%s2057 + $0x130] sm:$0xff]
        %v2097 = vld [vmem:[%s2057 + $0x138] sm:$0xff]
        %v2098 = vld [vmem:[%s2057 + $0x140] sm:$0xff]
        %v2099 = vld [vmem:[%s2057 + $0x148] sm:$0xff]
        %v2100 = vld [vmem:[%s2057 + $0x150] sm:$0xff]
        %v2101 = vld [vmem:[%s2057 + $0x158] sm:$0xff]
        %v2102 = vld [vmem:[%s2057 + $0x160] sm:$0xff]
        %v2103 = vld [vmem:[%s2057 + $0x168] sm:$0xff]
        %v2104 = vld [vmem:[%s2057 + $0x170] sm:$0xff]
        %v2105 = vld [vmem:[%s2057 + $0x178] sm:$0xff]
        %v2106 = vld [vmem:[%s2057 + $0x180] sm:$0xff]
        %v2107 = vld [vmem:[%s2057 + $0x188] sm:$0xff]
        %v2108 = vld [vmem:[%s2057 + $0x190] sm:$0xff]
        %v2109 = vld [vmem:[%s2057 + $0x198] sm:$0xff]
        %v2110 = vld [vmem:[%s2057 + $0x1a0] sm:$0xff]
        %v2111 = vld [vmem:[%s2057 + $0x1a8] sm:$0xff]
        %v2112 = vld [vmem:[%s2057 + $0x1b0] sm:$0xff]
        %v2113 = vld [vmem:[%s2057 + $0x1b8] sm:$0xff]
        %v2114 = vld [vmem:[%s2057 + $0x1c0] sm:$0xff]
        %v2115 = vld [vmem:[%s2057 + $0x1c8] sm:$0xff]
        %v2116 = vld [vmem:[%s2057 + $0x1d0] sm:$0xff]
        %v2117 = vld [vmem:[%s2057 + $0x1d8] sm:$0xff]
        %v2118 = vld [vmem:[%s2057 + $0x1e0] sm:$0xff]
        %v2119 = vld [vmem:[%s2057 + $0x1e8] sm:$0xff]
        %v2120 = vld [vmem:[%s2057 + $0x1f0] sm:$0xff]
        %v2121 = vld [vmem:[%s2057 + $0x1f8] sm:$0xff]
        %v2122 = vld [vmem:[%s2057 + $0x200] sm:$0xff]
        %v2123 = vld [vmem:[%s2057 + $0x208] sm:$0xff]
        %v2124 = vld [vmem:[%s2057 + $0x210] sm:$0xff]
        %v2125 = vld [vmem:[%s2057 + $0x218] sm:$0xff]
        %v2126 = vld [vmem:[%s2057 + $0x220] sm:$0xff]
        %v2127 = vld [vmem:[%s2057 + $0x228] sm:$0xff]
        %v2128 = vld [vmem:[%s2057 + $0x230] sm:$0xff]
        %v2129 = vld [vmem:[%s2057 + $0x238] sm:$0xff]
        %v2130 = vld [vmem:[%s2057 + $0x240] sm:$0xff]
        %v2131 = vld [vmem:[%s2057 + $0x248] sm:$0xff]
        %v2132 = vld [vmem:[%s2057 + $0x250] sm:$0xff]
        %v2133 = vld [vmem:[%s2057 + $0x258] sm:$0xff]
        %v2134 = vld [vmem:[%s2057 + $0x260] sm:$0xff]
        %v2135 = vld [vmem:[%s2057 + $0x268] sm:$0xff]
        %v2136 = vld [vmem:[%s2057 + $0x270] sm:$0xff]
        %v2137 = vld [vmem:[%s2057 + $0x278] sm:$0xff]
        %v2138 = vld [vmem:[%s2057 + $0x280] sm:$0xff]
        %v2139 = vld [vmem:[%s2057 + $0x288] sm:$0xff]
        %v2140 = vld [vmem:[%s2057 + $0x290] sm:$0xff]
        %v2141 = vld [vmem:[%s2057 + $0x298] sm:$0xff]
        %v2142 = vld [vmem:[%s2057 + $0x2a0] sm:$0xff]
        %v2143 = vld [vmem:[%s2057 + $0x2a8] sm:$0xff]
        %v2144 = vld [vmem:[%s2057 + $0x2b0] sm:$0xff]
        %v2145 = vld [vmem:[%s2057 + $0x2b8] sm:$0xff]
        %v2146 = vld [vmem:[%s2057 + $0x2c0] sm:$0xff]
        %v2147 = vld [vmem:[%s2057 + $0x2c8] sm:$0xff]
        %v2148 = vld [vmem:[%s2057 + $0x2d0] sm:$0xff]
        %v2149 = vld [vmem:[%s2057 + $0x2d8] sm:$0xff]
        %v2150 = vld [vmem:[%s2057 + $0x2e0] sm:$0xff]
        %v2151 = vld [vmem:[%s2057 + $0x2e8] sm:$0xff]
        %v2152 = vld [vmem:[%s2057 + $0x2f0] sm:$0xff]
        %v2153 = vld [vmem:[%s2057 + $0x2f8] sm:$0xff]
        %v2154 = vld [vmem:[%s2057 + $0x300] sm:$0xff]
        %v2155 = vld [vmem:[%s2057 + $0x308] sm:$0xff]
        %v2156 = vld [vmem:[%s2057 + $0x310] sm:$0xff]
        %v2157 = vld [vmem:[%s2057 + $0x318] sm:$0xff]
        %v2158 = vld [vmem:[%s2057 + $0x320] sm:$0xff]
        %v2159 = vld [vmem:[%s2057 + $0x328] sm:$0xff]
        %v2160 = vld [vmem:[%s2057 + $0x330] sm:$0xff]
        %v2161 = vld [vmem:[%s2057 + $0x338] sm:$0xff]
        %v2162 = vld [vmem:[%s2057 + $0x340] sm:$0xff]
        %v2163 = vld [vmem:[%s2057 + $0x348] sm:$0xff]
        %v2164 = vld [vmem:[%s2057 + $0x350] sm:$0xff]
        %v2165 = vld [vmem:[%s2057 + $0x358] sm:$0xff]
        %v2166 = vld [vmem:[%s2057 + $0x360] sm:$0xff]
        %v2167 = vld [vmem:[%s2057 + $0x368] sm:$0xff]
        %v2168 = vld [vmem:[%s2057 + $0x370] sm:$0xff]
        %v2169 = vld [vmem:[%s2057 + $0x378] sm:$0xff]
        %v2170 = vld [vmem:[%s2057 + $0x380] sm:$0xff]
        %v2171 = vld [vmem:[%s2057 + $0x388] sm:$0xff]
        %v2172 = vld [vmem:[%s2057 + $0x390] sm:$0xff]
        %v2173 = vld [vmem:[%s2057 + $0x398] sm:$0xff]
        %v2174 = vld [vmem:[%s2057 + $0x3a0] sm:$0xff]
        %v2175 = vld [vmem:[%s2057 + $0x3a8] sm:$0xff]
        %v2176 = vld [vmem:[%s2057 + $0x3b0] sm:$0xff]
        %v2177 = vld [vmem:[%s2057 + $0x3b8] sm:$0xff]
        %v2178 = vld [vmem:[%s2057 + $0x3c0] sm:$0xff]
        %v2179 = vld [vmem:[%s2057 + $0x3c8] sm:$0xff]
        %v2180 = vld [vmem:[%s2057 + $0x3d0] sm:$0xff]
        %v2181 = vld [vmem:[%s2057 + $0x3d8] sm:$0xff]
        %v2182 = vld [vmem:[%s2057 + $0x3e0] sm:$0xff]
        %v2183 = vld [vmem:[%s2057 + $0x3e8] sm:$0xff]
        %v2184 = vld [vmem:[%s2057 + $0x3f0] sm:$0xff]
        %v2185 = vld [vmem:[%s2057 + $0x3f8] sm:$0xff]
        %v2186 = vld [vmem:[%s2057 + $0x400] sm:$0xff]
        %v2187 = vld [vmem:[%s2057 + $0x408] sm:$0xff]
        %v2188 = vld [vmem:[%s2057 + $0x410] sm:$0xff]
        %v2189 = vld [vmem:[%s2057 + $0x418] sm:$0xff]
        %v2190 = vld [vmem:[%s2057 + $0x420] sm:$0xff]
        %v2191 = vld [vmem:[%s2057 + $0x428] sm:$0xff]
        %v2192 = vld [vmem:[%s2057 + $0x430] sm:$0xff]
        %v2193 = vld [vmem:[%s2057 + $0x438] sm:$0xff]
        %v2194 = vld [vmem:[%s2057 + $0x440] sm:$0xff]
        %v2195 = vld [vmem:[%s2057 + $0x448] sm:$0xff]
        %v2196 = vld [vmem:[%s2057 + $0x450] sm:$0xff]
        %v2197 = vld [vmem:[%s2057 + $0x458] sm:$0xff]
        %v2198 = vld [vmem:[%s2057 + $0x460] sm:$0xff]
        %v2199 = vld [vmem:[%s2057 + $0x468] sm:$0xff]
        %v2200 = vld [vmem:[%s2057 + $0x470] sm:$0xff]
        %v2201 = vld [vmem:[%s2057 + $0x478] sm:$0xff]
        %v2202 = vld [vmem:[%s2057 + $0x480] sm:$0xff]
        %v2203 = vld [vmem:[%s2057 + $0x488] sm:$0xff]
        %v2204 = vld [vmem:[%s2057 + $0x490] sm:$0xff]
        %v2205 = vld [vmem:[%s2057 + $0x498] sm:$0xff]
        %v2206 = vld [vmem:[%s2057 + $0x4a0] sm:$0xff]
        %v2207 = vld [vmem:[%s2057 + $0x4a8] sm:$0xff]
        %v2208 = vld [vmem:[%s2057 + $0x4b0] sm:$0xff]
        %v2209 = vld [vmem:[%s2057 + $0x4b8] sm:$0xff]
        %v2210 = vld [vmem:[%s2057 + $0x4c0] sm:$0xff]
        %v2211 = vld [vmem:[%s2057 + $0x4c8] sm:$0xff]
        %v2212 = vld [vmem:[%s2057 + $0x4d0] sm:$0xff]
        %v2213 = vld [vmem:[%s2057 + $0x4d8] sm:$0xff]
        %v2214 = vld [vmem:[%s2057 + $0x4e0] sm:$0xff]
        %v2215 = vld [vmem:[%s2057 + $0x4e8] sm:$0xff]
        %v2216 = vld [vmem:[%s2057 + $0x4f0] sm:$0xff]
        %v2217 = vld [vmem:[%s2057 + $0x4f8] sm:$0xff]
        %v2218 = vld [vmem:[%s2057 + $0x500] sm:$0xff]
        %v2219 = vld [vmem:[%s2057 + $0x508] sm:$0xff]
        %v2220 = vld [vmem:[%s2057 + $0x510] sm:$0xff]
        %v2221 = vld [vmem:[%s2057 + $0x518] sm:$0xff]
        %v2222 = vld [vmem:[%s2057 + $0x520] sm:$0xff]
        %v2223 = vld [vmem:[%s2057 + $0x528] sm:$0xff]
        %v2224 = vld [vmem:[%s2057 + $0x530] sm:$0xff]
        %v2225 = vld [vmem:[%s2057 + $0x538] sm:$0xff]
        %v2226 = vld [vmem:[%s2057 + $0x540] sm:$0xff]
        %v2227 = vld [vmem:[%s2057 + $0x548] sm:$0xff]
        %v2228 = vld [vmem:[%s2057 + $0x550] sm:$0xff]
        %v2229 = vld [vmem:[%s2057 + $0x558] sm:$0xff]
        %v2230 = vld [vmem:[%s2057 + $0x560] sm:$0xff]
        %v2231 = vld [vmem:[%s2057 + $0x568] sm:$0xff]
        %v2232 = vld [vmem:[%s2057 + $0x570] sm:$0xff]
        %v2233 = vld [vmem:[%s2057 + $0x578] sm:$0xff]
        %v2234 = vld [vmem:[%s2057 + $0x580] sm:$0xff]
        %v2235 = vld [vmem:[%s2057 + $0x588] sm:$0xff]
        %v2236 = vld [vmem:[%s2057 + $0x590] sm:$0xff]
        %v2237 = vld [vmem:[%s2057 + $0x598] sm:$0xff]
        %v2238 = vld [vmem:[%s2057 + $0x5a0] sm:$0xff]
        %v2239 = vld [vmem:[%s2057 + $0x5a8] sm:$0xff]
        %v2240 = vld [vmem:[%s2057 + $0x5b0] sm:$0xff]
        %v2241 = vld [vmem:[%s2057 + $0x5b8] sm:$0xff]
        %v2242 = vld [vmem:[%s2057 + $0x5c0] sm:$0xff]
        %v2243 = vld [vmem:[%s2057 + $0x5c8] sm:$0xff]
        %v2244 = vld [vmem:[%s2057 + $0x5d0] sm:$0xff]
        %v2245 = vld [vmem:[%s2057 + $0x5d8] sm:$0xff]
        %v2246 = vld [vmem:[%s2057 + $0x5e0] sm:$0xff]
        %v2247 = vld [vmem:[%s2057 + $0x5e8] sm:$0xff]
        %v2248 = vld [vmem:[%s2057 + $0x5f0] sm:$0xff]
        %v2249 = vld [vmem:[%s2057 + $0x5f8] sm:$0xff]
        %v2250 = vld [vmem:[%s2057 + $0x600] sm:$0xff]
        %v2251 = vld [vmem:[%s2057 + $0x608] sm:$0xff]
        %v2252 = vld [vmem:[%s2057 + $0x610] sm:$0xff]
        %v2253 = vld [vmem:[%s2057 + $0x618] sm:$0xff]
        %v2254 = vld [vmem:[%s2057 + $0x620] sm:$0xff]
        %v2255 = vld [vmem:[%s2057 + $0x628] sm:$0xff]
        %v2256 = vld [vmem:[%s2057 + $0x630] sm:$0xff]
        %v2257 = vld [vmem:[%s2057 + $0x638] sm:$0xff]
        %v2258 = vld [vmem:[%s2057 + $0x640] sm:$0xff]
        %v2259 = vld [vmem:[%s2057 + $0x648] sm:$0xff]
        %v2260 = vld [vmem:[%s2057 + $0x650] sm:$0xff]
        %v2261 = vld [vmem:[%s2057 + $0x658] sm:$0xff]
        %v2262 = vld [vmem:[%s2057 + $0x660] sm:$0xff]
        %v2263 = vld [vmem:[%s2057 + $0x668] sm:$0xff]
        %v2264 = vld [vmem:[%s2057 + $0x670] sm:$0xff]
        %v2265 = vld [vmem:[%s2057 + $0x678] sm:$0xff]
        %v2266 = vld [vmem:[%s2057 + $0x680] sm:$0xff]
        %v2267 = vld [vmem:[%s2057 + $0x688] sm:$0xff]
        %v2268 = vld [vmem:[%s2057 + $0x690] sm:$0xff]
        %v2269 = vld [vmem:[%s2057 + $0x698] sm:$0xff]
        %v2270 = vld [vmem:[%s2057 + $0x6a0] sm:$0xff]
        %v2271 = vld [vmem:[%s2057 + $0x6a8] sm:$0xff]
        %v2272 = vld [vmem:[%s2057 + $0x6b0] sm:$0xff]
        %v2273 = vld [vmem:[%s2057 + $0x6b8] sm:$0xff]
        %v2274 = vld [vmem:[%s2057 + $0x6c0] sm:$0xff]
        %v2275 = vld [vmem:[%s2057 + $0x6c8] sm:$0xff]
        %v2276 = vld [vmem:[%s2057 + $0x6d0] sm:$0xff]
        %v2277 = vld [vmem:[%s2057 + $0x6d8] sm:$0xff]
        %v2278 = vld [vmem:[%s2057 + $0x6e0] sm:$0xff]
        %v2279 = vld [vmem:[%s2057 + $0x6e8] sm:$0xff]
        %v2280 = vld [vmem:[%s2057 + $0x6f0] sm:$0xff]
        %v2281 = vld [vmem:[%s2057 + $0x6f8] sm:$0xff]
        %v2282 = vld [vmem:[%s2057 + $0x700] sm:$0xff]
        %v2283 = vld [vmem:[%s2057 + $0x708] sm:$0xff]
        %v2284 = vld [vmem:[%s2057 + $0x710] sm:$0xff]
        %v2285 = vld [vmem:[%s2057 + $0x718] sm:$0xff]
        %v2286 = vld [vmem:[%s2057 + $0x720] sm:$0xff]
        %v2287 = vld [vmem:[%s2057 + $0x728] sm:$0xff]
        %v2288 = vld [vmem:[%s2057 + $0x730] sm:$0xff]
        %v2289 = vld [vmem:[%s2057 + $0x738] sm:$0xff]
        %v2290 = vld [vmem:[%s2057 + $0x740] sm:$0xff]
        %v2291 = vld [vmem:[%s2057 + $0x748] sm:$0xff]
        %v2292 = vld [vmem:[%s2057 + $0x750] sm:$0xff]
        %v2293 = vld [vmem:[%s2057 + $0x758] sm:$0xff]
        %v2294 = vld [vmem:[%s2057 + $0x760] sm:$0xff]
        %v2295 = vld [vmem:[%s2057 + $0x768] sm:$0xff]
        %v2296 = vld [vmem:[%s2057 + $0x770] sm:$0xff]
        %v2297 = vld [vmem:[%s2057 + $0x778] sm:$0xff]
        %v2298 = vld [vmem:[%s2057 + $0x780] sm:$0xff]
        %v2299 = vld [vmem:[%s2057 + $0x788] sm:$0xff]
        %v2300 = vld [vmem:[%s2057 + $0x790] sm:$0xff]
        %v2301 = vld [vmem:[%s2057 + $0x798] sm:$0xff]
        %v2302 = vld [vmem:[%s2057 + $0x7a0] sm:$0xff]
        %v2303 = vld [vmem:[%s2057 + $0x7a8] sm:$0xff]
        %v2304 = vld [vmem:[%s2057 + $0x7b0] sm:$0xff]
        %v2305 = vld [vmem:[%s2057 + $0x7b8] sm:$0xff]
        %v2306 = vld [vmem:[%s2057 + $0x7c0] sm:$0xff]
        %v2307 = vld [vmem:[%s2057 + $0x7c8] sm:$0xff]
        %v2308 = vld [vmem:[%s2057 + $0x7d0] sm:$0xff]
        %v2309 = vld [vmem:[%s2057 + $0x7d8] sm:$0xff]
        %v2310 = vld [vmem:[%s2057 + $0x7e0] sm:$0xff]
        %v2311 = vld [vmem:[%s2057 + $0x7e8] sm:$0xff]
        %v2312 = vld [vmem:[%s2057 + $0x7f0] sm:$0xff]
        %v2313 = vld [vmem:[%s2057 + $0x7f8] sm:$0xff]
        %2314 = vmatprep.subr.mxu0 %v2059
        %2315 = vmatpush1.msra.mxu0 %v2058
        %2316 = vmatprep.subr.mxu0 %v2067
        %2317 = vmatpush1.msra.mxu0 %v2066
        %2318 = vmatprep.subr.mxu0 %v2075
        %2319 = vmatpush1.msra.mxu0 %v2074
        %2320 = vmatprep.subr.mxu0 %v2083
        %2321 = vmatpush1.msra.mxu0 %v2082
        %2322 = vmatprep.subr.mxu0 %v2091
        %2323 = vmatpush1.msra.mxu0 %v2090
        %2324 = vmatprep.subr.mxu0 %v2099
        %2325 = vmatpush1.msra.mxu0 %v2098
        %2326 = vmatprep.subr.mxu0 %v2107
        %2327 = vmatpush1.msra.mxu0 %v2106
        %2328 = vmatprep.subr.mxu0 %v2115
        %2329 = vmatpush1.msra.mxu0 %v2114
        %2330 = vmatprep.subr.mxu0 %v2123
        %2331 = vmatpush1.msra.mxu0 %v2122
        %2332 = vmatprep.subr.mxu0 %v2131
        %2333 = vmatpush1.msra.mxu0 %v2130
        %2334 = vmatprep.subr.mxu0 %v2139
        %2335 = vmatpush1.msra.mxu0 %v2138
        %2336 = vmatprep.subr.mxu0 %v2147
        %2337 = vmatpush1.msra.mxu0 %v2146
        %2338 = vmatprep.subr.mxu0 %v2155
        %2339 = vmatpush1.msra.mxu0 %v2154
        %2340 = vmatprep.subr.mxu0 %v2163
        %2341 = vmatpush1.msra.mxu0 %v2162
        %2342 = vmatprep.subr.mxu0 %v2171
        %2343 = vmatpush1.msra.mxu0 %v2170
        %2344 = vmatprep.subr.mxu0 %v2179
        %2345 = vmatpush1.msra.mxu0 %v2178
        %2346 = vmatprep.subr.mxu0 %v2187
        %2347 = vmatpush1.msra.mxu0 %v2186
        %2348 = vmatprep.subr.mxu0 %v2195
        %2349 = vmatpush1.msra.mxu0 %v2194
        %2350 = vmatprep.subr.mxu0 %v2203
        %2351 = vmatpush1.msra.mxu0 %v2202
        %2352 = vmatprep.subr.mxu0 %v2211
        %2353 = vmatpush1.msra.mxu0 %v2210
        %2354 = vmatprep.subr.mxu0 %v2219
        %2355 = vmatpush1.msra.mxu0 %v2218
        %2356 = vmatprep.subr.mxu0 %v2227
        %2357 = vmatpush1.msra.mxu0 %v2226
        %2358 = vmatprep.subr.mxu0 %v2235
        %2359 = vmatpush1.msra.mxu0 %v2234
        %2360 = vmatprep.subr.mxu0 %v2243
        %2361 = vmatpush1.msra.mxu0 %v2242
        %2362 = vmatprep.subr.mxu0 %v2251
        %2363 = vmatpush1.msra.mxu0 %v2250
        %2364 = vmatprep.subr.mxu0 %v2259
        %2365 = vmatpush1.msra.mxu0 %v2258
        %2366 = vmatprep.subr.mxu0 %v2267
        %2367 = vmatpush1.msra.mxu0 %v2266
        %2368 = vmatprep.subr.mxu0 %v2275
        %2369 = vmatpush1.msra.mxu0 %v2274
        %2370 = vmatprep.subr.mxu0 %v2283
        %2371 = vmatpush1.msra.mxu0 %v2282
        %2372 = vmatprep.subr.mxu0 %v2291
        %2373 = vmatpush1.msra.mxu0 %v2290
        %2374 = vmatprep.subr.mxu0 %v2299
        %2375 = vmatpush1.msra.mxu0 %v2298
        %2376 = vmatprep.subr.mxu0 %v2307
        %2377 = vmatpush1.msra.mxu0 %v2306
        %2378 = vmatprep.mubr.f32.mxu0 %v425
        %2379 = vmatmul.mubr.f32.gmra.mrb[0].mxu0 %v423
        %v2380 = vpop.f32.mrb[0].mxu0
        %v2381 = vadd.f32 0.0, %v2380
        %v2382 = vpop.f32.mrb[0].mxu0
        %v2383 = vadd.f32 0.0, %v2382
        %2384 = vdwg.mxu0
        %2385 = vmatprep.subr.mxu0 %v2061
        %2386 = vmatpush1.msra.mxu0 %v2060
        %2387 = vmatprep.subr.mxu0 %v2069
        %2388 = vmatpush1.msra.mxu0 %v2068
        %2389 = vmatprep.subr.mxu0 %v2077
        %2390 = vmatpush1.msra.mxu0 %v2076
        %2391 = vmatprep.subr.mxu0 %v2085
        %2392 = vmatpush1.msra.mxu0 %v2084
        %2393 = vmatprep.subr.mxu0 %v2093
        %2394 = vmatpush1.msra.mxu0 %v2092
        %2395 = vmatprep.subr.mxu0 %v2101
        %2396 = vmatpush1.msra.mxu0 %v2100
        %2397 = vmatprep.subr.mxu0 %v2109
        %2398 = vmatpush1.msra.mxu0 %v2108
        %2399 = vmatprep.subr.mxu0 %v2117
        %2400 = vmatpush1.msra.mxu0 %v2116
        %2401 = vmatprep.subr.mxu0 %v2125
        %2402 = vmatpush1.msra.mxu0 %v2124
        %2403 = vmatprep.subr.mxu0 %v2133
        %2404 = vmatpush1.msra.mxu0 %v2132
        %2405 = vmatprep.subr.mxu0 %v2141
        %2406 = vmatpush1.msra.mxu0 %v2140
        %2407 = vmatprep.subr.mxu0 %v2149
        %2408 = vmatpush1.msra.mxu0 %v2148
        %2409 = vmatprep.subr.mxu0 %v2157
        %2410 = vmatpush1.msra.mxu0 %v2156
        %2411 = vmatprep.subr.mxu0 %v2165
        %2412 = vmatpush1.msra.mxu0 %v2164
        %2413 = vmatprep.subr.mxu0 %v2173
        %2414 = vmatpush1.msra.mxu0 %v2172
        %2415 = vmatprep.subr.mxu0 %v2181
        %2416 = vmatpush1.msra.mxu0 %v2180
        %2417 = vmatprep.subr.mxu0 %v2189
        %2418 = vmatpush1.msra.mxu0 %v2188
        %2419 = vmatprep.subr.mxu0 %v2197
        %2420 = vmatpush1.msra.mxu0 %v2196
        %2421 = vmatprep.subr.mxu0 %v2205
        %2422 = vmatpush1.msra.mxu0 %v2204
        %2423 = vmatprep.subr.mxu0 %v2213
        %2424 = vmatpush1.msra.mxu0 %v2212
        %2425 = vmatprep.subr.mxu0 %v2221
        %2426 = vmatpush1.msra.mxu0 %v2220
        %2427 = vmatprep.subr.mxu0 %v2229
        %2428 = vmatpush1.msra.mxu0 %v2228
        %2429 = vmatprep.subr.mxu0 %v2237
        %2430 = vmatpush1.msra.mxu0 %v2236
        %2431 = vmatprep.subr.mxu0 %v2245
        %2432 = vmatpush1.msra.mxu0 %v2244
        %2433 = vmatprep.subr.mxu0 %v2253
        %2434 = vmatpush1.msra.mxu0 %v2252
        %2435 = vmatprep.subr.mxu0 %v2261
        %2436 = vmatpush1.msra.mxu0 %v2260
        %2437 = vmatprep.subr.mxu0 %v2269
        %2438 = vmatpush1.msra.mxu0 %v2268
        %2439 = vmatprep.subr.mxu0 %v2277
        %2440 = vmatpush1.msra.mxu0 %v2276
        %2441 = vmatprep.subr.mxu0 %v2285
        %2442 = vmatpush1.msra.mxu0 %v2284
        %2443 = vmatprep.subr.mxu0 %v2293
        %2444 = vmatpush1.msra.mxu0 %v2292
        %2445 = vmatprep.subr.mxu0 %v2301
        %2446 = vmatpush1.msra.mxu0 %v2300
        %2447 = vmatprep.subr.mxu0 %v2309
        %2448 = vmatpush1.msra.mxu0 %v2308
        %2449 = vmatprep.mubr.f32.mxu0 %v425
        %2450 = vmatmul.mubr.f32.gmra.mrb[0].mxu0 %v423
        %v2451 = vpop.f32.mrb[0].mxu0
        %v2452 = vadd.f32 0.0, %v2451
        %v2453 = vpop.f32.mrb[0].mxu0
        %v2454 = vadd.f32 0.0, %v2453
        %2455 = vdwg.mxu0
        %2456 = vmatprep.subr.mxu0 %v2063
        %2457 = vmatpush1.msra.mxu0 %v2062
        %2458 = vmatprep.subr.mxu0 %v2071
        %2459 = vmatpush1.msra.mxu0 %v2070
        %2460 = vmatprep.subr.mxu0 %v2079
        %2461 = vmatpush1.msra.mxu0 %v2078
        %2462 = vmatprep.subr.mxu0 %v2087
        %2463 = vmatpush1.msra.mxu0 %v2086
        %2464 = vmatprep.subr.mxu0 %v2095
        %2465 = vmatpush1.msra.mxu0 %v2094
        %2466 = vmatprep.subr.mxu0 %v2103
        %2467 = vmatpush1.msra.mxu0 %v2102
        %2468 = vmatprep.subr.mxu0 %v2111
        %2469 = vmatpush1.msra.mxu0 %v2110
        %2470 = vmatprep.subr.mxu0 %v2119
        %2471 = vmatpush1.msra.mxu0 %v2118
        %2472 = vmatprep.subr.mxu0 %v2127
        %2473 = vmatpush1.msra.mxu0 %v2126
        %2474 = vmatprep.subr.mxu0 %v2135
        %2475 = vmatpush1.msra.mxu0 %v2134
        %2476 = vmatprep.subr.mxu0 %v2143
        %2477 = vmatpush1.msra.mxu0 %v2142
        %2478 = vmatprep.subr.mxu0 %v2151
        %2479 = vmatpush1.msra.mxu0 %v2150
        %2480 = vmatprep.subr.mxu0 %v2159
        %2481 = vmatpush1.msra.mxu0 %v2158
        %2482 = vmatprep.subr.mxu0 %v2167
        %2483 = vmatpush1.msra.mxu0 %v2166
        %2484 = vmatprep.subr.mxu0 %v2175
        %2485 = vmatpush1.msra.mxu0 %v2174
        %2486 = vmatprep.subr.mxu0 %v2183
        %2487 = vmatpush1.msra.mxu0 %v2182
        %2488 = vmatprep.subr.mxu0 %v2191
        %2489 = vmatpush1.msra.mxu0 %v2190
        %2490 = vmatprep.subr.mxu0 %v2199
        %2491 = vmatpush1.msra.mxu0 %v2198
        %2492 = vmatprep.subr.mxu0 %v2207
        %2493 = vmatpush1.msra.mxu0 %v2206
        %2494 = vmatprep.subr.mxu0 %v2215
        %2495 = vmatpush1.msra.mxu0 %v2214
        %2496 = vmatprep.subr.mxu0 %v2223
        %2497 = vmatpush1.msra.mxu0 %v2222
        %2498 = vmatprep.subr.mxu0 %v2231
        %2499 = vmatpush1.msra.mxu0 %v2230
        %2500 = vmatprep.subr.mxu0 %v2239
        %2501 = vmatpush1.msra.mxu0 %v2238
        %2502 = vmatprep.subr.mxu0 %v2247
        %2503 = vmatpush1.msra.mxu0 %v2246
        %2504 = vmatprep.subr.mxu0 %v2255
        %2505 = vmatpush1.msra.mxu0 %v2254
        %2506 = vmatprep.subr.mxu0 %v2263
        %2507 = vmatpush1.msra.mxu0 %v2262
        %2508 = vmatprep.subr.mxu0 %v2271
        %2509 = vmatpush1.msra.mxu0 %v2270
        %2510 = vmatprep.subr.mxu0 %v2279
        %2511 = vmatpush1.msra.mxu0 %v2278
        %2512 = vmatprep.subr.mxu0 %v2287
        %2513 = vmatpush1.msra.mxu0 %v2286
        %2514 = vmatprep.subr.mxu0 %v2295
        %2515 = vmatpush1.msra.mxu0 %v2294
        %2516 = vmatprep.subr.mxu0 %v2303
        %2517 = vmatpush1.msra.mxu0 %v2302
        %2518 = vmatprep.subr.mxu0 %v2311
        %2519 = vmatpush1.msra.mxu0 %v2310
        %2520 = vmatprep.mubr.f32.mxu0 %v425
        %2521 = vmatmul.mubr.f32.gmra.mrb[0].mxu0 %v423
        %v2522 = vpop.f32.mrb[0].mxu0
        %v2523 = vadd.f32 0.0, %v2522
        %v2524 = vpop.f32.mrb[0].mxu0
        %v2525 = vadd.f32 0.0, %v2524
        %2526 = vdwg.mxu0
        %2527 = vmatprep.subr.mxu0 %v2065
        %2528 = vmatpush1.msra.mxu0 %v2064
        %2529 = vmatprep.subr.mxu0 %v2073
        %2530 = vmatpush1.msra.mxu0 %v2072
        %2531 = vmatprep.subr.mxu0 %v2081
        %2532 = vmatpush1.msra.mxu0 %v2080
        %2533 = vmatprep.subr.mxu0 %v2089
        %2534 = vmatpush1.msra.mxu0 %v2088
        %2535 = vmatprep.subr.mxu0 %v2097
        %2536 = vmatpush1.msra.mxu0 %v2096
        %2537 = vmatprep.subr.mxu0 %v2105
        %2538 = vmatpush1.msra.mxu0 %v2104
        %2539 = vmatprep.subr.mxu0 %v2113
        %2540 = vmatpush1.msra.mxu0 %v2112
        %2541 = vmatprep.subr.mxu0 %v2121
        %2542 = vmatpush1.msra.mxu0 %v2120
        %2543 = vmatprep.subr.mxu0 %v2129
        %2544 = vmatpush1.msra.mxu0 %v2128
        %2545 = vmatprep.subr.mxu0 %v2137
        %2546 = vmatpush1.msra.mxu0 %v2136
        %2547 = vmatprep.subr.mxu0 %v2145
        %2548 = vmatpush1.msra.mxu0 %v2144
        %2549 = vmatprep.subr.mxu0 %v2153
        %2550 = vmatpush1.msra.mxu0 %v2152
        %2551 = vmatprep.subr.mxu0 %v2161
        %2552 = vmatpush1.msra.mxu0 %v2160
        %2553 = vmatprep.subr.mxu0 %v2169
        %2554 = vmatpush1.msra.mxu0 %v2168
        %2555 = vmatprep.subr.mxu0 %v2177
        %2556 = vmatpush1.msra.mxu0 %v2176
        %2557 = vmatprep.subr.mxu0 %v2185
        %2558 = vmatpush1.msra.mxu0 %v2184
        %2559 = vmatprep.subr.mxu0 %v2193
        %2560 = vmatpush1.msra.mxu0 %v2192
        %2561 = vmatprep.subr.mxu0 %v2201
        %2562 = vmatpush1.msra.mxu0 %v2200
        %2563 = vmatprep.subr.mxu0 %v2209
        %2564 = vmatpush1.msra.mxu0 %v2208
        %2565 = vmatprep.subr.mxu0 %v2217
        %2566 = vmatpush1.msra.mxu0 %v2216
        %2567 = vmatprep.subr.mxu0 %v2225
        %2568 = vmatpush1.msra.mxu0 %v2224
        %2569 = vmatprep.subr.mxu0 %v2233
        %2570 = vmatpush1.msra.mxu0 %v2232
        %2571 = vmatprep.subr.mxu0 %v2241
        %2572 = vmatpush1.msra.mxu0 %v2240
        %2573 = vmatprep.subr.mxu0 %v2249
        %2574 = vmatpush1.msra.mxu0 %v2248
        %2575 = vmatprep.subr.mxu0 %v2257
        %2576 = vmatpush1.msra.mxu0 %v2256
        %2577 = vmatprep.subr.mxu0 %v2265
        %2578 = vmatpush1.msra.mxu0 %v2264
        %2579 = vmatprep.subr.mxu0 %v2273
        %2580 = vmatpush1.msra.mxu0 %v2272
        %2581 = vmatprep.subr.mxu0 %v2281
        %2582 = vmatpush1.msra.mxu0 %v2280
        %2583 = vmatprep.subr.mxu0 %v2289
        %2584 = vmatpush1.msra.mxu0 %v2288
        %2585 = vmatprep.subr.mxu0 %v2297
        %2586 = vmatpush1.msra.mxu0 %v2296
        %2587 = vmatprep.subr.mxu0 %v2305
        %2588 = vmatpush1.msra.mxu0 %v2304
        %2589 = vmatprep.subr.mxu0 %v2313
        %2590 = vmatpush1.msra.mxu0 %v2312
        %2591 = vmatprep.mubr.f32.mxu0 %v425
        %2592 = vmatmul.mubr.f32.gmra.mrb[0].mxu0 %v423
        %v2593 = vpop.f32.mrb[0].mxu0
        %v2594 = vadd.f32 0.0, %v2593
        %v2595 = vpop.f32.mrb[0].mxu0
        %v2596 = vadd.f32 0.0, %v2595
        %2597 = vdwg.mxu0
        %v2598 = vadd.f32 %v2049, %v2381
        %v2599 = vadd.f32 %v2050, %v2383
        %v2600 = vadd.f32 %v2051, %v2452
        %v2601 = vadd.f32 %v2052, %v2454
        %v2602 = vadd.f32 %v2053, %v2523
        %v2603 = vadd.f32 %v2054, %v2525
        %v2604 = vadd.f32 %v2055, %v2594
        %v2605 = vadd.f32 %v2056, %v2596
        %2606 = vst [vmem:[%s292] sm:$0xff] %v2598
        %2607 = vst [vmem:[%s292 + $0x8] sm:$0xff] %v2599
        %2608 = vst [vmem:[%s292 + $0x10] sm:$0xff] %v2600
        %2609 = vst [vmem:[%s292 + $0x18] sm:$0xff] %v2601
        %2610 = vst [vmem:[%s292 + $0x20] sm:$0xff] %v2602
        %2611 = vst [vmem:[%s292 + $0x28] sm:$0xff] %v2603
        %2612 = vst [vmem:[%s292 + $0x30] sm:$0xff] %v2604
        %2613 = vst [vmem:[%s292 + $0x38] sm:$0xff] %v2605
        %v2614 = vld [vmem:[%s261] sm:$0xff]
        %v2615 = vld [vmem:[%s261 + $0x8] sm:$0xff]
        %v2616 = vld [vmem:[%s261 + $0x10] sm:$0xff]
        %v2617 = vld [vmem:[%s261 + $0x18] sm:$0xff]
        %v2618 = vld [vmem:[%s261 + $0x20] sm:$0xff]
        %v2619 = vld [vmem:[%s261 + $0x28] sm:$0xff]
        %v2620 = vld [vmem:[%s261 + $0x30] sm:$0xff]
        %v2621 = vld [vmem:[%s261 + $0x38] sm:$0xff]
        %2622 = vst [vmem:[%s292 + $0x40] sm:$0xff] %v2614
        %2623 = vst [vmem:[%s292 + $0x48] sm:$0xff] %v2615
        %2624 = vst [vmem:[%s292 + $0x50] sm:$0xff] %v2616
        %2625 = vst [vmem:[%s292 + $0x58] sm:$0xff] %v2617
        %2626 = vst [vmem:[%s292 + $0x60] sm:$0xff] %v2618
        %2627 = vst [vmem:[%s292 + $0x68] sm:$0xff] %v2619
        %2628 = vst [vmem:[%s292 + $0x70] sm:$0xff] %v2620
        %2629 = vst [vmem:[%s292 + $0x78] sm:$0xff] %v2621
        %s2630 = sand.u32 %s146, 1
        %s2631 = scalar_lea.sflag [#allocation4], %s2630
        %s2632 = sand.u32 %s146, 1
        %s2633 = smul.addr %s2632, 128
        %s2634 = scalar_lea.vmem [#allocation8], %s2633
        // Predicated region
        $region53: #{tpu_custom_call.1} parent=39 // pred_check
          %p2635 = pneg %p156
        $region54: #{tpu_custom_call.1} parent=39 // pred_check_branch
          %2637 = sbr.rel (%p2635) target = $region56
        $region55: #{tpu_custom_call.1} parent=39 // pred_region
          %s2639 = ssub.s32 2048, 2048
          %2640 = vsyncadd %s2631, %s2639
          %s2641 = smul.addr %s23, 16
          %s2642 = smul.addr %s2641, 128
          %s2643 = scalar_lea.hbm %s5, %s2642
          %s2644 = sshll.u32 %s2634, 4
          %s2645 = int_to_ptr.vmem [resolvable:$true] %s2644
          %2650 = dma.vmem_to_hbm [thread:$0]  %s2645, 2048, %s2643, %s2631, 1024, 1024, 64
        $region56: #{tpu_custom_call.1} parent=39 // pred_fallthru
          _
      $region40: #{tpu_custom_call.1} parent=5 // pred_fallthru
        _
      %p2651 = scmp.le.s32.totalorder 2, %s18
      // Predicated region
      $region57: #{tpu_custom_call.1} parent=5 // pred_check
        %p2652 = pneg %p2651
      $region58: #{tpu_custom_call.1} parent=5 // pred_check_branch
        %2654 = sbr.rel (%p2652) target = $region60
      $region59: #{tpu_custom_call.1} parent=5 // pred_region
        %s2655 = ssub.s32 %s18, 2
        // Predicated region
        $region61: #{tpu_custom_call.1} parent=59 // pred_check
          %p2656 = pneg %p162
        $region62: #{tpu_custom_call.1} parent=59 // pred_check_branch
          %2658 = sbr.rel (%p2656) target = $region64
        $region63: #{tpu_custom_call.1} parent=59 // pred_region
          %s2659 = sand.u32 %s147, 1
          %s2660 = scalar_lea.sflag [#allocation4], %s2659
          %s2661 = sand.u32 %s147, 1
          %s2662 = smul.addr %s2661, 128
          %s2663 = scalar_lea.vmem [#allocation8], %s2662
          %2664 = dma.done %s2660, 2048
        $region64: #{tpu_custom_call.1} parent=59 // pred_fallthru
          _
      $region60: #{tpu_custom_call.1} parent=5 // pred_fallthru
        _
    $region6: #{tpu_custom_call.1} parent=1 // loop_footer
      %s22 = sadd.s32 1, %s18
    $region7: #{tpu_custom_call.1} parent=1 // loop_footer_branch
      %17 = sbr.rel target = $region3
    $region8: #{tpu_custom_call.1} parent=1 // loop_exit
      _
    %2665 = vsyncpa [#allocation3], 1
    %s2666 = scalar_lea.sflag [#allocation3], 1
    %2667 = vsyncpa %s2666, 1
    %2668 = vsyncpa [#allocation6], 1
    %2669 = vsyncpa [#allocation4], 1
    %s2670 = scalar_lea.sflag [#allocation4], 1
    %2671 = vsyncpa %s2670, 1

</llo_original>
